<compile_context>
chip_gen: v7x
topology: tpu7x:2x2x1
jax: 0.10.0
libtpu: 0.0.40
codegen_flags: <defaults>
</compile_context>

<pallas_src>
import jax
import jax.numpy as jnp
from jax.experimental import pallas as pl
from jax.experimental.pallas import tpu as pltpu


# ----------------------------- fused network kernel --------------------------
def _make_fused_net_kernel(T, B, H, layer_state_idx):
    """Builds the single fused kernel: all LSTM layers + fc1/ReLU/fc head."""
    n_layers = len(layer_state_idx)

    def kernel(*refs):
        # refs = [x(T*B,Din), h0, c0, (wih, whh, b) * n_layers, w1, b1, w2, b2,
        #         out, seq_scratch_a, seq_scratch_b]
        x_ref, h0_ref, c0_ref = refs[0], refs[1], refs[2]
        layer_refs = refs[3:3 + 3 * n_layers]
        w1_ref, b1_ref, w2_ref, b2_ref = refs[3 + 3 * n_layers:7 + 3 * n_layers]
        out_ref = refs[-3]
        seq_scratch = (refs[-2], refs[-1])        # ping-pong (T*B, H) buffers

        h_last = None
        for li in range(n_layers):                # static unroll over layers
            wih_ref = layer_refs[3 * li + 0]      # (D_in, 4H)
            whh_ref = layer_refs[3 * li + 1]      # (H, 4H)
            b_ref = layer_refs[3 * li + 2]        # (1, 4H) = b_ih + b_hh
            sidx = layer_state_idx[li]

            src_ref = x_ref if li == 0 else seq_scratch[(li - 1) % 2]
            dst_ref = seq_scratch[li % 2]
            write_seq = li + 1 < n_layers         # last layer: only h_last used

            # Hoisted input projection + bias broadcast for ALL timesteps:
            # one (T*B, D_in) @ (D_in, 4H) matmul off the serial critical path.
            xg = (jnp.dot(src_ref[...], wih_ref[...],
                          preferred_element_type=jnp.float32)
                  + b_ref[...])                   # (T*B, 4H)
            whh = whh_ref[...]                    # loaded once per layer
            h = h0_ref[sidx]                      # (B, H)
            c = c0_ref[sidx]                      # (B, H)

            # Fully-unrolled serial recurrence over T (static, small).
            for t in range(T):
                gates = xg[t * B:(t + 1) * B, :] + jnp.dot(
                    h, whh, preferred_element_type=jnp.float32)   # (B, 4H)
                sg = jax.nn.sigmoid(gates)        # one full-width sigmoid (EUP)
                tg = jnp.tanh(gates)              # one full-width tanh (EUP)
                i_g = sg[:, 0:H]
                f_g = sg[:, H:2 * H]
                g_g = tg[:, 2 * H:3 * H]
                o_g = sg[:, 3 * H:4 * H]
                c = f_g * c + i_g * g_g
                h = o_g * jnp.tanh(c)
                if write_seq:
                    dst_ref[t * B:(t + 1) * B, :] = h   # stays in VMEM
            h_last = h

        # Head: fc1 -> ReLU -> fc on the LAST timestep only (== pred[:, -1, :]).
        z = (jnp.dot(h_last, w1_ref[...], preferred_element_type=jnp.float32)
             + b1_ref[...])
        z = jnp.maximum(z, 0.0)
        y = (jnp.dot(z, w2_ref[...], preferred_element_type=jnp.float32)
             + b2_ref[...])
        out_ref[...] = y.astype(out_ref.dtype)

    return kernel


# ----------------------------- full Net forward -------------------------------
def net_forward(x, lstm1_params, lstm2_params, fc1_p, fc_p, h0, c0):
    """x: (B, T, input_size) -> pred: (B, output_size). Single pallas_call."""
    B, T, _D = x.shape
    H = h0.shape[-1]
    w1, b1 = fc1_p
    w2, b2 = fc_p
    O = w2.shape[1]

    layers = list(lstm1_params) + list(lstm2_params)
    # Both stacked LSTMs are fed the same (h_0, c_0); each internal layer uses
    # its own layer index into that state.
    layer_state_idx = tuple(range(len(lstm1_params))) + tuple(range(len(lstm2_params)))

    # Time-major, row-flattened input (row = t*B + b): lets the kernel do one
    # lane-dense (T*B, D) @ (D, 4H) input projection per layer with no
    # in-kernel reshapes.
    x_tm = jnp.transpose(x, (1, 0, 2)).reshape(T * B, -1)

    flat_layer_args = []
    for (w_ih, w_hh, b) in layers:
        flat_layer_args += [w_ih, w_hh, b]
    inputs = [x_tm, h0, c0] + flat_layer_args + [w1, b1, w2, b2]

    vmem = pl.BlockSpec(memory_space=pltpu.MemorySpace.VMEM)
    kernel = _make_fused_net_kernel(T, B, H, layer_state_idx)

    return pl.pallas_call(
        kernel,
        out_shape=jax.ShapeDtypeStruct((B, O), jnp.float32),
        in_specs=[vmem] * len(inputs),
        out_specs=vmem,
        scratch_shapes=[pltpu.VMEM((T * B, H), jnp.float32),
                        pltpu.VMEM((T * B, H), jnp.float32)],
    )(*inputs)


# ----------------------------- parameter init --------------------------------
def init_lstm_params(key, num_layers, input_size, hidden_size):
    """PyTorch-style U(-1/sqrt(H), 1/sqrt(H)) init, pre-transposed for x @ W."""
    params = []
    bound = 1.0 / float(hidden_size) ** 0.5
    for layer in range(num_layers):
        d_in = input_size if layer == 0 else hidden_size
        key, k1, k2, k3, k4 = jax.random.split(key, 5)
        w_ih = jax.random.uniform(k1, (4 * hidden_size, d_in), jnp.float32, -bound, bound)
        w_hh = jax.random.uniform(k2, (4 * hidden_size, hidden_size), jnp.float32, -bound, bound)
        b_ih = jax.random.uniform(k3, (4 * hidden_size,), jnp.float32, -bound, bound)
        b_hh = jax.random.uniform(k4, (4 * hidden_size,), jnp.float32, -bound, bound)
        params.append((w_ih.T, w_hh.T, (b_ih + b_hh)[None, :]))
    return key, params


def init_linear(key, in_f, out_f):
    bound = 1.0 / float(in_f) ** 0.5
    key, kw, kb = jax.random.split(key, 3)
    w = jax.random.uniform(kw, (out_f, in_f), jnp.float32, -bound, bound)
    b = jax.random.uniform(kb, (out_f,), jnp.float32, -bound, bound)
    return key, (w.T, b[None, :])


if __name__ == "__main__":
    # Small shapes consistent with the module (pos-derived hyperparameters).
    batch_size = 2
    seq_length = 8
    input_size = 3
    hidden_size = 32
    num_layers = 2
    output_size = 1

    key = jax.random.PRNGKey(0)
    key, kx, kh, kc = jax.random.split(key, 4)
    x = jax.random.normal(kx, (batch_size, seq_length, input_size), jnp.float32)

    # Deterministic stand-ins for the torch.randn h_0 / c_0 in forward().
    h0 = jax.random.normal(kh, (num_layers, batch_size, hidden_size), jnp.float32)
    c0 = jax.random.normal(kc, (num_layers, batch_size, hidden_size), jnp.float32)

    key, lstm1_params = init_lstm_params(key, num_layers, input_size, hidden_size)
    key, lstm2_params = init_lstm_params(key, num_layers, hidden_size, hidden_size)
    key, fc1_p = init_linear(key, hidden_size, hidden_size)
    key, fc_p = init_linear(key, hidden_size, output_size)

    pred = net_forward(x, lstm1_params, lstm2_params, fc1_p, fc_p, h0, c0)
    pred = jax.block_until_ready(pred)
    assert pred.shape == (batch_size, output_size)
    print("KERNEL_OK")
</pallas_src>

<mosaic_0001>
module attributes {stable_mosaic.version = 11 : i64} {
  func.func @kernel(%arg0: memref<16x3xf32, #tpu.memory_space<vmem>>, %arg1: memref<2x2x32xf32, #tpu.memory_space<vmem>>, %arg2: memref<2x2x32xf32, #tpu.memory_space<vmem>>, %arg3: memref<3x128xf32, #tpu.memory_space<vmem>>, %arg4: memref<32x128xf32, #tpu.memory_space<vmem>>, %arg5: memref<1x128xf32, #tpu.memory_space<vmem>>, %arg6: memref<32x128xf32, #tpu.memory_space<vmem>>, %arg7: memref<32x128xf32, #tpu.memory_space<vmem>>, %arg8: memref<1x128xf32, #tpu.memory_space<vmem>>, %arg9: memref<32x128xf32, #tpu.memory_space<vmem>>, %arg10: memref<32x128xf32, #tpu.memory_space<vmem>>, %arg11: memref<1x128xf32, #tpu.memory_space<vmem>>, %arg12: memref<32x128xf32, #tpu.memory_space<vmem>>, %arg13: memref<32x128xf32, #tpu.memory_space<vmem>>, %arg14: memref<1x128xf32, #tpu.memory_space<vmem>>, %arg15: memref<32x32xf32, #tpu.memory_space<vmem>>, %arg16: memref<1x32xf32, #tpu.memory_space<vmem>>, %arg17: memref<32x1xf32, #tpu.memory_space<vmem>>, %arg18: memref<1x1xf32, #tpu.memory_space<vmem>>, %arg19: memref<2x1xf32, #tpu.memory_space<vmem>>, %arg20: memref<16x32xf32, #tpu.memory_space<vmem>>, %arg21: memref<16x32xf32, #tpu.memory_space<vmem>>) attributes {dimension_semantics = [], scalar_prefetch = 0 : i64, scratch_operands = 2 : i64, tpu.core_type = #tpu.core_type<tc>} {
    %c0 = arith.constant 0 : index
    %c0_0 = arith.constant 0 : index
    %0 = vector.load %arg0[%c0, %c0_0] : memref<16x3xf32, #tpu.memory_space<vmem>>, vector<16x3xf32>
    %c0_1 = arith.constant 0 : index
    %c0_2 = arith.constant 0 : index
    %1 = vector.load %arg3[%c0_1, %c0_2] : memref<3x128xf32, #tpu.memory_space<vmem>>, vector<3x128xf32>
    %cst = arith.constant dense<0.000000e+00> : vector<16x128xf32>
    %2 = tpu.matmul %0, %1, %cst {dimension_numbers = #tpu.dot_dimension_numbers<[1], [0], [0], [1], [0, 0, 1, 1], [], []>} : vector<16x3xf32>, vector<3x128xf32>, vector<16x128xf32> -> vector<16x128xf32>
    %c0_3 = arith.constant 0 : index
    %c0_4 = arith.constant 0 : index
    %3 = vector.load %arg5[%c0_3, %c0_4] : memref<1x128xf32, #tpu.memory_space<vmem>>, vector<1x128xf32>
    %4 = vector.broadcast %3 : vector<1x128xf32> to vector<16x128xf32>
    %5 = arith.addf %2, %4 : vector<16x128xf32>
    %c0_5 = arith.constant 0 : index
    %c0_6 = arith.constant 0 : index
    %6 = vector.load %arg4[%c0_5, %c0_6] : memref<32x128xf32, #tpu.memory_space<vmem>>, vector<32x128xf32>
    %c0_7 = arith.constant 0 : index
    %c0_8 = arith.constant 0 : index
    %c0_9 = arith.constant 0 : index
    %7 = vector.load %arg1[%c0_7, %c0_8, %c0_9] : memref<2x2x32xf32, #tpu.memory_space<vmem>>, vector<1x2x32xf32>
    %8 = vector.shape_cast %7 : vector<1x2x32xf32> to vector<2x32xf32>
    %c0_10 = arith.constant 0 : index
    %c0_11 = arith.constant 0 : index
    %c0_12 = arith.constant 0 : index
    %9 = vector.load %arg2[%c0_10, %c0_11, %c0_12] : memref<2x2x32xf32, #tpu.memory_space<vmem>>, vector<1x2x32xf32>
    %10 = vector.shape_cast %9 : vector<1x2x32xf32> to vector<2x32xf32>
    %11 = vector.extract_strided_slice %5 {offsets = [0, 0], sizes = [2, 128], strides = [1, 1]} : vector<16x128xf32> to vector<2x128xf32>
    %cst_13 = arith.constant dense<0.000000e+00> : vector<2x128xf32>
    %12 = tpu.matmul %8, %6, %cst_13 {dimension_numbers = #tpu.dot_dimension_numbers<[1], [0], [0], [1], [0, 0, 1, 1], [], []>} : vector<2x32xf32>, vector<32x128xf32>, vector<2x128xf32> -> vector<2x128xf32>
    %13 = arith.addf %11, %12 : vector<2x128xf32>
    %14 = arith.negf %13 : vector<2x128xf32>
    %15 = math.exp %14 : vector<2x128xf32>
    %cst_14 = arith.constant 1.000000e+00 : f32
    %16 = vector.broadcast %cst_14 : f32 to vector<2x128xf32>
    %17 = arith.addf %16, %15 : vector<2x128xf32>
    %18 = arith.divf %16, %17 : vector<2x128xf32>
    %19 = math.tanh %13 : vector<2x128xf32>
    %20 = vector.extract_strided_slice %18 {offsets = [0, 0], sizes = [2, 32], strides = [1, 1]} : vector<2x128xf32> to vector<2x32xf32>
    %21 = vector.extract_strided_slice %18 {offsets = [0, 32], sizes = [2, 32], strides = [1, 1]} : vector<2x128xf32> to vector<2x32xf32>
    %22 = vector.extract_strided_slice %19 {offsets = [0, 64], sizes = [2, 32], strides = [1, 1]} : vector<2x128xf32> to vector<2x32xf32>
    %23 = vector.extract_strided_slice %18 {offsets = [0, 96], sizes = [2, 32], strides = [1, 1]} : vector<2x128xf32> to vector<2x32xf32>
    %24 = arith.mulf %21, %10 : vector<2x32xf32>
    %25 = arith.mulf %20, %22 : vector<2x32xf32>
    %26 = arith.addf %24, %25 : vector<2x32xf32>
    %27 = math.tanh %26 : vector<2x32xf32>
    %28 = arith.mulf %23, %27 : vector<2x32xf32>
    %c0_15 = arith.constant 0 : index
    %c0_16 = arith.constant 0 : index
    %29 = vector.load %arg20[%c0_15, %c0_16] : memref<16x32xf32, #tpu.memory_space<vmem>>, vector<2x32xf32>
    tpu.vector_store %arg20[%c0_15, %c0_16], %28 {strides = array<i32>} : memref<16x32xf32, #tpu.memory_space<vmem>>, vector<2x32xf32>,
    %30 = vector.extract_strided_slice %5 {offsets = [2, 0], sizes = [2, 128], strides = [1, 1]} : vector<16x128xf32> to vector<2x128xf32>
    %cst_17 = arith.constant dense<0.000000e+00> : vector<2x128xf32>
    %31 = tpu.matmul %28, %6, %cst_17 {dimension_numbers = #tpu.dot_dimension_numbers<[1], [0], [0], [1], [0, 0, 1, 1], [], []>} : vector<2x32xf32>, vector<32x128xf32>, vector<2x128xf32> -> vector<2x128xf32>
    %32 = arith.addf %30, %31 : vector<2x128xf32>
    %33 = arith.negf %32 : vector<2x128xf32>
    %34 = math.exp %33 : vector<2x128xf32>
    %cst_18 = arith.constant 1.000000e+00 : f32
    %35 = vector.broadcast %cst_18 : f32 to vector<2x128xf32>
    %36 = arith.addf %35, %34 : vector<2x128xf32>
    %37 = arith.divf %35, %36 : vector<2x128xf32>
    %38 = math.tanh %32 : vector<2x128xf32>
    %39 = vector.extract_strided_slice %37 {offsets = [0, 0], sizes = [2, 32], strides = [1, 1]} : vector<2x128xf32> to vector<2x32xf32>
    %40 = vector.extract_strided_slice %37 {offsets = [0, 32], sizes = [2, 32], strides = [1, 1]} : vector<2x128xf32> to vector<2x32xf32>
    %41 = vector.extract_strided_slice %38 {offsets = [0, 64], sizes = [2, 32], strides = [1, 1]} : vector<2x128xf32> to vector<2x32xf32>
    %42 = vector.extract_strided_slice %37 {offsets = [0, 96], sizes = [2, 32], strides = [1, 1]} : vector<2x128xf32> to vector<2x32xf32>
    %43 = arith.mulf %40, %26 : vector<2x32xf32>
    %44 = arith.mulf %39, %41 : vector<2x32xf32>
    %45 = arith.addf %43, %44 : vector<2x32xf32>
    %46 = math.tanh %45 : vector<2x32xf32>
    %47 = arith.mulf %42, %46 : vector<2x32xf32>
    %c2 = arith.constant 2 : index
    %c0_19 = arith.constant 0 : index
    %48 = vector.load %arg20[%c2, %c0_19] : memref<16x32xf32, #tpu.memory_space<vmem>>, vector<2x32xf32>
    tpu.vector_store %arg20[%c2, %c0_19], %47 {strides = array<i32>} : memref<16x32xf32, #tpu.memory_space<vmem>>, vector<2x32xf32>,
    %49 = vector.extract_strided_slice %5 {offsets = [4, 0], sizes = [2, 128], strides = [1, 1]} : vector<16x128xf32> to vector<2x128xf32>
    %cst_20 = arith.constant dense<0.000000e+00> : vector<2x128xf32>
    %50 = tpu.matmul %47, %6, %cst_20 {dimension_numbers = #tpu.dot_dimension_numbers<[1], [0], [0], [1], [0, 0, 1, 1], [], []>} : vector<2x32xf32>, vector<32x128xf32>, vector<2x128xf32> -> vector<2x128xf32>
    %51 = arith.addf %49, %50 : vector<2x128xf32>
    %52 = arith.negf %51 : vector<2x128xf32>
    %53 = math.exp %52 : vector<2x128xf32>
    %cst_21 = arith.constant 1.000000e+00 : f32
    %54 = vector.broadcast %cst_21 : f32 to vector<2x128xf32>
    %55 = arith.addf %54, %53 : vector<2x128xf32>
    %56 = arith.divf %54, %55 : vector<2x128xf32>
    %57 = math.tanh %51 : vector<2x128xf32>
    %58 = vector.extract_strided_slice %56 {offsets = [0, 0], sizes = [2, 32], strides = [1, 1]} : vector<2x128xf32> to vector<2x32xf32>
    %59 = vector.extract_strided_slice %56 {offsets = [0, 32], sizes = [2, 32], strides = [1, 1]} : vector<2x128xf32> to vector<2x32xf32>
    %60 = vector.extract_strided_slice %57 {offsets = [0, 64], sizes = [2, 32], strides = [1, 1]} : vector<2x128xf32> to vector<2x32xf32>
    %61 = vector.extract_strided_slice %56 {offsets = [0, 96], sizes = [2, 32], strides = [1, 1]} : vector<2x128xf32> to vector<2x32xf32>
    %62 = arith.mulf %59, %45 : vector<2x32xf32>
    %63 = arith.mulf %58, %60 : vector<2x32xf32>
    %64 = arith.addf %62, %63 : vector<2x32xf32>
    %65 = math.tanh %64 : vector<2x32xf32>
    %66 = arith.mulf %61, %65 : vector<2x32xf32>
    %c4 = arith.constant 4 : index
    %c0_22 = arith.constant 0 : index
    %67 = vector.load %arg20[%c4, %c0_22] : memref<16x32xf32, #tpu.memory_space<vmem>>, vector<2x32xf32>
    tpu.vector_store %arg20[%c4, %c0_22], %66 {strides = array<i32>} : memref<16x32xf32, #tpu.memory_space<vmem>>, vector<2x32xf32>,
    %68 = vector.extract_strided_slice %5 {offsets = [6, 0], sizes = [2, 128], strides = [1, 1]} : vector<16x128xf32> to vector<2x128xf32>
    %cst_23 = arith.constant dense<0.000000e+00> : vector<2x128xf32>
    %69 = tpu.matmul %66, %6, %cst_23 {dimension_numbers = #tpu.dot_dimension_numbers<[1], [0], [0], [1], [0, 0, 1, 1], [], []>} : vector<2x32xf32>, vector<32x128xf32>, vector<2x128xf32> -> vector<2x128xf32>
    %70 = arith.addf %68, %69 : vector<2x128xf32>
    %71 = arith.negf %70 : vector<2x128xf32>
    %72 = math.exp %71 : vector<2x128xf32>
    %cst_24 = arith.constant 1.000000e+00 : f32
    %73 = vector.broadcast %cst_24 : f32 to vector<2x128xf32>
    %74 = arith.addf %73, %72 : vector<2x128xf32>
    %75 = arith.divf %73, %74 : vector<2x128xf32>
    %76 = math.tanh %70 : vector<2x128xf32>
    %77 = vector.extract_strided_slice %75 {offsets = [0, 0], sizes = [2, 32], strides = [1, 1]} : vector<2x128xf32> to vector<2x32xf32>
    %78 = vector.extract_strided_slice %75 {offsets = [0, 32], sizes = [2, 32], strides = [1, 1]} : vector<2x128xf32> to vector<2x32xf32>
    %79 = vector.extract_strided_slice %76 {offsets = [0, 64], sizes = [2, 32], strides = [1, 1]} : vector<2x128xf32> to vector<2x32xf32>
    %80 = vector.extract_strided_slice %75 {offsets = [0, 96], sizes = [2, 32], strides = [1, 1]} : vector<2x128xf32> to vector<2x32xf32>
    %81 = arith.mulf %78, %64 : vector<2x32xf32>
    %82 = arith.mulf %77, %79 : vector<2x32xf32>
    %83 = arith.addf %81, %82 : vector<2x32xf32>
    %84 = math.tanh %83 : vector<2x32xf32>
    %85 = arith.mulf %80, %84 : vector<2x32xf32>
    %c6 = arith.constant 6 : index
    %c0_25 = arith.constant 0 : index
    %86 = vector.load %arg20[%c6, %c0_25] : memref<16x32xf32, #tpu.memory_space<vmem>>, vector<2x32xf32>
    tpu.vector_store %arg20[%c6, %c0_25], %85 {strides = array<i32>} : memref<16x32xf32, #tpu.memory_space<vmem>>, vector<2x32xf32>,
    %87 = vector.extract_strided_slice %5 {offsets = [8, 0], sizes = [2, 128], strides = [1, 1]} : vector<16x128xf32> to vector<2x128xf32>
    %cst_26 = arith.constant dense<0.000000e+00> : vector<2x128xf32>
    %88 = tpu.matmul %85, %6, %cst_26 {dimension_numbers = #tpu.dot_dimension_numbers<[1], [0], [0], [1], [0, 0, 1, 1], [], []>} : vector<2x32xf32>, vector<32x128xf32>, vector<2x128xf32> -> vector<2x128xf32>
    %89 = arith.addf %87, %88 : vector<2x128xf32>
    %90 = arith.negf %89 : vector<2x128xf32>
    %91 = math.exp %90 : vector<2x128xf32>
    %cst_27 = arith.constant 1.000000e+00 : f32
    %92 = vector.broadcast %cst_27 : f32 to vector<2x128xf32>
    %93 = arith.addf %92, %91 : vector<2x128xf32>
    %94 = arith.divf %92, %93 : vector<2x128xf32>
    %95 = math.tanh %89 : vector<2x128xf32>
    %96 = vector.extract_strided_slice %94 {offsets = [0, 0], sizes = [2, 32], strides = [1, 1]} : vector<2x128xf32> to vector<2x32xf32>
    %97 = vector.extract_strided_slice %94 {offsets = [0, 32], sizes = [2, 32], strides = [1, 1]} : vector<2x128xf32> to vector<2x32xf32>
    %98 = vector.extract_strided_slice %95 {offsets = [0, 64], sizes = [2, 32], strides = [1, 1]} : vector<2x128xf32> to vector<2x32xf32>
    %99 = vector.extract_strided_slice %94 {offsets = [0, 96], sizes = [2, 32], strides = [1, 1]} : vector<2x128xf32> to vector<2x32xf32>
    %100 = arith.mulf %97, %83 : vector<2x32xf32>
    %101 = arith.mulf %96, %98 : vector<2x32xf32>
    %102 = arith.addf %100, %101 : vector<2x32xf32>
    %103 = math.tanh %102 : vector<2x32xf32>
    %104 = arith.mulf %99, %103 : vector<2x32xf32>
    %c8 = arith.constant 8 : index
    %c0_28 = arith.constant 0 : index
    %105 = vector.load %arg20[%c8, %c0_28] : memref<16x32xf32, #tpu.memory_space<vmem>>, vector<2x32xf32>
    tpu.vector_store %arg20[%c8, %c0_28], %104 {strides = array<i32>} : memref<16x32xf32, #tpu.memory_space<vmem>>, vector<2x32xf32>,
    %106 = vector.extract_strided_slice %5 {offsets = [10, 0], sizes = [2, 128], strides = [1, 1]} : vector<16x128xf32> to vector<2x128xf32>
    %cst_29 = arith.constant dense<0.000000e+00> : vector<2x128xf32>
    %107 = tpu.matmul %104, %6, %cst_29 {dimension_numbers = #tpu.dot_dimension_numbers<[1], [0], [0], [1], [0, 0, 1, 1], [], []>} : vector<2x32xf32>, vector<32x128xf32>, vector<2x128xf32> -> vector<2x128xf32>
    %108 = arith.addf %106, %107 : vector<2x128xf32>
    %109 = arith.negf %108 : vector<2x128xf32>
    %110 = math.exp %109 : vector<2x128xf32>
    %cst_30 = arith.constant 1.000000e+00 : f32
    %111 = vector.broadcast %cst_30 : f32 to vector<2x128xf32>
    %112 = arith.addf %111, %110 : vector<2x128xf32>
    %113 = arith.divf %111, %112 : vector<2x128xf32>
    %114 = math.tanh %108 : vector<2x128xf32>
    %115 = vector.extract_strided_slice %113 {offsets = [0, 0], sizes = [2, 32], strides = [1, 1]} : vector<2x128xf32> to vector<2x32xf32>
    %116 = vector.extract_strided_slice %113 {offsets = [0, 32], sizes = [2, 32], strides = [1, 1]} : vector<2x128xf32> to vector<2x32xf32>
    %117 = vector.extract_strided_slice %114 {offsets = [0, 64], sizes = [2, 32], strides = [1, 1]} : vector<2x128xf32> to vector<2x32xf32>
    %118 = vector.extract_strided_slice %113 {offsets = [0, 96], sizes = [2, 32], strides = [1, 1]} : vector<2x128xf32> to vector<2x32xf32>
    %119 = arith.mulf %116, %102 : vector<2x32xf32>
    %120 = arith.mulf %115, %117 : vector<2x32xf32>
    %121 = arith.addf %119, %120 : vector<2x32xf32>
    %122 = math.tanh %121 : vector<2x32xf32>
    %123 = arith.mulf %118, %122 : vector<2x32xf32>
    %c10 = arith.constant 10 : index
    %c0_31 = arith.constant 0 : index
    %124 = vector.load %arg20[%c10, %c0_31] : memref<16x32xf32, #tpu.memory_space<vmem>>, vector<2x32xf32>
    tpu.vector_store %arg20[%c10, %c0_31], %123 {strides = array<i32>} : memref<16x32xf32, #tpu.memory_space<vmem>>, vector<2x32xf32>,
    %125 = vector.extract_strided_slice %5 {offsets = [12, 0], sizes = [2, 128], strides = [1, 1]} : vector<16x128xf32> to vector<2x128xf32>
    %cst_32 = arith.constant dense<0.000000e+00> : vector<2x128xf32>
    %126 = tpu.matmul %123, %6, %cst_32 {dimension_numbers = #tpu.dot_dimension_numbers<[1], [0], [0], [1], [0, 0, 1, 1], [], []>} : vector<2x32xf32>, vector<32x128xf32>, vector<2x128xf32> -> vector<2x128xf32>
    %127 = arith.addf %125, %126 : vector<2x128xf32>
    %128 = arith.negf %127 : vector<2x128xf32>
    %129 = math.exp %128 : vector<2x128xf32>
    %cst_33 = arith.constant 1.000000e+00 : f32
    %130 = vector.broadcast %cst_33 : f32 to vector<2x128xf32>
    %131 = arith.addf %130, %129 : vector<2x128xf32>
    %132 = arith.divf %130, %131 : vector<2x128xf32>
    %133 = math.tanh %127 : vector<2x128xf32>
    %134 = vector.extract_strided_slice %132 {offsets = [0, 0], sizes = [2, 32], strides = [1, 1]} : vector<2x128xf32> to vector<2x32xf32>
    %135 = vector.extract_strided_slice %132 {offsets = [0, 32], sizes = [2, 32], strides = [1, 1]} : vector<2x128xf32> to vector<2x32xf32>
    %136 = vector.extract_strided_slice %133 {offsets = [0, 64], sizes = [2, 32], strides = [1, 1]} : vector<2x128xf32> to vector<2x32xf32>
    %137 = vector.extract_strided_slice %132 {offsets = [0, 96], sizes = [2, 32], strides = [1, 1]} : vector<2x128xf32> to vector<2x32xf32>
    %138 = arith.mulf %135, %121 : vector<2x32xf32>
    %139 = arith.mulf %134, %136 : vector<2x32xf32>
    %140 = arith.addf %138, %139 : vector<2x32xf32>
    %141 = math.tanh %140 : vector<2x32xf32>
    %142 = arith.mulf %137, %141 : vector<2x32xf32>
    %c12 = arith.constant 12 : index
    %c0_34 = arith.constant 0 : index
    %143 = vector.load %arg20[%c12, %c0_34] : memref<16x32xf32, #tpu.memory_space<vmem>>, vector<2x32xf32>
    tpu.vector_store %arg20[%c12, %c0_34], %142 {strides = array<i32>} : memref<16x32xf32, #tpu.memory_space<vmem>>, vector<2x32xf32>,
    %144 = vector.extract_strided_slice %5 {offsets = [14, 0], sizes = [2, 128], strides = [1, 1]} : vector<16x128xf32> to vector<2x128xf32>
    %cst_35 = arith.constant dense<0.000000e+00> : vector<2x128xf32>
    %145 = tpu.matmul %142, %6, %cst_35 {dimension_numbers = #tpu.dot_dimension_numbers<[1], [0], [0], [1], [0, 0, 1, 1], [], []>} : vector<2x32xf32>, vector<32x128xf32>, vector<2x128xf32> -> vector<2x128xf32>
    %146 = arith.addf %144, %145 : vector<2x128xf32>
    %147 = arith.negf %146 : vector<2x128xf32>
    %148 = math.exp %147 : vector<2x128xf32>
    %cst_36 = arith.constant 1.000000e+00 : f32
    %149 = vector.broadcast %cst_36 : f32 to vector<2x128xf32>
    %150 = arith.addf %149, %148 : vector<2x128xf32>
    %151 = arith.divf %149, %150 : vector<2x128xf32>
    %152 = math.tanh %146 : vector<2x128xf32>
    %153 = vector.extract_strided_slice %151 {offsets = [0, 0], sizes = [2, 32], strides = [1, 1]} : vector<2x128xf32> to vector<2x32xf32>
    %154 = vector.extract_strided_slice %151 {offsets = [0, 32], sizes = [2, 32], strides = [1, 1]} : vector<2x128xf32> to vector<2x32xf32>
    %155 = vector.extract_strided_slice %152 {offsets = [0, 64], sizes = [2, 32], strides = [1, 1]} : vector<2x128xf32> to vector<2x32xf32>
    %156 = vector.extract_strided_slice %151 {offsets = [0, 96], sizes = [2, 32], strides = [1, 1]} : vector<2x128xf32> to vector<2x32xf32>
    %157 = arith.mulf %154, %140 : vector<2x32xf32>
    %158 = arith.mulf %153, %155 : vector<2x32xf32>
    %159 = arith.addf %157, %158 : vector<2x32xf32>
    %160 = math.tanh %159 : vector<2x32xf32>
    %161 = arith.mulf %156, %160 : vector<2x32xf32>
    %c14 = arith.constant 14 : index
    %c0_37 = arith.constant 0 : index
    %162 = vector.load %arg20[%c14, %c0_37] : memref<16x32xf32, #tpu.memory_space<vmem>>, vector<2x32xf32>
    tpu.vector_store %arg20[%c14, %c0_37], %161 {strides = array<i32>} : memref<16x32xf32, #tpu.memory_space<vmem>>, vector<2x32xf32>,
    %c0_38 = arith.constant 0 : index
    %c0_39 = arith.constant 0 : index
    %163 = vector.load %arg20[%c0_38, %c0_39] : memref<16x32xf32, #tpu.memory_space<vmem>>, vector<16x32xf32>
    %c0_40 = arith.constant 0 : index
    %c0_41 = arith.constant 0 : index
    %164 = vector.load %arg6[%c0_40, %c0_41] : memref<32x128xf32, #tpu.memory_space<vmem>>, vector<32x128xf32>
    %cst_42 = arith.constant dense<0.000000e+00> : vector<16x128xf32>
    %165 = tpu.matmul %163, %164, %cst_42 {dimension_numbers = #tpu.dot_dimension_numbers<[1], [0], [0], [1], [0, 0, 1, 1], [], []>} : vector<16x32xf32>, vector<32x128xf32>, vector<16x128xf32> -> vector<16x128xf32>
    %c0_43 = arith.constant 0 : index
    %c0_44 = arith.constant 0 : index
    %166 = vector.load %arg8[%c0_43, %c0_44] : memref<1x128xf32, #tpu.memory_space<vmem>>, vector<1x128xf32>
    %167 = vector.broadcast %166 : vector<1x128xf32> to vector<16x128xf32>
    %168 = arith.addf %165, %167 : vector<16x128xf32>
    %c0_45 = arith.constant 0 : index
    %c0_46 = arith.constant 0 : index
    %169 = vector.load %arg7[%c0_45, %c0_46] : memref<32x128xf32, #tpu.memory_space<vmem>>, vector<32x128xf32>
    %c1 = arith.constant 1 : index
    %c0_47 = arith.constant 0 : index
    %c0_48 = arith.constant 0 : index
    %170 = vector.load %arg1[%c1, %c0_47, %c0_48] : memref<2x2x32xf32, #tpu.memory_space<vmem>>, vector<1x2x32xf32>
    %171 = vector.shape_cast %170 : vector<1x2x32xf32> to vector<2x32xf32>
    %c1_49 = arith.constant 1 : index
    %c0_50 = arith.constant 0 : index
    %c0_51 = arith.constant 0 : index
    %172 = vector.load %arg2[%c1_49, %c0_50, %c0_51] : memref<2x2x32xf32, #tpu.memory_space<vmem>>, vector<1x2x32xf32>
    %173 = vector.shape_cast %172 : vector<1x2x32xf32> to vector<2x32xf32>
    %174 = vector.extract_strided_slice %168 {offsets = [0, 0], sizes = [2, 128], strides = [1, 1]} : vector<16x128xf32> to vector<2x128xf32>
    %cst_52 = arith.constant dense<0.000000e+00> : vector<2x128xf32>
    %175 = tpu.matmul %171, %169, %cst_52 {dimension_numbers = #tpu.dot_dimension_numbers<[1], [0], [0], [1], [0, 0, 1, 1], [], []>} : vector<2x32xf32>, vector<32x128xf32>, vector<2x128xf32> -> vector<2x128xf32>
    %176 = arith.addf %174, %175 : vector<2x128xf32>
    %177 = arith.negf %176 : vector<2x128xf32>
    %178 = math.exp %177 : vector<2x128xf32>
    %cst_53 = arith.constant 1.000000e+00 : f32
    %179 = vector.broadcast %cst_53 : f32 to vector<2x128xf32>
    %180 = arith.addf %179, %178 : vector<2x128xf32>
    %181 = arith.divf %179, %180 : vector<2x128xf32>
    %182 = math.tanh %176 : vector<2x128xf32>
    %183 = vector.extract_strided_slice %181 {offsets = [0, 0], sizes = [2, 32], strides = [1, 1]} : vector<2x128xf32> to vector<2x32xf32>
    %184 = vector.extract_strided_slice %181 {offsets = [0, 32], sizes = [2, 32], strides = [1, 1]} : vector<2x128xf32> to vector<2x32xf32>
    %185 = vector.extract_strided_slice %182 {offsets = [0, 64], sizes = [2, 32], strides = [1, 1]} : vector<2x128xf32> to vector<2x32xf32>
    %186 = vector.extract_strided_slice %181 {offsets = [0, 96], sizes = [2, 32], strides = [1, 1]} : vector<2x128xf32> to vector<2x32xf32>
    %187 = arith.mulf %184, %173 : vector<2x32xf32>
    %188 = arith.mulf %183, %185 : vector<2x32xf32>
    %189 = arith.addf %187, %188 : vector<2x32xf32>
    %190 = math.tanh %189 : vector<2x32xf32>
    %191 = arith.mulf %186, %190 : vector<2x32xf32>
    %c0_54 = arith.constant 0 : index
    %c0_55 = arith.constant 0 : index
    %192 = vector.load %arg21[%c0_54, %c0_55] : memref<16x32xf32, #tpu.memory_space<vmem>>, vector<2x32xf32>
    tpu.vector_store %arg21[%c0_54, %c0_55], %191 {strides = array<i32>} : memref<16x32xf32, #tpu.memory_space<vmem>>, vector<2x32xf32>,
    %193 = vector.extract_strided_slice %168 {offsets = [2, 0], sizes = [2, 128], strides = [1, 1]} : vector<16x128xf32> to vector<2x128xf32>
    %cst_56 = arith.constant dense<0.000000e+00> : vector<2x128xf32>
    %194 = tpu.matmul %191, %169, %cst_56 {dimension_numbers = #tpu.dot_dimension_numbers<[1], [0], [0], [1], [0, 0, 1, 1], [], []>} : vector<2x32xf32>, vector<32x128xf32>, vector<2x128xf32> -> vector<2x128xf32>
    %195 = arith.addf %193, %194 : vector<2x128xf32>
    %196 = arith.negf %195 : vector<2x128xf32>
    %197 = math.exp %196 : vector<2x128xf32>
    %cst_57 = arith.constant 1.000000e+00 : f32
    %198 = vector.broadcast %cst_57 : f32 to vector<2x128xf32>
    %199 = arith.addf %198, %197 : vector<2x128xf32>
    %200 = arith.divf %198, %199 : vector<2x128xf32>
    %201 = math.tanh %195 : vector<2x128xf32>
    %202 = vector.extract_strided_slice %200 {offsets = [0, 0], sizes = [2, 32], strides = [1, 1]} : vector<2x128xf32> to vector<2x32xf32>
    %203 = vector.extract_strided_slice %200 {offsets = [0, 32], sizes = [2, 32], strides = [1, 1]} : vector<2x128xf32> to vector<2x32xf32>
    %204 = vector.extract_strided_slice %201 {offsets = [0, 64], sizes = [2, 32], strides = [1, 1]} : vector<2x128xf32> to vector<2x32xf32>
    %205 = vector.extract_strided_slice %200 {offsets = [0, 96], sizes = [2, 32], strides = [1, 1]} : vector<2x128xf32> to vector<2x32xf32>
    %206 = arith.mulf %203, %189 : vector<2x32xf32>
    %207 = arith.mulf %202, %204 : vector<2x32xf32>
    %208 = arith.addf %206, %207 : vector<2x32xf32>
    %209 = math.tanh %208 : vector<2x32xf32>
    %210 = arith.mulf %205, %209 : vector<2x32xf32>
    %c2_58 = arith.constant 2 : index
    %c0_59 = arith.constant 0 : index
    %211 = vector.load %arg21[%c2_58, %c0_59] : memref<16x32xf32, #tpu.memory_space<vmem>>, vector<2x32xf32>
    tpu.vector_store %arg21[%c2_58, %c0_59], %210 {strides = array<i32>} : memref<16x32xf32, #tpu.memory_space<vmem>>, vector<2x32xf32>,
    %212 = vector.extract_strided_slice %168 {offsets = [4, 0], sizes = [2, 128], strides = [1, 1]} : vector<16x128xf32> to vector<2x128xf32>
    %cst_60 = arith.constant dense<0.000000e+00> : vector<2x128xf32>
    %213 = tpu.matmul %210, %169, %cst_60 {dimension_numbers = #tpu.dot_dimension_numbers<[1], [0], [0], [1], [0, 0, 1, 1], [], []>} : vector<2x32xf32>, vector<32x128xf32>, vector<2x128xf32> -> vector<2x128xf32>
    %214 = arith.addf %212, %213 : vector<2x128xf32>
    %215 = arith.negf %214 : vector<2x128xf32>
    %216 = math.exp %215 : vector<2x128xf32>
    %cst_61 = arith.constant 1.000000e+00 : f32
    %217 = vector.broadcast %cst_61 : f32 to vector<2x128xf32>
    %218 = arith.addf %217, %216 : vector<2x128xf32>
    %219 = arith.divf %217, %218 : vector<2x128xf32>
    %220 = math.tanh %214 : vector<2x128xf32>
    %221 = vector.extract_strided_slice %219 {offsets = [0, 0], sizes = [2, 32], strides = [1, 1]} : vector<2x128xf32> to vector<2x32xf32>
    %222 = vector.extract_strided_slice %219 {offsets = [0, 32], sizes = [2, 32], strides = [1, 1]} : vector<2x128xf32> to vector<2x32xf32>
    %223 = vector.extract_strided_slice %220 {offsets = [0, 64], sizes = [2, 32], strides = [1, 1]} : vector<2x128xf32> to vector<2x32xf32>
    %224 = vector.extract_strided_slice %219 {offsets = [0, 96], sizes = [2, 32], strides = [1, 1]} : vector<2x128xf32> to vector<2x32xf32>
    %225 = arith.mulf %222, %208 : vector<2x32xf32>
    %226 = arith.mulf %221, %223 : vector<2x32xf32>
    %227 = arith.addf %225, %226 : vector<2x32xf32>
    %228 = math.tanh %227 : vector<2x32xf32>
    %229 = arith.mulf %224, %228 : vector<2x32xf32>
    %c4_62 = arith.constant 4 : index
    %c0_63 = arith.constant 0 : index
    %230 = vector.load %arg21[%c4_62, %c0_63] : memref<16x32xf32, #tpu.memory_space<vmem>>, vector<2x32xf32>
    tpu.vector_store %arg21[%c4_62, %c0_63], %229 {strides = array<i32>} : memref<16x32xf32, #tpu.memory_space<vmem>>, vector<2x32xf32>,
    %231 = vector.extract_strided_slice %168 {offsets = [6, 0], sizes = [2, 128], strides = [1, 1]} : vector<16x128xf32> to vector<2x128xf32>
    %cst_64 = arith.constant dense<0.000000e+00> : vector<2x128xf32>
    %232 = tpu.matmul %229, %169, %cst_64 {dimension_numbers = #tpu.dot_dimension_numbers<[1], [0], [0], [1], [0, 0, 1, 1], [], []>} : vector<2x32xf32>, vector<32x128xf32>, vector<2x128xf32> -> vector<2x128xf32>
    %233 = arith.addf %231, %232 : vector<2x128xf32>
    %234 = arith.negf %233 : vector<2x128xf32>
    %235 = math.exp %234 : vector<2x128xf32>
    %cst_65 = arith.constant 1.000000e+00 : f32
    %236 = vector.broadcast %cst_65 : f32 to vector<2x128xf32>
    %237 = arith.addf %236, %235 : vector<2x128xf32>
    %238 = arith.divf %236, %237 : vector<2x128xf32>
    %239 = math.tanh %233 : vector<2x128xf32>
    %240 = vector.extract_strided_slice %238 {offsets = [0, 0], sizes = [2, 32], strides = [1, 1]} : vector<2x128xf32> to vector<2x32xf32>
    %241 = vector.extract_strided_slice %238 {offsets = [0, 32], sizes = [2, 32], strides = [1, 1]} : vector<2x128xf32> to vector<2x32xf32>
    %242 = vector.extract_strided_slice %239 {offsets = [0, 64], sizes = [2, 32], strides = [1, 1]} : vector<2x128xf32> to vector<2x32xf32>
    %243 = vector.extract_strided_slice %238 {offsets = [0, 96], sizes = [2, 32], strides = [1, 1]} : vector<2x128xf32> to vector<2x32xf32>
    %244 = arith.mulf %241, %227 : vector<2x32xf32>
    %245 = arith.mulf %240, %242 : vector<2x32xf32>
    %246 = arith.addf %244, %245 : vector<2x32xf32>
    %247 = math.tanh %246 : vector<2x32xf32>
    %248 = arith.mulf %243, %247 : vector<2x32xf32>
    %c6_66 = arith.constant 6 : index
    %c0_67 = arith.constant 0 : index
    %249 = vector.load %arg21[%c6_66, %c0_67] : memref<16x32xf32, #tpu.memory_space<vmem>>, vector<2x32xf32>
    tpu.vector_store %arg21[%c6_66, %c0_67], %248 {strides = array<i32>} : memref<16x32xf32, #tpu.memory_space<vmem>>, vector<2x32xf32>,
    %250 = vector.extract_strided_slice %168 {offsets = [8, 0], sizes = [2, 128], strides = [1, 1]} : vector<16x128xf32> to vector<2x128xf32>
    %cst_68 = arith.constant dense<0.000000e+00> : vector<2x128xf32>
    %251 = tpu.matmul %248, %169, %cst_68 {dimension_numbers = #tpu.dot_dimension_numbers<[1], [0], [0], [1], [0, 0, 1, 1], [], []>} : vector<2x32xf32>, vector<32x128xf32>, vector<2x128xf32> -> vector<2x128xf32>
    %252 = arith.addf %250, %251 : vector<2x128xf32>
    %253 = arith.negf %252 : vector<2x128xf32>
    %254 = math.exp %253 : vector<2x128xf32>
    %cst_69 = arith.constant 1.000000e+00 : f32
    %255 = vector.broadcast %cst_69 : f32 to vector<2x128xf32>
    %256 = arith.addf %255, %254 : vector<2x128xf32>
    %257 = arith.divf %255, %256 : vector<2x128xf32>
    %258 = math.tanh %252 : vector<2x128xf32>
    %259 = vector.extract_strided_slice %257 {offsets = [0, 0], sizes = [2, 32], strides = [1, 1]} : vector<2x128xf32> to vector<2x32xf32>
    %260 = vector.extract_strided_slice %257 {offsets = [0, 32], sizes = [2, 32], strides = [1, 1]} : vector<2x128xf32> to vector<2x32xf32>
    %261 = vector.extract_strided_slice %258 {offsets = [0, 64], sizes = [2, 32], strides = [1, 1]} : vector<2x128xf32> to vector<2x32xf32>
    %262 = vector.extract_strided_slice %257 {offsets = [0, 96], sizes = [2, 32], strides = [1, 1]} : vector<2x128xf32> to vector<2x32xf32>
    %263 = arith.mulf %260, %246 : vector<2x32xf32>
    %264 = arith.mulf %259, %261 : vector<2x32xf32>
    %265 = arith.addf %263, %264 : vector<2x32xf32>
    %266 = math.tanh %265 : vector<2x32xf32>
    %267 = arith.mulf %262, %266 : vector<2x32xf32>
    %c8_70 = arith.constant 8 : index
    %c0_71 = arith.constant 0 : index
    %268 = vector.load %arg21[%c8_70, %c0_71] : memref<16x32xf32, #tpu.memory_space<vmem>>, vector<2x32xf32>
    tpu.vector_store %arg21[%c8_70, %c0_71], %267 {strides = array<i32>} : memref<16x32xf32, #tpu.memory_space<vmem>>, vector<2x32xf32>,
    %269 = vector.extract_strided_slice %168 {offsets = [10, 0], sizes = [2, 128], strides = [1, 1]} : vector<16x128xf32> to vector<2x128xf32>
    %cst_72 = arith.constant dense<0.000000e+00> : vector<2x128xf32>
    %270 = tpu.matmul %267, %169, %cst_72 {dimension_numbers = #tpu.dot_dimension_numbers<[1], [0], [0], [1], [0, 0, 1, 1], [], []>} : vector<2x32xf32>, vector<32x128xf32>, vector<2x128xf32> -> vector<2x128xf32>
    %271 = arith.addf %269, %270 : vector<2x128xf32>
    %272 = arith.negf %271 : vector<2x128xf32>
    %273 = math.exp %272 : vector<2x128xf32>
    %cst_73 = arith.constant 1.000000e+00 : f32
    %274 = vector.broadcast %cst_73 : f32 to vector<2x128xf32>
    %275 = arith.addf %274, %273 : vector<2x128xf32>
    %276 = arith.divf %274, %275 : vector<2x128xf32>
    %277 = math.tanh %271 : vector<2x128xf32>
    %278 = vector.extract_strided_slice %276 {offsets = [0, 0], sizes = [2, 32], strides = [1, 1]} : vector<2x128xf32> to vector<2x32xf32>
    %279 = vector.extract_strided_slice %276 {offsets = [0, 32], sizes = [2, 32], strides = [1, 1]} : vector<2x128xf32> to vector<2x32xf32>
    %280 = vector.extract_strided_slice %277 {offsets = [0, 64], sizes = [2, 32], strides = [1, 1]} : vector<2x128xf32> to vector<2x32xf32>
    %281 = vector.extract_strided_slice %276 {offsets = [0, 96], sizes = [2, 32], strides = [1, 1]} : vector<2x128xf32> to vector<2x32xf32>
    %282 = arith.mulf %279, %265 : vector<2x32xf32>
    %283 = arith.mulf %278, %280 : vector<2x32xf32>
    %284 = arith.addf %282, %283 : vector<2x32xf32>
    %285 = math.tanh %284 : vector<2x32xf32>
    %286 = arith.mulf %281, %285 : vector<2x32xf32>
    %c10_74 = arith.constant 10 : index
    %c0_75 = arith.constant 0 : index
    %287 = vector.load %arg21[%c10_74, %c0_75] : memref<16x32xf32, #tpu.memory_space<vmem>>, vector<2x32xf32>
    tpu.vector_store %arg21[%c10_74, %c0_75], %286 {strides = array<i32>} : memref<16x32xf32, #tpu.memory_space<vmem>>, vector<2x32xf32>,
    %288 = vector.extract_strided_slice %168 {offsets = [12, 0], sizes = [2, 128], strides = [1, 1]} : vector<16x128xf32> to vector<2x128xf32>
    %cst_76 = arith.constant dense<0.000000e+00> : vector<2x128xf32>
    %289 = tpu.matmul %286, %169, %cst_76 {dimension_numbers = #tpu.dot_dimension_numbers<[1], [0], [0], [1], [0, 0, 1, 1], [], []>} : vector<2x32xf32>, vector<32x128xf32>, vector<2x128xf32> -> vector<2x128xf32>
    %290 = arith.addf %288, %289 : vector<2x128xf32>
    %291 = arith.negf %290 : vector<2x128xf32>
    %292 = math.exp %291 : vector<2x128xf32>
    %cst_77 = arith.constant 1.000000e+00 : f32
    %293 = vector.broadcast %cst_77 : f32 to vector<2x128xf32>
    %294 = arith.addf %293, %292 : vector<2x128xf32>
    %295 = arith.divf %293, %294 : vector<2x128xf32>
    %296 = math.tanh %290 : vector<2x128xf32>
    %297 = vector.extract_strided_slice %295 {offsets = [0, 0], sizes = [2, 32], strides = [1, 1]} : vector<2x128xf32> to vector<2x32xf32>
    %298 = vector.extract_strided_slice %295 {offsets = [0, 32], sizes = [2, 32], strides = [1, 1]} : vector<2x128xf32> to vector<2x32xf32>
    %299 = vector.extract_strided_slice %296 {offsets = [0, 64], sizes = [2, 32], strides = [1, 1]} : vector<2x128xf32> to vector<2x32xf32>
    %300 = vector.extract_strided_slice %295 {offsets = [0, 96], sizes = [2, 32], strides = [1, 1]} : vector<2x128xf32> to vector<2x32xf32>
    %301 = arith.mulf %298, %284 : vector<2x32xf32>
    %302 = arith.mulf %297, %299 : vector<2x32xf32>
    %303 = arith.addf %301, %302 : vector<2x32xf32>
    %304 = math.tanh %303 : vector<2x32xf32>
    %305 = arith.mulf %300, %304 : vector<2x32xf32>
    %c12_78 = arith.constant 12 : index
    %c0_79 = arith.constant 0 : index
    %306 = vector.load %arg21[%c12_78, %c0_79] : memref<16x32xf32, #tpu.memory_space<vmem>>, vector<2x32xf32>
    tpu.vector_store %arg21[%c12_78, %c0_79], %305 {strides = array<i32>} : memref<16x32xf32, #tpu.memory_space<vmem>>, vector<2x32xf32>,
    %307 = vector.extract_strided_slice %168 {offsets = [14, 0], sizes = [2, 128], strides = [1, 1]} : vector<16x128xf32> to vector<2x128xf32>
    %cst_80 = arith.constant dense<0.000000e+00> : vector<2x128xf32>
    %308 = tpu.matmul %305, %169, %cst_80 {dimension_numbers = #tpu.dot_dimension_numbers<[1], [0], [0], [1], [0, 0, 1, 1], [], []>} : vector<2x32xf32>, vector<32x128xf32>, vector<2x128xf32> -> vector<2x128xf32>
    %309 = arith.addf %307, %308 : vector<2x128xf32>
    %310 = arith.negf %309 : vector<2x128xf32>
    %311 = math.exp %310 : vector<2x128xf32>
    %cst_81 = arith.constant 1.000000e+00 : f32
    %312 = vector.broadcast %cst_81 : f32 to vector<2x128xf32>
    %313 = arith.addf %312, %311 : vector<2x128xf32>
    %314 = arith.divf %312, %313 : vector<2x128xf32>
    %315 = math.tanh %309 : vector<2x128xf32>
    %316 = vector.extract_strided_slice %314 {offsets = [0, 0], sizes = [2, 32], strides = [1, 1]} : vector<2x128xf32> to vector<2x32xf32>
    %317 = vector.extract_strided_slice %314 {offsets = [0, 32], sizes = [2, 32], strides = [1, 1]} : vector<2x128xf32> to vector<2x32xf32>
    %318 = vector.extract_strided_slice %315 {offsets = [0, 64], sizes = [2, 32], strides = [1, 1]} : vector<2x128xf32> to vector<2x32xf32>
    %319 = vector.extract_strided_slice %314 {offsets = [0, 96], sizes = [2, 32], strides = [1, 1]} : vector<2x128xf32> to vector<2x32xf32>
    %320 = arith.mulf %317, %303 : vector<2x32xf32>
    %321 = arith.mulf %316, %318 : vector<2x32xf32>
    %322 = arith.addf %320, %321 : vector<2x32xf32>
    %323 = math.tanh %322 : vector<2x32xf32>
    %324 = arith.mulf %319, %323 : vector<2x32xf32>
    %c14_82 = arith.constant 14 : index
    %c0_83 = arith.constant 0 : index
    %325 = vector.load %arg21[%c14_82, %c0_83] : memref<16x32xf32, #tpu.memory_space<vmem>>, vector<2x32xf32>
    tpu.vector_store %arg21[%c14_82, %c0_83], %324 {strides = array<i32>} : memref<16x32xf32, #tpu.memory_space<vmem>>, vector<2x32xf32>,
    %c0_84 = arith.constant 0 : index
    %c0_85 = arith.constant 0 : index
    %326 = vector.load %arg21[%c0_84, %c0_85] : memref<16x32xf32, #tpu.memory_space<vmem>>, vector<16x32xf32>
    %c0_86 = arith.constant 0 : index
    %c0_87 = arith.constant 0 : index
    %327 = vector.load %arg9[%c0_86, %c0_87] : memref<32x128xf32, #tpu.memory_space<vmem>>, vector<32x128xf32>
    %cst_88 = arith.constant dense<0.000000e+00> : vector<16x128xf32>
    %328 = tpu.matmul %326, %327, %cst_88 {dimension_numbers = #tpu.dot_dimension_numbers<[1], [0], [0], [1], [0, 0, 1, 1], [], []>} : vector<16x32xf32>, vector<32x128xf32>, vector<16x128xf32> -> vector<16x128xf32>
    %c0_89 = arith.constant 0 : index
    %c0_90 = arith.constant 0 : index
    %329 = vector.load %arg11[%c0_89, %c0_90] : memref<1x128xf32, #tpu.memory_space<vmem>>, vector<1x128xf32>
    %330 = vector.broadcast %329 : vector<1x128xf32> to vector<16x128xf32>
    %331 = arith.addf %328, %330 : vector<16x128xf32>
    %c0_91 = arith.constant 0 : index
    %c0_92 = arith.constant 0 : index
    %332 = vector.load %arg10[%c0_91, %c0_92] : memref<32x128xf32, #tpu.memory_space<vmem>>, vector<32x128xf32>
    %c0_93 = arith.constant 0 : index
    %c0_94 = arith.constant 0 : index
    %c0_95 = arith.constant 0 : index
    %333 = vector.load %arg1[%c0_93, %c0_94, %c0_95] : memref<2x2x32xf32, #tpu.memory_space<vmem>>, vector<1x2x32xf32>
    %334 = vector.shape_cast %333 : vector<1x2x32xf32> to vector<2x32xf32>
    %c0_96 = arith.constant 0 : index
    %c0_97 = arith.constant 0 : index
    %c0_98 = arith.constant 0 : index
    %335 = vector.load %arg2[%c0_96, %c0_97, %c0_98] : memref<2x2x32xf32, #tpu.memory_space<vmem>>, vector<1x2x32xf32>
    %336 = vector.shape_cast %335 : vector<1x2x32xf32> to vector<2x32xf32>
    %337 = vector.extract_strided_slice %331 {offsets = [0, 0], sizes = [2, 128], strides = [1, 1]} : vector<16x128xf32> to vector<2x128xf32>
    %cst_99 = arith.constant dense<0.000000e+00> : vector<2x128xf32>
    %338 = tpu.matmul %334, %332, %cst_99 {dimension_numbers = #tpu.dot_dimension_numbers<[1], [0], [0], [1], [0, 0, 1, 1], [], []>} : vector<2x32xf32>, vector<32x128xf32>, vector<2x128xf32> -> vector<2x128xf32>
    %339 = arith.addf %337, %338 : vector<2x128xf32>
    %340 = arith.negf %339 : vector<2x128xf32>
    %341 = math.exp %340 : vector<2x128xf32>
    %cst_100 = arith.constant 1.000000e+00 : f32
    %342 = vector.broadcast %cst_100 : f32 to vector<2x128xf32>
    %343 = arith.addf %342, %341 : vector<2x128xf32>
    %344 = arith.divf %342, %343 : vector<2x128xf32>
    %345 = math.tanh %339 : vector<2x128xf32>
    %346 = vector.extract_strided_slice %344 {offsets = [0, 0], sizes = [2, 32], strides = [1, 1]} : vector<2x128xf32> to vector<2x32xf32>
    %347 = vector.extract_strided_slice %344 {offsets = [0, 32], sizes = [2, 32], strides = [1, 1]} : vector<2x128xf32> to vector<2x32xf32>
    %348 = vector.extract_strided_slice %345 {offsets = [0, 64], sizes = [2, 32], strides = [1, 1]} : vector<2x128xf32> to vector<2x32xf32>
    %349 = vector.extract_strided_slice %344 {offsets = [0, 96], sizes = [2, 32], strides = [1, 1]} : vector<2x128xf32> to vector<2x32xf32>
    %350 = arith.mulf %347, %336 : vector<2x32xf32>
    %351 = arith.mulf %346, %348 : vector<2x32xf32>
    %352 = arith.addf %350, %351 : vector<2x32xf32>
    %353 = math.tanh %352 : vector<2x32xf32>
    %354 = arith.mulf %349, %353 : vector<2x32xf32>
    %c0_101 = arith.constant 0 : index
    %c0_102 = arith.constant 0 : index
    %355 = vector.load %arg20[%c0_101, %c0_102] : memref<16x32xf32, #tpu.memory_space<vmem>>, vector<2x32xf32>
    tpu.vector_store %arg20[%c0_101, %c0_102], %354 {strides = array<i32>} : memref<16x32xf32, #tpu.memory_space<vmem>>, vector<2x32xf32>,
    %356 = vector.extract_strided_slice %331 {offsets = [2, 0], sizes = [2, 128], strides = [1, 1]} : vector<16x128xf32> to vector<2x128xf32>
    %cst_103 = arith.constant dense<0.000000e+00> : vector<2x128xf32>
    %357 = tpu.matmul %354, %332, %cst_103 {dimension_numbers = #tpu.dot_dimension_numbers<[1], [0], [0], [1], [0, 0, 1, 1], [], []>} : vector<2x32xf32>, vector<32x128xf32>, vector<2x128xf32> -> vector<2x128xf32>
    %358 = arith.addf %356, %357 : vector<2x128xf32>
    %359 = arith.negf %358 : vector<2x128xf32>
    %360 = math.exp %359 : vector<2x128xf32>
    %cst_104 = arith.constant 1.000000e+00 : f32
    %361 = vector.broadcast %cst_104 : f32 to vector<2x128xf32>
    %362 = arith.addf %361, %360 : vector<2x128xf32>
    %363 = arith.divf %361, %362 : vector<2x128xf32>
    %364 = math.tanh %358 : vector<2x128xf32>
    %365 = vector.extract_strided_slice %363 {offsets = [0, 0], sizes = [2, 32], strides = [1, 1]} : vector<2x128xf32> to vector<2x32xf32>
    %366 = vector.extract_strided_slice %363 {offsets = [0, 32], sizes = [2, 32], strides = [1, 1]} : vector<2x128xf32> to vector<2x32xf32>
    %367 = vector.extract_strided_slice %364 {offsets = [0, 64], sizes = [2, 32], strides = [1, 1]} : vector<2x128xf32> to vector<2x32xf32>
    %368 = vector.extract_strided_slice %363 {offsets = [0, 96], sizes = [2, 32], strides = [1, 1]} : vector<2x128xf32> to vector<2x32xf32>
    %369 = arith.mulf %366, %352 : vector<2x32xf32>
    %370 = arith.mulf %365, %367 : vector<2x32xf32>
    %371 = arith.addf %369, %370 : vector<2x32xf32>
    %372 = math.tanh %371 : vector<2x32xf32>
    %373 = arith.mulf %368, %372 : vector<2x32xf32>
    %c2_105 = arith.constant 2 : index
    %c0_106 = arith.constant 0 : index
    %374 = vector.load %arg20[%c2_105, %c0_106] : memref<16x32xf32, #tpu.memory_space<vmem>>, vector<2x32xf32>
    tpu.vector_store %arg20[%c2_105, %c0_106], %373 {strides = array<i32>} : memref<16x32xf32, #tpu.memory_space<vmem>>, vector<2x32xf32>,
    %375 = vector.extract_strided_slice %331 {offsets = [4, 0], sizes = [2, 128], strides = [1, 1]} : vector<16x128xf32> to vector<2x128xf32>
    %cst_107 = arith.constant dense<0.000000e+00> : vector<2x128xf32>
    %376 = tpu.matmul %373, %332, %cst_107 {dimension_numbers = #tpu.dot_dimension_numbers<[1], [0], [0], [1], [0, 0, 1, 1], [], []>} : vector<2x32xf32>, vector<32x128xf32>, vector<2x128xf32> -> vector<2x128xf32>
    %377 = arith.addf %375, %376 : vector<2x128xf32>
    %378 = arith.negf %377 : vector<2x128xf32>
    %379 = math.exp %378 : vector<2x128xf32>
    %cst_108 = arith.constant 1.000000e+00 : f32
    %380 = vector.broadcast %cst_108 : f32 to vector<2x128xf32>
    %381 = arith.addf %380, %379 : vector<2x128xf32>
    %382 = arith.divf %380, %381 : vector<2x128xf32>
    %383 = math.tanh %377 : vector<2x128xf32>
    %384 = vector.extract_strided_slice %382 {offsets = [0, 0], sizes = [2, 32], strides = [1, 1]} : vector<2x128xf32> to vector<2x32xf32>
    %385 = vector.extract_strided_slice %382 {offsets = [0, 32], sizes = [2, 32], strides = [1, 1]} : vector<2x128xf32> to vector<2x32xf32>
    %386 = vector.extract_strided_slice %383 {offsets = [0, 64], sizes = [2, 32], strides = [1, 1]} : vector<2x128xf32> to vector<2x32xf32>
    %387 = vector.extract_strided_slice %382 {offsets = [0, 96], sizes = [2, 32], strides = [1, 1]} : vector<2x128xf32> to vector<2x32xf32>
    %388 = arith.mulf %385, %371 : vector<2x32xf32>
    %389 = arith.mulf %384, %386 : vector<2x32xf32>
    %390 = arith.addf %388, %389 : vector<2x32xf32>
    %391 = math.tanh %390 : vector<2x32xf32>
    %392 = arith.mulf %387, %391 : vector<2x32xf32>
    %c4_109 = arith.constant 4 : index
    %c0_110 = arith.constant 0 : index
    %393 = vector.load %arg20[%c4_109, %c0_110] : memref<16x32xf32, #tpu.memory_space<vmem>>, vector<2x32xf32>
    tpu.vector_store %arg20[%c4_109, %c0_110], %392 {strides = array<i32>} : memref<16x32xf32, #tpu.memory_space<vmem>>, vector<2x32xf32>,
    %394 = vector.extract_strided_slice %331 {offsets = [6, 0], sizes = [2, 128], strides = [1, 1]} : vector<16x128xf32> to vector<2x128xf32>
    %cst_111 = arith.constant dense<0.000000e+00> : vector<2x128xf32>
    %395 = tpu.matmul %392, %332, %cst_111 {dimension_numbers = #tpu.dot_dimension_numbers<[1], [0], [0], [1], [0, 0, 1, 1], [], []>} : vector<2x32xf32>, vector<32x128xf32>, vector<2x128xf32> -> vector<2x128xf32>
    %396 = arith.addf %394, %395 : vector<2x128xf32>
    %397 = arith.negf %396 : vector<2x128xf32>
    %398 = math.exp %397 : vector<2x128xf32>
    %cst_112 = arith.constant 1.000000e+00 : f32
    %399 = vector.broadcast %cst_112 : f32 to vector<2x128xf32>
    %400 = arith.addf %399, %398 : vector<2x128xf32>
    %401 = arith.divf %399, %400 : vector<2x128xf32>
    %402 = math.tanh %396 : vector<2x128xf32>
    %403 = vector.extract_strided_slice %401 {offsets = [0, 0], sizes = [2, 32], strides = [1, 1]} : vector<2x128xf32> to vector<2x32xf32>
    %404 = vector.extract_strided_slice %401 {offsets = [0, 32], sizes = [2, 32], strides = [1, 1]} : vector<2x128xf32> to vector<2x32xf32>
    %405 = vector.extract_strided_slice %402 {offsets = [0, 64], sizes = [2, 32], strides = [1, 1]} : vector<2x128xf32> to vector<2x32xf32>
    %406 = vector.extract_strided_slice %401 {offsets = [0, 96], sizes = [2, 32], strides = [1, 1]} : vector<2x128xf32> to vector<2x32xf32>
    %407 = arith.mulf %404, %390 : vector<2x32xf32>
    %408 = arith.mulf %403, %405 : vector<2x32xf32>
    %409 = arith.addf %407, %408 : vector<2x32xf32>
    %410 = math.tanh %409 : vector<2x32xf32>
    %411 = arith.mulf %406, %410 : vector<2x32xf32>
    %c6_113 = arith.constant 6 : index
    %c0_114 = arith.constant 0 : index
    %412 = vector.load %arg20[%c6_113, %c0_114] : memref<16x32xf32, #tpu.memory_space<vmem>>, vector<2x32xf32>
    tpu.vector_store %arg20[%c6_113, %c0_114], %411 {strides = array<i32>} : memref<16x32xf32, #tpu.memory_space<vmem>>, vector<2x32xf32>,
    %413 = vector.extract_strided_slice %331 {offsets = [8, 0], sizes = [2, 128], strides = [1, 1]} : vector<16x128xf32> to vector<2x128xf32>
    %cst_115 = arith.constant dense<0.000000e+00> : vector<2x128xf32>
    %414 = tpu.matmul %411, %332, %cst_115 {dimension_numbers = #tpu.dot_dimension_numbers<[1], [0], [0], [1], [0, 0, 1, 1], [], []>} : vector<2x32xf32>, vector<32x128xf32>, vector<2x128xf32> -> vector<2x128xf32>
    %415 = arith.addf %413, %414 : vector<2x128xf32>
    %416 = arith.negf %415 : vector<2x128xf32>
    %417 = math.exp %416 : vector<2x128xf32>
    %cst_116 = arith.constant 1.000000e+00 : f32
    %418 = vector.broadcast %cst_116 : f32 to vector<2x128xf32>
    %419 = arith.addf %418, %417 : vector<2x128xf32>
    %420 = arith.divf %418, %419 : vector<2x128xf32>
    %421 = math.tanh %415 : vector<2x128xf32>
    %422 = vector.extract_strided_slice %420 {offsets = [0, 0], sizes = [2, 32], strides = [1, 1]} : vector<2x128xf32> to vector<2x32xf32>
    %423 = vector.extract_strided_slice %420 {offsets = [0, 32], sizes = [2, 32], strides = [1, 1]} : vector<2x128xf32> to vector<2x32xf32>
    %424 = vector.extract_strided_slice %421 {offsets = [0, 64], sizes = [2, 32], strides = [1, 1]} : vector<2x128xf32> to vector<2x32xf32>
    %425 = vector.extract_strided_slice %420 {offsets = [0, 96], sizes = [2, 32], strides = [1, 1]} : vector<2x128xf32> to vector<2x32xf32>
    %426 = arith.mulf %423, %409 : vector<2x32xf32>
    %427 = arith.mulf %422, %424 : vector<2x32xf32>
    %428 = arith.addf %426, %427 : vector<2x32xf32>
    %429 = math.tanh %428 : vector<2x32xf32>
    %430 = arith.mulf %425, %429 : vector<2x32xf32>
    %c8_117 = arith.constant 8 : index
    %c0_118 = arith.constant 0 : index
    %431 = vector.load %arg20[%c8_117, %c0_118] : memref<16x32xf32, #tpu.memory_space<vmem>>, vector<2x32xf32>
    tpu.vector_store %arg20[%c8_117, %c0_118], %430 {strides = array<i32>} : memref<16x32xf32, #tpu.memory_space<vmem>>, vector<2x32xf32>,
    %432 = vector.extract_strided_slice %331 {offsets = [10, 0], sizes = [2, 128], strides = [1, 1]} : vector<16x128xf32> to vector<2x128xf32>
    %cst_119 = arith.constant dense<0.000000e+00> : vector<2x128xf32>
    %433 = tpu.matmul %430, %332, %cst_119 {dimension_numbers = #tpu.dot_dimension_numbers<[1], [0], [0], [1], [0, 0, 1, 1], [], []>} : vector<2x32xf32>, vector<32x128xf32>, vector<2x128xf32> -> vector<2x128xf32>
    %434 = arith.addf %432, %433 : vector<2x128xf32>
    %435 = arith.negf %434 : vector<2x128xf32>
    %436 = math.exp %435 : vector<2x128xf32>
    %cst_120 = arith.constant 1.000000e+00 : f32
    %437 = vector.broadcast %cst_120 : f32 to vector<2x128xf32>
    %438 = arith.addf %437, %436 : vector<2x128xf32>
    %439 = arith.divf %437, %438 : vector<2x128xf32>
    %440 = math.tanh %434 : vector<2x128xf32>
    %441 = vector.extract_strided_slice %439 {offsets = [0, 0], sizes = [2, 32], strides = [1, 1]} : vector<2x128xf32> to vector<2x32xf32>
    %442 = vector.extract_strided_slice %439 {offsets = [0, 32], sizes = [2, 32], strides = [1, 1]} : vector<2x128xf32> to vector<2x32xf32>
    %443 = vector.extract_strided_slice %440 {offsets = [0, 64], sizes = [2, 32], strides = [1, 1]} : vector<2x128xf32> to vector<2x32xf32>
    %444 = vector.extract_strided_slice %439 {offsets = [0, 96], sizes = [2, 32], strides = [1, 1]} : vector<2x128xf32> to vector<2x32xf32>
    %445 = arith.mulf %442, %428 : vector<2x32xf32>
    %446 = arith.mulf %441, %443 : vector<2x32xf32>
    %447 = arith.addf %445, %446 : vector<2x32xf32>
    %448 = math.tanh %447 : vector<2x32xf32>
    %449 = arith.mulf %444, %448 : vector<2x32xf32>
    %c10_121 = arith.constant 10 : index
    %c0_122 = arith.constant 0 : index
    %450 = vector.load %arg20[%c10_121, %c0_122] : memref<16x32xf32, #tpu.memory_space<vmem>>, vector<2x32xf32>
    tpu.vector_store %arg20[%c10_121, %c0_122], %449 {strides = array<i32>} : memref<16x32xf32, #tpu.memory_space<vmem>>, vector<2x32xf32>,
    %451 = vector.extract_strided_slice %331 {offsets = [12, 0], sizes = [2, 128], strides = [1, 1]} : vector<16x128xf32> to vector<2x128xf32>
    %cst_123 = arith.constant dense<0.000000e+00> : vector<2x128xf32>
    %452 = tpu.matmul %449, %332, %cst_123 {dimension_numbers = #tpu.dot_dimension_numbers<[1], [0], [0], [1], [0, 0, 1, 1], [], []>} : vector<2x32xf32>, vector<32x128xf32>, vector<2x128xf32> -> vector<2x128xf32>
    %453 = arith.addf %451, %452 : vector<2x128xf32>
    %454 = arith.negf %453 : vector<2x128xf32>
    %455 = math.exp %454 : vector<2x128xf32>
    %cst_124 = arith.constant 1.000000e+00 : f32
    %456 = vector.broadcast %cst_124 : f32 to vector<2x128xf32>
    %457 = arith.addf %456, %455 : vector<2x128xf32>
    %458 = arith.divf %456, %457 : vector<2x128xf32>
    %459 = math.tanh %453 : vector<2x128xf32>
    %460 = vector.extract_strided_slice %458 {offsets = [0, 0], sizes = [2, 32], strides = [1, 1]} : vector<2x128xf32> to vector<2x32xf32>
    %461 = vector.extract_strided_slice %458 {offsets = [0, 32], sizes = [2, 32], strides = [1, 1]} : vector<2x128xf32> to vector<2x32xf32>
    %462 = vector.extract_strided_slice %459 {offsets = [0, 64], sizes = [2, 32], strides = [1, 1]} : vector<2x128xf32> to vector<2x32xf32>
    %463 = vector.extract_strided_slice %458 {offsets = [0, 96], sizes = [2, 32], strides = [1, 1]} : vector<2x128xf32> to vector<2x32xf32>
    %464 = arith.mulf %461, %447 : vector<2x32xf32>
    %465 = arith.mulf %460, %462 : vector<2x32xf32>
    %466 = arith.addf %464, %465 : vector<2x32xf32>
    %467 = math.tanh %466 : vector<2x32xf32>
    %468 = arith.mulf %463, %467 : vector<2x32xf32>
    %c12_125 = arith.constant 12 : index
    %c0_126 = arith.constant 0 : index
    %469 = vector.load %arg20[%c12_125, %c0_126] : memref<16x32xf32, #tpu.memory_space<vmem>>, vector<2x32xf32>
    tpu.vector_store %arg20[%c12_125, %c0_126], %468 {strides = array<i32>} : memref<16x32xf32, #tpu.memory_space<vmem>>, vector<2x32xf32>,
    %470 = vector.extract_strided_slice %331 {offsets = [14, 0], sizes = [2, 128], strides = [1, 1]} : vector<16x128xf32> to vector<2x128xf32>
    %cst_127 = arith.constant dense<0.000000e+00> : vector<2x128xf32>
    %471 = tpu.matmul %468, %332, %cst_127 {dimension_numbers = #tpu.dot_dimension_numbers<[1], [0], [0], [1], [0, 0, 1, 1], [], []>} : vector<2x32xf32>, vector<32x128xf32>, vector<2x128xf32> -> vector<2x128xf32>
    %472 = arith.addf %470, %471 : vector<2x128xf32>
    %473 = arith.negf %472 : vector<2x128xf32>
    %474 = math.exp %473 : vector<2x128xf32>
    %cst_128 = arith.constant 1.000000e+00 : f32
    %475 = vector.broadcast %cst_128 : f32 to vector<2x128xf32>
    %476 = arith.addf %475, %474 : vector<2x128xf32>
    %477 = arith.divf %475, %476 : vector<2x128xf32>
    %478 = math.tanh %472 : vector<2x128xf32>
    %479 = vector.extract_strided_slice %477 {offsets = [0, 0], sizes = [2, 32], strides = [1, 1]} : vector<2x128xf32> to vector<2x32xf32>
    %480 = vector.extract_strided_slice %477 {offsets = [0, 32], sizes = [2, 32], strides = [1, 1]} : vector<2x128xf32> to vector<2x32xf32>
    %481 = vector.extract_strided_slice %478 {offsets = [0, 64], sizes = [2, 32], strides = [1, 1]} : vector<2x128xf32> to vector<2x32xf32>
    %482 = vector.extract_strided_slice %477 {offsets = [0, 96], sizes = [2, 32], strides = [1, 1]} : vector<2x128xf32> to vector<2x32xf32>
    %483 = arith.mulf %480, %466 : vector<2x32xf32>
    %484 = arith.mulf %479, %481 : vector<2x32xf32>
    %485 = arith.addf %483, %484 : vector<2x32xf32>
    %486 = math.tanh %485 : vector<2x32xf32>
    %487 = arith.mulf %482, %486 : vector<2x32xf32>
    %c14_129 = arith.constant 14 : index
    %c0_130 = arith.constant 0 : index
    %488 = vector.load %arg20[%c14_129, %c0_130] : memref<16x32xf32, #tpu.memory_space<vmem>>, vector<2x32xf32>
    tpu.vector_store %arg20[%c14_129, %c0_130], %487 {strides = array<i32>} : memref<16x32xf32, #tpu.memory_space<vmem>>, vector<2x32xf32>,
    %c0_131 = arith.constant 0 : index
    %c0_132 = arith.constant 0 : index
    %489 = vector.load %arg20[%c0_131, %c0_132] : memref<16x32xf32, #tpu.memory_space<vmem>>, vector<16x32xf32>
    %c0_133 = arith.constant 0 : index
    %c0_134 = arith.constant 0 : index
    %490 = vector.load %arg12[%c0_133, %c0_134] : memref<32x128xf32, #tpu.memory_space<vmem>>, vector<32x128xf32>
    %cst_135 = arith.constant dense<0.000000e+00> : vector<16x128xf32>
    %491 = tpu.matmul %489, %490, %cst_135 {dimension_numbers = #tpu.dot_dimension_numbers<[1], [0], [0], [1], [0, 0, 1, 1], [], []>} : vector<16x32xf32>, vector<32x128xf32>, vector<16x128xf32> -> vector<16x128xf32>
    %c0_136 = arith.constant 0 : index
    %c0_137 = arith.constant 0 : index
    %492 = vector.load %arg14[%c0_136, %c0_137] : memref<1x128xf32, #tpu.memory_space<vmem>>, vector<1x128xf32>
    %493 = vector.broadcast %492 : vector<1x128xf32> to vector<16x128xf32>
    %494 = arith.addf %491, %493 : vector<16x128xf32>
    %c0_138 = arith.constant 0 : index
    %c0_139 = arith.constant 0 : index
    %495 = vector.load %arg13[%c0_138, %c0_139] : memref<32x128xf32, #tpu.memory_space<vmem>>, vector<32x128xf32>
    %c1_140 = arith.constant 1 : index
    %c0_141 = arith.constant 0 : index
    %c0_142 = arith.constant 0 : index
    %496 = vector.load %arg1[%c1_140, %c0_141, %c0_142] : memref<2x2x32xf32, #tpu.memory_space<vmem>>, vector<1x2x32xf32>
    %497 = vector.shape_cast %496 : vector<1x2x32xf32> to vector<2x32xf32>
    %c1_143 = arith.constant 1 : index
    %c0_144 = arith.constant 0 : index
    %c0_145 = arith.constant 0 : index
    %498 = vector.load %arg2[%c1_143, %c0_144, %c0_145] : memref<2x2x32xf32, #tpu.memory_space<vmem>>, vector<1x2x32xf32>
    %499 = vector.shape_cast %498 : vector<1x2x32xf32> to vector<2x32xf32>
    %500 = vector.extract_strided_slice %494 {offsets = [0, 0], sizes = [2, 128], strides = [1, 1]} : vector<16x128xf32> to vector<2x128xf32>
    %cst_146 = arith.constant dense<0.000000e+00> : vector<2x128xf32>
    %501 = tpu.matmul %497, %495, %cst_146 {dimension_numbers = #tpu.dot_dimension_numbers<[1], [0], [0], [1], [0, 0, 1, 1], [], []>} : vector<2x32xf32>, vector<32x128xf32>, vector<2x128xf32> -> vector<2x128xf32>
    %502 = arith.addf %500, %501 : vector<2x128xf32>
    %503 = arith.negf %502 : vector<2x128xf32>
    %504 = math.exp %503 : vector<2x128xf32>
    %cst_147 = arith.constant 1.000000e+00 : f32
    %505 = vector.broadcast %cst_147 : f32 to vector<2x128xf32>
    %506 = arith.addf %505, %504 : vector<2x128xf32>
    %507 = arith.divf %505, %506 : vector<2x128xf32>
    %508 = math.tanh %502 : vector<2x128xf32>
    %509 = vector.extract_strided_slice %507 {offsets = [0, 0], sizes = [2, 32], strides = [1, 1]} : vector<2x128xf32> to vector<2x32xf32>
    %510 = vector.extract_strided_slice %507 {offsets = [0, 32], sizes = [2, 32], strides = [1, 1]} : vector<2x128xf32> to vector<2x32xf32>
    %511 = vector.extract_strided_slice %508 {offsets = [0, 64], sizes = [2, 32], strides = [1, 1]} : vector<2x128xf32> to vector<2x32xf32>
    %512 = vector.extract_strided_slice %507 {offsets = [0, 96], sizes = [2, 32], strides = [1, 1]} : vector<2x128xf32> to vector<2x32xf32>
    %513 = arith.mulf %510, %499 : vector<2x32xf32>
    %514 = arith.mulf %509, %511 : vector<2x32xf32>
    %515 = arith.addf %513, %514 : vector<2x32xf32>
    %516 = math.tanh %515 : vector<2x32xf32>
    %517 = arith.mulf %512, %516 : vector<2x32xf32>
    %518 = vector.extract_strided_slice %494 {offsets = [2, 0], sizes = [2, 128], strides = [1, 1]} : vector<16x128xf32> to vector<2x128xf32>
    %cst_148 = arith.constant dense<0.000000e+00> : vector<2x128xf32>
    %519 = tpu.matmul %517, %495, %cst_148 {dimension_numbers = #tpu.dot_dimension_numbers<[1], [0], [0], [1], [0, 0, 1, 1], [], []>} : vector<2x32xf32>, vector<32x128xf32>, vector<2x128xf32> -> vector<2x128xf32>
    %520 = arith.addf %518, %519 : vector<2x128xf32>
    %521 = arith.negf %520 : vector<2x128xf32>
    %522 = math.exp %521 : vector<2x128xf32>
    %cst_149 = arith.constant 1.000000e+00 : f32
    %523 = vector.broadcast %cst_149 : f32 to vector<2x128xf32>
    %524 = arith.addf %523, %522 : vector<2x128xf32>
    %525 = arith.divf %523, %524 : vector<2x128xf32>
    %526 = math.tanh %520 : vector<2x128xf32>
    %527 = vector.extract_strided_slice %525 {offsets = [0, 0], sizes = [2, 32], strides = [1, 1]} : vector<2x128xf32> to vector<2x32xf32>
    %528 = vector.extract_strided_slice %525 {offsets = [0, 32], sizes = [2, 32], strides = [1, 1]} : vector<2x128xf32> to vector<2x32xf32>
    %529 = vector.extract_strided_slice %526 {offsets = [0, 64], sizes = [2, 32], strides = [1, 1]} : vector<2x128xf32> to vector<2x32xf32>
    %530 = vector.extract_strided_slice %525 {offsets = [0, 96], sizes = [2, 32], strides = [1, 1]} : vector<2x128xf32> to vector<2x32xf32>
    %531 = arith.mulf %528, %515 : vector<2x32xf32>
    %532 = arith.mulf %527, %529 : vector<2x32xf32>
    %533 = arith.addf %531, %532 : vector<2x32xf32>
    %534 = math.tanh %533 : vector<2x32xf32>
    %535 = arith.mulf %530, %534 : vector<2x32xf32>
    %536 = vector.extract_strided_slice %494 {offsets = [4, 0], sizes = [2, 128], strides = [1, 1]} : vector<16x128xf32> to vector<2x128xf32>
    %cst_150 = arith.constant dense<0.000000e+00> : vector<2x128xf32>
    %537 = tpu.matmul %535, %495, %cst_150 {dimension_numbers = #tpu.dot_dimension_numbers<[1], [0], [0], [1], [0, 0, 1, 1], [], []>} : vector<2x32xf32>, vector<32x128xf32>, vector<2x128xf32> -> vector<2x128xf32>
    %538 = arith.addf %536, %537 : vector<2x128xf32>
    %539 = arith.negf %538 : vector<2x128xf32>
    %540 = math.exp %539 : vector<2x128xf32>
    %cst_151 = arith.constant 1.000000e+00 : f32
    %541 = vector.broadcast %cst_151 : f32 to vector<2x128xf32>
    %542 = arith.addf %541, %540 : vector<2x128xf32>
    %543 = arith.divf %541, %542 : vector<2x128xf32>
    %544 = math.tanh %538 : vector<2x128xf32>
    %545 = vector.extract_strided_slice %543 {offsets = [0, 0], sizes = [2, 32], strides = [1, 1]} : vector<2x128xf32> to vector<2x32xf32>
    %546 = vector.extract_strided_slice %543 {offsets = [0, 32], sizes = [2, 32], strides = [1, 1]} : vector<2x128xf32> to vector<2x32xf32>
    %547 = vector.extract_strided_slice %544 {offsets = [0, 64], sizes = [2, 32], strides = [1, 1]} : vector<2x128xf32> to vector<2x32xf32>
    %548 = vector.extract_strided_slice %543 {offsets = [0, 96], sizes = [2, 32], strides = [1, 1]} : vector<2x128xf32> to vector<2x32xf32>
    %549 = arith.mulf %546, %533 : vector<2x32xf32>
    %550 = arith.mulf %545, %547 : vector<2x32xf32>
    %551 = arith.addf %549, %550 : vector<2x32xf32>
    %552 = math.tanh %551 : vector<2x32xf32>
    %553 = arith.mulf %548, %552 : vector<2x32xf32>
    %554 = vector.extract_strided_slice %494 {offsets = [6, 0], sizes = [2, 128], strides = [1, 1]} : vector<16x128xf32> to vector<2x128xf32>
    %cst_152 = arith.constant dense<0.000000e+00> : vector<2x128xf32>
    %555 = tpu.matmul %553, %495, %cst_152 {dimension_numbers = #tpu.dot_dimension_numbers<[1], [0], [0], [1], [0, 0, 1, 1], [], []>} : vector<2x32xf32>, vector<32x128xf32>, vector<2x128xf32> -> vector<2x128xf32>
    %556 = arith.addf %554, %555 : vector<2x128xf32>
    %557 = arith.negf %556 : vector<2x128xf32>
    %558 = math.exp %557 : vector<2x128xf32>
    %cst_153 = arith.constant 1.000000e+00 : f32
    %559 = vector.broadcast %cst_153 : f32 to vector<2x128xf32>
    %560 = arith.addf %559, %558 : vector<2x128xf32>
    %561 = arith.divf %559, %560 : vector<2x128xf32>
    %562 = math.tanh %556 : vector<2x128xf32>
    %563 = vector.extract_strided_slice %561 {offsets = [0, 0], sizes = [2, 32], strides = [1, 1]} : vector<2x128xf32> to vector<2x32xf32>
    %564 = vector.extract_strided_slice %561 {offsets = [0, 32], sizes = [2, 32], strides = [1, 1]} : vector<2x128xf32> to vector<2x32xf32>
    %565 = vector.extract_strided_slice %562 {offsets = [0, 64], sizes = [2, 32], strides = [1, 1]} : vector<2x128xf32> to vector<2x32xf32>
    %566 = vector.extract_strided_slice %561 {offsets = [0, 96], sizes = [2, 32], strides = [1, 1]} : vector<2x128xf32> to vector<2x32xf32>
    %567 = arith.mulf %564, %551 : vector<2x32xf32>
    %568 = arith.mulf %563, %565 : vector<2x32xf32>
    %569 = arith.addf %567, %568 : vector<2x32xf32>
    %570 = math.tanh %569 : vector<2x32xf32>
    %571 = arith.mulf %566, %570 : vector<2x32xf32>
    %572 = vector.extract_strided_slice %494 {offsets = [8, 0], sizes = [2, 128], strides = [1, 1]} : vector<16x128xf32> to vector<2x128xf32>
    %cst_154 = arith.constant dense<0.000000e+00> : vector<2x128xf32>
    %573 = tpu.matmul %571, %495, %cst_154 {dimension_numbers = #tpu.dot_dimension_numbers<[1], [0], [0], [1], [0, 0, 1, 1], [], []>} : vector<2x32xf32>, vector<32x128xf32>, vector<2x128xf32> -> vector<2x128xf32>
    %574 = arith.addf %572, %573 : vector<2x128xf32>
    %575 = arith.negf %574 : vector<2x128xf32>
    %576 = math.exp %575 : vector<2x128xf32>
    %cst_155 = arith.constant 1.000000e+00 : f32
    %577 = vector.broadcast %cst_155 : f32 to vector<2x128xf32>
    %578 = arith.addf %577, %576 : vector<2x128xf32>
    %579 = arith.divf %577, %578 : vector<2x128xf32>
    %580 = math.tanh %574 : vector<2x128xf32>
    %581 = vector.extract_strided_slice %579 {offsets = [0, 0], sizes = [2, 32], strides = [1, 1]} : vector<2x128xf32> to vector<2x32xf32>
    %582 = vector.extract_strided_slice %579 {offsets = [0, 32], sizes = [2, 32], strides = [1, 1]} : vector<2x128xf32> to vector<2x32xf32>
    %583 = vector.extract_strided_slice %580 {offsets = [0, 64], sizes = [2, 32], strides = [1, 1]} : vector<2x128xf32> to vector<2x32xf32>
    %584 = vector.extract_strided_slice %579 {offsets = [0, 96], sizes = [2, 32], strides = [1, 1]} : vector<2x128xf32> to vector<2x32xf32>
    %585 = arith.mulf %582, %569 : vector<2x32xf32>
    %586 = arith.mulf %581, %583 : vector<2x32xf32>
    %587 = arith.addf %585, %586 : vector<2x32xf32>
    %588 = math.tanh %587 : vector<2x32xf32>
    %589 = arith.mulf %584, %588 : vector<2x32xf32>
    %590 = vector.extract_strided_slice %494 {offsets = [10, 0], sizes = [2, 128], strides = [1, 1]} : vector<16x128xf32> to vector<2x128xf32>
    %cst_156 = arith.constant dense<0.000000e+00> : vector<2x128xf32>
    %591 = tpu.matmul %589, %495, %cst_156 {dimension_numbers = #tpu.dot_dimension_numbers<[1], [0], [0], [1], [0, 0, 1, 1], [], []>} : vector<2x32xf32>, vector<32x128xf32>, vector<2x128xf32> -> vector<2x128xf32>
    %592 = arith.addf %590, %591 : vector<2x128xf32>
    %593 = arith.negf %592 : vector<2x128xf32>
    %594 = math.exp %593 : vector<2x128xf32>
    %cst_157 = arith.constant 1.000000e+00 : f32
    %595 = vector.broadcast %cst_157 : f32 to vector<2x128xf32>
    %596 = arith.addf %595, %594 : vector<2x128xf32>
    %597 = arith.divf %595, %596 : vector<2x128xf32>
    %598 = math.tanh %592 : vector<2x128xf32>
    %599 = vector.extract_strided_slice %597 {offsets = [0, 0], sizes = [2, 32], strides = [1, 1]} : vector<2x128xf32> to vector<2x32xf32>
    %600 = vector.extract_strided_slice %597 {offsets = [0, 32], sizes = [2, 32], strides = [1, 1]} : vector<2x128xf32> to vector<2x32xf32>
    %601 = vector.extract_strided_slice %598 {offsets = [0, 64], sizes = [2, 32], strides = [1, 1]} : vector<2x128xf32> to vector<2x32xf32>
    %602 = vector.extract_strided_slice %597 {offsets = [0, 96], sizes = [2, 32], strides = [1, 1]} : vector<2x128xf32> to vector<2x32xf32>
    %603 = arith.mulf %600, %587 : vector<2x32xf32>
    %604 = arith.mulf %599, %601 : vector<2x32xf32>
    %605 = arith.addf %603, %604 : vector<2x32xf32>
    %606 = math.tanh %605 : vector<2x32xf32>
    %607 = arith.mulf %602, %606 : vector<2x32xf32>
    %608 = vector.extract_strided_slice %494 {offsets = [12, 0], sizes = [2, 128], strides = [1, 1]} : vector<16x128xf32> to vector<2x128xf32>
    %cst_158 = arith.constant dense<0.000000e+00> : vector<2x128xf32>
    %609 = tpu.matmul %607, %495, %cst_158 {dimension_numbers = #tpu.dot_dimension_numbers<[1], [0], [0], [1], [0, 0, 1, 1], [], []>} : vector<2x32xf32>, vector<32x128xf32>, vector<2x128xf32> -> vector<2x128xf32>
    %610 = arith.addf %608, %609 : vector<2x128xf32>
    %611 = arith.negf %610 : vector<2x128xf32>
    %612 = math.exp %611 : vector<2x128xf32>
    %cst_159 = arith.constant 1.000000e+00 : f32
    %613 = vector.broadcast %cst_159 : f32 to vector<2x128xf32>
    %614 = arith.addf %613, %612 : vector<2x128xf32>
    %615 = arith.divf %613, %614 : vector<2x128xf32>
    %616 = math.tanh %610 : vector<2x128xf32>
    %617 = vector.extract_strided_slice %615 {offsets = [0, 0], sizes = [2, 32], strides = [1, 1]} : vector<2x128xf32> to vector<2x32xf32>
    %618 = vector.extract_strided_slice %615 {offsets = [0, 32], sizes = [2, 32], strides = [1, 1]} : vector<2x128xf32> to vector<2x32xf32>
    %619 = vector.extract_strided_slice %616 {offsets = [0, 64], sizes = [2, 32], strides = [1, 1]} : vector<2x128xf32> to vector<2x32xf32>
    %620 = vector.extract_strided_slice %615 {offsets = [0, 96], sizes = [2, 32], strides = [1, 1]} : vector<2x128xf32> to vector<2x32xf32>
    %621 = arith.mulf %618, %605 : vector<2x32xf32>
    %622 = arith.mulf %617, %619 : vector<2x32xf32>
    %623 = arith.addf %621, %622 : vector<2x32xf32>
    %624 = math.tanh %623 : vector<2x32xf32>
    %625 = arith.mulf %620, %624 : vector<2x32xf32>
    %626 = vector.extract_strided_slice %494 {offsets = [14, 0], sizes = [2, 128], strides = [1, 1]} : vector<16x128xf32> to vector<2x128xf32>
    %cst_160 = arith.constant dense<0.000000e+00> : vector<2x128xf32>
    %627 = tpu.matmul %625, %495, %cst_160 {dimension_numbers = #tpu.dot_dimension_numbers<[1], [0], [0], [1], [0, 0, 1, 1], [], []>} : vector<2x32xf32>, vector<32x128xf32>, vector<2x128xf32> -> vector<2x128xf32>
    %628 = arith.addf %626, %627 : vector<2x128xf32>
    %629 = arith.negf %628 : vector<2x128xf32>
    %630 = math.exp %629 : vector<2x128xf32>
    %cst_161 = arith.constant 1.000000e+00 : f32
    %631 = vector.broadcast %cst_161 : f32 to vector<2x128xf32>
    %632 = arith.addf %631, %630 : vector<2x128xf32>
    %633 = arith.divf %631, %632 : vector<2x128xf32>
    %634 = math.tanh %628 : vector<2x128xf32>
    %635 = vector.extract_strided_slice %633 {offsets = [0, 0], sizes = [2, 32], strides = [1, 1]} : vector<2x128xf32> to vector<2x32xf32>
    %636 = vector.extract_strided_slice %633 {offsets = [0, 32], sizes = [2, 32], strides = [1, 1]} : vector<2x128xf32> to vector<2x32xf32>
    %637 = vector.extract_strided_slice %634 {offsets = [0, 64], sizes = [2, 32], strides = [1, 1]} : vector<2x128xf32> to vector<2x32xf32>
    %638 = vector.extract_strided_slice %633 {offsets = [0, 96], sizes = [2, 32], strides = [1, 1]} : vector<2x128xf32> to vector<2x32xf32>
    %639 = arith.mulf %636, %623 : vector<2x32xf32>
    %640 = arith.mulf %635, %637 : vector<2x32xf32>
    %641 = arith.addf %639, %640 : vector<2x32xf32>
    %642 = math.tanh %641 : vector<2x32xf32>
    %643 = arith.mulf %638, %642 : vector<2x32xf32>
    %c0_162 = arith.constant 0 : index
    %c0_163 = arith.constant 0 : index
    %644 = vector.load %arg15[%c0_162, %c0_163] : memref<32x32xf32, #tpu.memory_space<vmem>>, vector<32x32xf32>
    %cst_164 = arith.constant dense<0.000000e+00> : vector<2x32xf32>
    %645 = tpu.matmul %643, %644, %cst_164 {dimension_numbers = #tpu.dot_dimension_numbers<[1], [0], [0], [1], [0, 0, 1, 1], [], []>} : vector<2x32xf32>, vector<32x32xf32>, vector<2x32xf32> -> vector<2x32xf32>
    %c0_165 = arith.constant 0 : index
    %c0_166 = arith.constant 0 : index
    %646 = vector.load %arg16[%c0_165, %c0_166] : memref<1x32xf32, #tpu.memory_space<vmem>>, vector<1x32xf32>
    %647 = vector.broadcast %646 : vector<1x32xf32> to vector<2x32xf32>
    %648 = arith.addf %645, %647 : vector<2x32xf32>
    %cst_167 = arith.constant 0.000000e+00 : f32
    %649 = vector.broadcast %cst_167 : f32 to vector<2x32xf32>
    %650 = arith.maximumf %648, %649 : vector<2x32xf32>
    %c0_168 = arith.constant 0 : index
    %c0_169 = arith.constant 0 : index
    %651 = vector.load %arg17[%c0_168, %c0_169] : memref<32x1xf32, #tpu.memory_space<vmem>>, vector<32x1xf32>
    %cst_170 = arith.constant dense<0.000000e+00> : vector<2x1xf32>
    %652 = tpu.matmul %650, %651, %cst_170 {dimension_numbers = #tpu.dot_dimension_numbers<[1], [0], [0], [1], [0, 0, 1, 1], [], []>} : vector<2x32xf32>, vector<32x1xf32>, vector<2x1xf32> -> vector<2x1xf32>
    %c0_171 = arith.constant 0 : index
    %c0_172 = arith.constant 0 : index
    %653 = vector.load %arg18[%c0_171, %c0_172] : memref<1x1xf32, #tpu.memory_space<vmem>>, vector<1x1xf32>
    %654 = vector.broadcast %653 : vector<1x1xf32> to vector<2x1xf32>
    %655 = arith.addf %652, %654 : vector<2x1xf32>
    %c0_173 = arith.constant 0 : index
    %c0_174 = arith.constant 0 : index
    %656 = vector.load %arg19[%c0_173, %c0_174] : memref<2x1xf32, #tpu.memory_space<vmem>>, vector<2x1xf32>
    tpu.vector_store %arg19[%c0_173, %c0_174], %655 {strides = array<i32>} : memref<2x1xf32, #tpu.memory_space<vmem>>, vector<2x1xf32>,
    return
  }
}

</mosaic_0001>

<llo_original>
// kernel: tpu_custom_call.1
$region0: #{tpu_custom_call.1}
  #allocation0 [shape = 'u32[]', space=smem, size = 0x4, offset = 0x4, fixed_abs, tag = 'smem constant byte address 0x4 - core index']
  #allocation1 [shape = 'u32[144,128]{1,0:T(1,128)}', space=vmem, size = 0x12000, scoped, tag = 'internal scratch']
  #allocation2 [shape = 'f32[16,32]{1,0:T(8,128)}', space=vmem, size = 0x2000, scoped, tag = 'scratch operand']
  #allocation3 [shape = 'f32[16,32]{1,0:T(8,128)}', space=vmem, size = 0x2000, scoped, tag = 'scratch operand']
  #allocation4 [shape = 'f32[1,1]{1,0:T(1,128)S(1)}', space=vmem, size = 0x200, scoped, tag = 'scoped memory for tpu_custom_call.1']
  %s0 = inlined_call_operand.vmem [shape: f32[16,3], index: 0, kind: input, shape index: {}]
  %s1 = inlined_call_operand.hbm [shape: f32[2,2,32], index: 1, kind: input, shape index: {}]
  %s2 = inlined_call_operand.hbm [shape: f32[2,2,32], index: 2, kind: input, shape index: {}]
  %s3 = inlined_call_operand.hbm [shape: f32[3,128], index: 3, kind: input, shape index: {}]
  %s4 = inlined_call_operand.vmem [shape: f32[32,128], index: 4, kind: input, shape index: {}]
  %s5 = inlined_call_operand.vmem [shape: f32[1,128], index: 5, kind: input, shape index: {}]
  %s6 = inlined_call_operand.vmem [shape: f32[32,128], index: 6, kind: input, shape index: {}]
  %s7 = inlined_call_operand.hbm [shape: f32[32,128], index: 7, kind: input, shape index: {}]
  %s8 = inlined_call_operand.hbm [shape: f32[1,128], index: 8, kind: input, shape index: {}]
  %s9 = inlined_call_operand.hbm [shape: f32[32,128], index: 9, kind: input, shape index: {}]
  %s10 = inlined_call_operand.hbm [shape: f32[32,128], index: 10, kind: input, shape index: {}]
  %s11 = inlined_call_operand.hbm [shape: f32[1,128], index: 11, kind: input, shape index: {}]
  %s12 = inlined_call_operand.vmem [shape: f32[32,128], index: 12, kind: input, shape index: {}]
  %s13 = inlined_call_operand.hbm [shape: f32[32,128], index: 13, kind: input, shape index: {}]
  %s14 = inlined_call_operand.vmem [shape: f32[1,128], index: 14, kind: input, shape index: {}]
  %s15 = inlined_call_operand.hbm [shape: f32[32,32], index: 15, kind: input, shape index: {}]
  %s16 = inlined_call_operand.vmem [shape: f32[1,32], index: 16, kind: input, shape index: {}]
  %s17 = inlined_call_operand.vmem [shape: f32[32,1], index: 17, kind: input, shape index: {}]
  %s18 = inlined_call_operand.<no memory space> [shape: f32[1,1], index: 18, kind: input, shape index: {}]
  %s19 = inlined_call_operand.vmem [shape: f32[2,1], index: 19, kind: output, shape index: {}]
  %s20 = sld [smem:[#allocation0]]
  $region126: #{tpu_custom_call.1} parent=0
    _
  %s22 = ssub.s32 1, %s20
  %s23 = scalar_select 0, %s22, %s20
  %v24 = vstv %s18
  %25 = vst [vmem:[#allocation4] sm:$0x1] %v24
  $region1: #{tpu_custom_call.1} parent=0
    #allocation5 [shape = 'u8[2048]{0}', space=vmem, size = 0x800, scoped, tag = 'input window, operand 1, single buffered']
    #allocation6 [shape = 's32[1]{0}', space=sflag, size = 0x4, scoped, tag = 'scoped memory for tpu_custom_call.1']
    #allocation7 [shape = 'u8[2048]{0}', space=vmem, size = 0x800, scoped, tag = 'input window, operand 2, single buffered']
    #allocation8 [shape = 's32[1]{0}', space=sflag, size = 0x4, scoped, tag = 'scoped memory for tpu_custom_call.1']
    #allocation9 [shape = 'u8[2048]{0}', space=vmem, size = 0x800, scoped, tag = 'input window, operand 3, single buffered']
    #allocation10 [shape = 'u8[16384]{0}', space=vmem, size = 0x4000, scoped, tag = 'input window, operand 7, single buffered']
    #allocation11 [shape = 's32[1]{0}', space=sflag, size = 0x4, scoped, tag = 'scoped memory for tpu_custom_call.1']
    #allocation12 [shape = 'u8[512]{0}', space=vmem, size = 0x400, scoped, tag = 'input window, operand 8, single buffered']
    #allocation13 [shape = 'u8[16384]{0}', space=vmem, size = 0x4000, scoped, tag = 'input window, operand 9, single buffered']
    #allocation14 [shape = 's32[1]{0}', space=sflag, size = 0x4, scoped, tag = 'scoped memory for tpu_custom_call.1']
    #allocation15 [shape = 'u8[16384]{0}', space=vmem, size = 0x4000, scoped, tag = 'input window, operand 10, single buffered']
    #allocation16 [shape = 'u8[512]{0}', space=vmem, size = 0x400, scoped, tag = 'input window, operand 11, single buffered']
    #allocation17 [shape = 's32[1]{0}', space=sflag, size = 0x4, scoped, tag = 'scoped memory for tpu_custom_call.1']
    #allocation18 [shape = 'u8[16384]{0}', space=vmem, size = 0x4000, scoped, tag = 'input window, operand 13, single buffered']
    #allocation19 [shape = 'u8[16384]{0}', space=vmem, size = 0x4000, scoped, tag = 'input window, operand 15, single buffered']
    #allocation20 [shape = 's32[1]{0}', space=sflag, size = 0x4, scoped, tag = 'scoped memory for tpu_custom_call.1']
    %26 = vsyncpa [#allocation6], 0
    %27 = vsyncpa [#allocation8], 0
    %28 = vsyncpa [#allocation11], 0
    %29 = vsyncpa [#allocation14], 0
    %30 = vsyncpa [#allocation17], 0
    %31 = vsyncpa [#allocation20], 0
    // Predicated region
    $region2: #{tpu_custom_call.1} parent=1 // pred_check
      _
    $region3: #{tpu_custom_call.1} parent=1 // pred_check_branch
      %33 = sbr.rel (0) target = $region5
    $region4: #{tpu_custom_call.1} parent=1 // pred_region
      _
    $region5: #{tpu_custom_call.1} parent=1 // pred_fallthru
      _
    // Predicated region
    $region6: #{tpu_custom_call.1} parent=1 // pred_check
      _
    $region7: #{tpu_custom_call.1} parent=1 // pred_check_branch
      %35 = sbr.rel (0) target = $region9
    $region8: #{tpu_custom_call.1} parent=1 // pred_region
      %s37 = ssub.s32 64, 64
      %38 = vsyncadd [#allocation6], %s37
      %s39 = sshll.u32 [#allocation5], 4
      %s40 = int_to_ptr.vmem [resolvable:$true] %s39
      %45 = dma.hbm_to_vmem [thread:$0]  %s1, 64, %s40, [#allocation6], 32, 32, 2
    $region9: #{tpu_custom_call.1} parent=1 // pred_fallthru
      _
    // Predicated region
    $region10: #{tpu_custom_call.1} parent=1 // pred_check
      _
    $region11: #{tpu_custom_call.1} parent=1 // pred_check_branch
      %47 = sbr.rel (0) target = $region13
    $region12: #{tpu_custom_call.1} parent=1 // pred_region
      %s49 = ssub.s32 64, 64
      %50 = vsyncadd [#allocation8], %s49
      %s51 = sshll.u32 [#allocation7], 4
      %s52 = int_to_ptr.vmem [resolvable:$true] %s51
      %57 = dma.hbm_to_vmem [thread:$0]  %s2, 64, %s52, [#allocation8], 32, 32, 2
    $region13: #{tpu_custom_call.1} parent=1 // pred_fallthru
      _
    // Predicated region
    $region14: #{tpu_custom_call.1} parent=1 // pred_check
      _
    $region15: #{tpu_custom_call.1} parent=1 // pred_check_branch
      %59 = sbr.rel (0) target = $region17
    $region16: #{tpu_custom_call.1} parent=1 // pred_region
      %s61 = ssub.s32 64, 64
      %62 = vsyncadd [#allocation8], %s61
      %s64 = sshll.u32 [#allocation9], 4
      %s65 = int_to_ptr.vmem [resolvable:$true] %s64
      %67 = dma.hbm_to_vmem [thread:$0]  %s3, 64, %s65, [#allocation8]
    $region17: #{tpu_custom_call.1} parent=1 // pred_fallthru
      _
    // Predicated region
    $region18: #{tpu_custom_call.1} parent=1 // pred_check
      _
    $region19: #{tpu_custom_call.1} parent=1 // pred_check_branch
      %69 = sbr.rel (0) target = $region21
    $region20: #{tpu_custom_call.1} parent=1 // pred_region
      _
    $region21: #{tpu_custom_call.1} parent=1 // pred_fallthru
      _
    // Predicated region
    $region22: #{tpu_custom_call.1} parent=1 // pred_check
      _
    $region23: #{tpu_custom_call.1} parent=1 // pred_check_branch
      %71 = sbr.rel (0) target = $region25
    $region24: #{tpu_custom_call.1} parent=1 // pred_region
      _
    $region25: #{tpu_custom_call.1} parent=1 // pred_fallthru
      _
    // Predicated region
    $region26: #{tpu_custom_call.1} parent=1 // pred_check
      _
    $region27: #{tpu_custom_call.1} parent=1 // pred_check_branch
      %73 = sbr.rel (0) target = $region29
    $region28: #{tpu_custom_call.1} parent=1 // pred_region
      _
    $region29: #{tpu_custom_call.1} parent=1 // pred_fallthru
      _
    // Predicated region
    $region30: #{tpu_custom_call.1} parent=1 // pred_check
      _
    $region31: #{tpu_custom_call.1} parent=1 // pred_check_branch
      %75 = sbr.rel (0) target = $region33
    $region32: #{tpu_custom_call.1} parent=1 // pred_region
      %s77 = ssub.s32 512, 512
      %78 = vsyncadd [#allocation11], %s77
      %s79 = sshll.u32 [#allocation10], 4
      %s80 = int_to_ptr.vmem [resolvable:$true] %s79
      %85 = dma.hbm_to_vmem [thread:$0]  %s7, 512, %s80, [#allocation11], 128, 128, 8
    $region33: #{tpu_custom_call.1} parent=1 // pred_fallthru
      _
    // Predicated region
    $region34: #{tpu_custom_call.1} parent=1 // pred_check
      _
    $region35: #{tpu_custom_call.1} parent=1 // pred_check_branch
      %87 = sbr.rel (0) target = $region37
    $region36: #{tpu_custom_call.1} parent=1 // pred_region
      %s89 = ssub.s32 16, 16
      %90 = vsyncadd [#allocation11], %s89
      %s92 = sshll.u32 [#allocation12], 4
      %s93 = int_to_ptr.vmem [resolvable:$true] %s92
      %95 = dma.hbm_to_vmem [thread:$0]  %s8, 16, %s93, [#allocation11]
    $region37: #{tpu_custom_call.1} parent=1 // pred_fallthru
      _
    // Predicated region
    $region38: #{tpu_custom_call.1} parent=1 // pred_check
      _
    $region39: #{tpu_custom_call.1} parent=1 // pred_check_branch
      %97 = sbr.rel (0) target = $region41
    $region40: #{tpu_custom_call.1} parent=1 // pred_region
      %s99 = ssub.s32 512, 512
      %100 = vsyncadd [#allocation14], %s99
      %s101 = sshll.u32 [#allocation13], 4
      %s102 = int_to_ptr.vmem [resolvable:$true] %s101
      %107 = dma.hbm_to_vmem [thread:$0]  %s9, 512, %s102, [#allocation14], 128, 128, 8
    $region41: #{tpu_custom_call.1} parent=1 // pred_fallthru
      _
    // Predicated region
    $region42: #{tpu_custom_call.1} parent=1 // pred_check
      _
    $region43: #{tpu_custom_call.1} parent=1 // pred_check_branch
      %109 = sbr.rel (0) target = $region45
    $region44: #{tpu_custom_call.1} parent=1 // pred_region
      %s111 = ssub.s32 512, 512
      %112 = vsyncadd [#allocation14], %s111
      %s113 = sshll.u32 [#allocation15], 4
      %s114 = int_to_ptr.vmem [resolvable:$true] %s113
      %119 = dma.hbm_to_vmem [thread:$0]  %s10, 512, %s114, [#allocation14], 128, 128, 8
    $region45: #{tpu_custom_call.1} parent=1 // pred_fallthru
      _
    // Predicated region
    $region46: #{tpu_custom_call.1} parent=1 // pred_check
      _
    $region47: #{tpu_custom_call.1} parent=1 // pred_check_branch
      %121 = sbr.rel (0) target = $region49
    $region48: #{tpu_custom_call.1} parent=1 // pred_region
      %s123 = ssub.s32 16, 16
      %124 = vsyncadd [#allocation17], %s123
      %s126 = sshll.u32 [#allocation16], 4
      %s127 = int_to_ptr.vmem [resolvable:$true] %s126
      %129 = dma.hbm_to_vmem [thread:$0]  %s11, 16, %s127, [#allocation17]
    $region49: #{tpu_custom_call.1} parent=1 // pred_fallthru
      _
    // Predicated region
    $region50: #{tpu_custom_call.1} parent=1 // pred_check
      _
    $region51: #{tpu_custom_call.1} parent=1 // pred_check_branch
      %131 = sbr.rel (0) target = $region53
    $region52: #{tpu_custom_call.1} parent=1 // pred_region
      _
    $region53: #{tpu_custom_call.1} parent=1 // pred_fallthru
      _
    // Predicated region
    $region54: #{tpu_custom_call.1} parent=1 // pred_check
      _
    $region55: #{tpu_custom_call.1} parent=1 // pred_check_branch
      %133 = sbr.rel (0) target = $region57
    $region56: #{tpu_custom_call.1} parent=1 // pred_region
      %s135 = ssub.s32 512, 512
      %136 = vsyncadd [#allocation17], %s135
      %s137 = sshll.u32 [#allocation18], 4
      %s138 = int_to_ptr.vmem [resolvable:$true] %s137
      %143 = dma.hbm_to_vmem [thread:$0]  %s13, 512, %s138, [#allocation17], 128, 128, 8
    $region57: #{tpu_custom_call.1} parent=1 // pred_fallthru
      _
    // Predicated region
    $region58: #{tpu_custom_call.1} parent=1 // pred_check
      _
    $region59: #{tpu_custom_call.1} parent=1 // pred_check_branch
      %145 = sbr.rel (0) target = $region61
    $region60: #{tpu_custom_call.1} parent=1 // pred_region
      _
    $region61: #{tpu_custom_call.1} parent=1 // pred_fallthru
      _
    // Predicated region
    $region62: #{tpu_custom_call.1} parent=1 // pred_check
      _
    $region63: #{tpu_custom_call.1} parent=1 // pred_check_branch
      %147 = sbr.rel (0) target = $region65
    $region64: #{tpu_custom_call.1} parent=1 // pred_region
      %s149 = ssub.s32 512, 512
      %150 = vsyncadd [#allocation20], %s149
      %s151 = sshll.u32 [#allocation19], 4
      %s152 = int_to_ptr.vmem [resolvable:$true] %s151
      %157 = dma.hbm_to_vmem [thread:$0]  %s15, 512, %s152, [#allocation20], 128, 128, 8
    $region65: #{tpu_custom_call.1} parent=1 // pred_fallthru
      _
    // Predicated region
    $region66: #{tpu_custom_call.1} parent=1 // pred_check
      _
    $region67: #{tpu_custom_call.1} parent=1 // pred_check_branch
      %159 = sbr.rel (0) target = $region69
    $region68: #{tpu_custom_call.1} parent=1 // pred_region
      _
    $region69: #{tpu_custom_call.1} parent=1 // pred_fallthru
      _
    // Predicated region
    $region70: #{tpu_custom_call.1} parent=1 // pred_check
      _
    $region71: #{tpu_custom_call.1} parent=1 // pred_check_branch
      %161 = sbr.rel (0) target = $region73
    $region72: #{tpu_custom_call.1} parent=1 // pred_region
      _
    $region73: #{tpu_custom_call.1} parent=1 // pred_fallthru
      _
    // Predicated region
    $region74: #{tpu_custom_call.1} parent=1 // pred_check
      _
    $region75: #{tpu_custom_call.1} parent=1 // pred_check_branch
      %163 = sbr.rel (0) target = $region77
    $region76: #{tpu_custom_call.1} parent=1 // pred_region
      _
    $region77: #{tpu_custom_call.1} parent=1 // pred_fallthru
      _
    // Predicated region
    $region78: #{tpu_custom_call.1} parent=1 // pred_check
      _
    $region79: #{tpu_custom_call.1} parent=1 // pred_check_branch
      %165 = sbr.rel (0) target = $region81
    $region80: #{tpu_custom_call.1} parent=1 // pred_region
      %166 = dma.done [#allocation6], 64
    $region81: #{tpu_custom_call.1} parent=1 // pred_fallthru
      _
    // Predicated region
    $region82: #{tpu_custom_call.1} parent=1 // pred_check
      _
    $region83: #{tpu_custom_call.1} parent=1 // pred_check_branch
      %168 = sbr.rel (0) target = $region85
    $region84: #{tpu_custom_call.1} parent=1 // pred_region
      %169 = dma.done [#allocation8], 64
    $region85: #{tpu_custom_call.1} parent=1 // pred_fallthru
      _
    // Predicated region
    $region86: #{tpu_custom_call.1} parent=1 // pred_check
      _
    $region87: #{tpu_custom_call.1} parent=1 // pred_check_branch
      %171 = sbr.rel (0) target = $region89
    $region88: #{tpu_custom_call.1} parent=1 // pred_region
      %172 = dma.done [#allocation8], 64
    $region89: #{tpu_custom_call.1} parent=1 // pred_fallthru
      _
    // Predicated region
    $region90: #{tpu_custom_call.1} parent=1 // pred_check
      _
    $region91: #{tpu_custom_call.1} parent=1 // pred_check_branch
      %174 = sbr.rel (0) target = $region93
    $region92: #{tpu_custom_call.1} parent=1 // pred_region
      %175 = dma.done [#allocation11], 512
    $region93: #{tpu_custom_call.1} parent=1 // pred_fallthru
      _
    // Predicated region
    $region94: #{tpu_custom_call.1} parent=1 // pred_check
      _
    $region95: #{tpu_custom_call.1} parent=1 // pred_check_branch
      %177 = sbr.rel (0) target = $region97
    $region96: #{tpu_custom_call.1} parent=1 // pred_region
      %178 = dma.done [#allocation11], 16
    $region97: #{tpu_custom_call.1} parent=1 // pred_fallthru
      _
    // Predicated region
    $region98: #{tpu_custom_call.1} parent=1 // pred_check
      _
    $region99: #{tpu_custom_call.1} parent=1 // pred_check_branch
      %180 = sbr.rel (0) target = $region101
    $region100: #{tpu_custom_call.1} parent=1 // pred_region
      %181 = dma.done [#allocation14], 512
    $region101: #{tpu_custom_call.1} parent=1 // pred_fallthru
      _
    // Predicated region
    $region102: #{tpu_custom_call.1} parent=1 // pred_check
      _
    $region103: #{tpu_custom_call.1} parent=1 // pred_check_branch
      %183 = sbr.rel (0) target = $region105
    $region104: #{tpu_custom_call.1} parent=1 // pred_region
      %184 = dma.done [#allocation14], 512
    $region105: #{tpu_custom_call.1} parent=1 // pred_fallthru
      _
    // Predicated region
    $region106: #{tpu_custom_call.1} parent=1 // pred_check
      _
    $region107: #{tpu_custom_call.1} parent=1 // pred_check_branch
      %186 = sbr.rel (0) target = $region109
    $region108: #{tpu_custom_call.1} parent=1 // pred_region
      %187 = dma.done [#allocation17], 16
    $region109: #{tpu_custom_call.1} parent=1 // pred_fallthru
      _
    // Predicated region
    $region110: #{tpu_custom_call.1} parent=1 // pred_check
      _
    $region111: #{tpu_custom_call.1} parent=1 // pred_check_branch
      %189 = sbr.rel (0) target = $region113
    $region112: #{tpu_custom_call.1} parent=1 // pred_region
      %190 = dma.done [#allocation17], 512
    $region113: #{tpu_custom_call.1} parent=1 // pred_fallthru
      _
    // Predicated region
    $region114: #{tpu_custom_call.1} parent=1 // pred_check
      _
    $region115: #{tpu_custom_call.1} parent=1 // pred_check_branch
      %192 = sbr.rel (0) target = $region117
    $region116: #{tpu_custom_call.1} parent=1 // pred_region
      %193 = dma.done [#allocation20], 512
    $region117: #{tpu_custom_call.1} parent=1 // pred_fallthru
      _
    %v194 = vld [vmem:[%s0] sm:$0xff]
    %v195 = vld [vmem:[%s0 + $0x8] sm:$0xff]
    %v196 = vld [vmem:[#allocation9] sm:$0x7]
    %v197 = vld [vmem:[%s5] sm:$0x1]
    %v199 = vlaneseq
    %v200 = vshrl.u32 %v199, 7
    %v201 = vsub.s32 0, %v200
    %v202 = vrot.slane %v197, %v201
    %vm204 = vcmask 23552
    %v206 = vsel %vm204, %v194, 0
    %v209 = vsel %vm204, %v195, 0
    %vm211 = vcmask 1042432
    %v213 = vsel %vm211, %v196, 0
    %215 = vmatprep.subr.mxu0 0.0
    %216 = vmatpush1.msra.mxu0 %v213
    %217 = vmatprep.subr.mxu0 0.0
    %218 = vmatpush1.msra.mxu0 0.0
    %219 = vmatprep.subr.mxu0 0.0
    %220 = vmatpush1.msra.mxu0 0.0
    %221 = vmatprep.subr.mxu0 0.0
    %222 = vmatpush1.msra.mxu0 0.0
    %223 = vmatprep.subr.mxu0 0.0
    %224 = vmatpush1.msra.mxu0 0.0
    %225 = vmatprep.subr.mxu0 0.0
    %226 = vmatpush1.msra.mxu0 0.0
    %227 = vmatprep.subr.mxu0 0.0
    %228 = vmatpush1.msra.mxu0 0.0
    %229 = vmatprep.subr.mxu0 0.0
    %230 = vmatpush1.msra.mxu0 0.0
    %231 = vmatprep.subr.mxu0 0.0
    %232 = vmatpush1.msra.mxu0 0.0
    %233 = vmatprep.subr.mxu0 0.0
    %234 = vmatpush1.msra.mxu0 0.0
    %235 = vmatprep.subr.mxu0 0.0
    %236 = vmatpush1.msra.mxu0 0.0
    %237 = vmatprep.subr.mxu0 0.0
    %238 = vmatpush1.msra.mxu0 0.0
    %239 = vmatprep.subr.mxu0 0.0
    %240 = vmatpush1.msra.mxu0 0.0
    %241 = vmatprep.subr.mxu0 0.0
    %242 = vmatpush1.msra.mxu0 0.0
    %243 = vmatprep.subr.mxu0 0.0
    %244 = vmatpush1.msra.mxu0 0.0
    %245 = vmatprep.subr.mxu0 0.0
    %246 = vmatpush1.msra.mxu0 0.0
    %247 = vmatprep.subr.mxu0 0.0
    %248 = vmatpush1.msra.mxu0 0.0
    %249 = vmatprep.subr.mxu0 0.0
    %250 = vmatpush1.msra.mxu0 0.0
    %251 = vmatprep.subr.mxu0 0.0
    %252 = vmatpush1.msra.mxu0 0.0
    %253 = vmatprep.subr.mxu0 0.0
    %254 = vmatpush1.msra.mxu0 0.0
    %255 = vmatprep.subr.mxu0 0.0
    %256 = vmatpush1.msra.mxu0 0.0
    %257 = vmatprep.subr.mxu0 0.0
    %258 = vmatpush1.msra.mxu0 0.0
    %259 = vmatprep.subr.mxu0 0.0
    %260 = vmatpush1.msra.mxu0 0.0
    %261 = vmatprep.subr.mxu0 0.0
    %262 = vmatpush1.msra.mxu0 0.0
    %263 = vmatprep.subr.mxu0 0.0
    %264 = vmatpush1.msra.mxu0 0.0
    %265 = vmatprep.subr.mxu0 0.0
    %266 = vmatpush1.msra.mxu0 0.0
    %267 = vmatprep.subr.mxu0 0.0
    %268 = vmatpush1.msra.mxu0 0.0
    %269 = vmatprep.subr.mxu0 0.0
    %270 = vmatpush1.msra.mxu0 0.0
    %271 = vmatprep.subr.mxu0 0.0
    %272 = vmatpush1.msra.mxu0 0.0
    %273 = vmatprep.subr.mxu0 0.0
    %274 = vmatpush1.msra.mxu0 0.0
    %275 = vmatprep.subr.mxu0 0.0
    %276 = vmatpush1.msra.mxu0 0.0
    %277 = vmatprep.subr.mxu0 0.0
    %278 = vmatpush1.msra.mxu0 0.0
    %279 = vmatprep.mubr.f32.mxu0 0.0
    %280 = vmatmul.mubr.f32.gmra.mrb[0].mxu0 %v206
    %v281 = vpop.f32.mrb[0].mxu0
    %v282 = vadd.f32 %v202, %v281
    %v283 = vpop.f32.mrb[0].mxu0
    %284 = vmatprep.mubr.f32.mxu0 0.0
    %285 = vmatmul.mubr.f32.gmra.mrb[0].mxu0 %v209
    %v286 = vpop.f32.mrb[0].mxu0
    %v287 = vadd.f32 %v202, %v286
    %v288 = vpop.f32.mrb[0].mxu0
    %289 = vdwg.mxu0
    %v290 = vld [vmem:[%s4] sm:$0xff]
    %v291 = vld [vmem:[%s4 + $0x8] sm:$0xff]
    %v292 = vld [vmem:[%s4 + $0x10] sm:$0xff]
    %v293 = vld [vmem:[%s4 + $0x18] sm:$0xff]
    %v294 = vld [vmem:[#allocation5] sm:$0x3]
    %v295 = vld [vmem:[#allocation7] sm:$0x3]
    %vm296 = vcmask 261120
    %v298 = vsel %vm296, %v294, 0
    %300 = vmatprep.subr.mxu0 0.0
    %301 = vmatpush1.msra.mxu0 %v290
    %302 = vmatprep.subr.mxu0 0.0
    %303 = vmatpush1.msra.mxu0 %v291
    %304 = vmatprep.subr.mxu0 0.0
    %305 = vmatpush1.msra.mxu0 %v292
    %306 = vmatprep.subr.mxu0 0.0
    %307 = vmatpush1.msra.mxu0 %v293
    %308 = vmatprep.subr.mxu0 0.0
    %309 = vmatpush1.msra.mxu0 0.0
    %310 = vmatprep.subr.mxu0 0.0
    %311 = vmatpush1.msra.mxu0 0.0
    %312 = vmatprep.subr.mxu0 0.0
    %313 = vmatpush1.msra.mxu0 0.0
    %314 = vmatprep.subr.mxu0 0.0
    %315 = vmatpush1.msra.mxu0 0.0
    %316 = vmatprep.subr.mxu0 0.0
    %317 = vmatpush1.msra.mxu0 0.0
    %318 = vmatprep.subr.mxu0 0.0
    %319 = vmatpush1.msra.mxu0 0.0
    %320 = vmatprep.subr.mxu0 0.0
    %321 = vmatpush1.msra.mxu0 0.0
    %322 = vmatprep.subr.mxu0 0.0
    %323 = vmatpush1.msra.mxu0 0.0
    %324 = vmatprep.subr.mxu0 0.0
    %325 = vmatpush1.msra.mxu0 0.0
    %326 = vmatprep.subr.mxu0 0.0
    %327 = vmatpush1.msra.mxu0 0.0
    %328 = vmatprep.subr.mxu0 0.0
    %329 = vmatpush1.msra.mxu0 0.0
    %330 = vmatprep.subr.mxu0 0.0
    %331 = vmatpush1.msra.mxu0 0.0
    %332 = vmatprep.subr.mxu0 0.0
    %333 = vmatpush1.msra.mxu0 0.0
    %334 = vmatprep.subr.mxu0 0.0
    %335 = vmatpush1.msra.mxu0 0.0
    %336 = vmatprep.subr.mxu0 0.0
    %337 = vmatpush1.msra.mxu0 0.0
    %338 = vmatprep.subr.mxu0 0.0
    %339 = vmatpush1.msra.mxu0 0.0
    %340 = vmatprep.subr.mxu0 0.0
    %341 = vmatpush1.msra.mxu0 0.0
    %342 = vmatprep.subr.mxu0 0.0
    %343 = vmatpush1.msra.mxu0 0.0
    %344 = vmatprep.subr.mxu0 0.0
    %345 = vmatpush1.msra.mxu0 0.0
    %346 = vmatprep.subr.mxu0 0.0
    %347 = vmatpush1.msra.mxu0 0.0
    %348 = vmatprep.subr.mxu0 0.0
    %349 = vmatpush1.msra.mxu0 0.0
    %350 = vmatprep.subr.mxu0 0.0
    %351 = vmatpush1.msra.mxu0 0.0
    %352 = vmatprep.subr.mxu0 0.0
    %353 = vmatpush1.msra.mxu0 0.0
    %354 = vmatprep.subr.mxu0 0.0
    %355 = vmatpush1.msra.mxu0 0.0
    %356 = vmatprep.subr.mxu0 0.0
    %357 = vmatpush1.msra.mxu0 0.0
    %358 = vmatprep.subr.mxu0 0.0
    %359 = vmatpush1.msra.mxu0 0.0
    %360 = vmatprep.subr.mxu0 0.0
    %361 = vmatpush1.msra.mxu0 0.0
    %362 = vmatprep.subr.mxu0 0.0
    %363 = vmatpush1.msra.mxu0 0.0
    %364 = vmatprep.mubr.f32.mxu0 0.0
    %365 = vmatmul.mubr.f32.gmra.mrb[0].mxu0 %v298
    %v366 = vpop.f32.mrb[0].mxu0
    %v367 = vadd.f32 0.0, %v366
    %v368 = vpop.f32.mrb[0].mxu0
    %369 = vdwg.mxu0
    %v370 = vadd.f32 %v282, %v367
    %v371 = vxor.u32 %v370, 2147483648
    %v372 = vmul.f32 %v371, 1.442695
    %v373 = vpow.pop %v372
    %v374 = vadd.f32 %v373, 1.0
    %v375 = vrcp.pop %v374
    %v376 = vmul.f32 1.0, %v375
    %v377 = vtanh.pop %v370
    %379 = vrot.lane.b32.xlu0 %v295, 32
    %v380 = vpop.permute.xlu0 %379
    %v382 = vmul.f32 %v376, %v380
    %384 = vrot.lane.b32.xlu0 %v377, 64
    %v385 = vpop.permute.xlu0 %384
    %v387 = vmul.f32 %v376, %v385
    %389 = vrot.lane.b32.xlu0 %v387, 32
    %v390 = vpop.permute.xlu0 %389
    %v392 = vadd.f32 %v382, %v390
    %v393 = vtanh.pop %v392
    %395 = vrot.lane.b32.xlu0 %v393, 64
    %v396 = vpop.permute.xlu0 %395
    %v398 = vmul.f32 %v376, %v396
    %400 = vrot.lane.b32.xlu0 %v398, 32
    %v401 = vpop.permute.xlu0 %400
    %vm403 = vcmask 254976
    %404 = vst.msk [vmem:[#allocation2] sm:$0x3] %vm403, %v401
    %v405 = vsel %vm296, %v401, 0
    %407 = vmatprep.subr.mxu0 0.0
    %408 = vmatpush1.msra.mxu0 %v290
    %409 = vmatprep.subr.mxu0 0.0
    %410 = vmatpush1.msra.mxu0 %v291
    %411 = vmatprep.subr.mxu0 0.0
    %412 = vmatpush1.msra.mxu0 %v292
    %413 = vmatprep.subr.mxu0 0.0
    %414 = vmatpush1.msra.mxu0 %v293
    %415 = vmatprep.subr.mxu0 0.0
    %416 = vmatpush1.msra.mxu0 0.0
    %417 = vmatprep.subr.mxu0 0.0
    %418 = vmatpush1.msra.mxu0 0.0
    %419 = vmatprep.subr.mxu0 0.0
    %420 = vmatpush1.msra.mxu0 0.0
    %421 = vmatprep.subr.mxu0 0.0
    %422 = vmatpush1.msra.mxu0 0.0
    %423 = vmatprep.subr.mxu0 0.0
    %424 = vmatpush1.msra.mxu0 0.0
    %425 = vmatprep.subr.mxu0 0.0
    %426 = vmatpush1.msra.mxu0 0.0
    %427 = vmatprep.subr.mxu0 0.0
    %428 = vmatpush1.msra.mxu0 0.0
    %429 = vmatprep.subr.mxu0 0.0
    %430 = vmatpush1.msra.mxu0 0.0
    %431 = vmatprep.subr.mxu0 0.0
    %432 = vmatpush1.msra.mxu0 0.0
    %433 = vmatprep.subr.mxu0 0.0
    %434 = vmatpush1.msra.mxu0 0.0
    %435 = vmatprep.subr.mxu0 0.0
    %436 = vmatpush1.msra.mxu0 0.0
    %437 = vmatprep.subr.mxu0 0.0
    %438 = vmatpush1.msra.mxu0 0.0
    %439 = vmatprep.subr.mxu0 0.0
    %440 = vmatpush1.msra.mxu0 0.0
    %441 = vmatprep.subr.mxu0 0.0
    %442 = vmatpush1.msra.mxu0 0.0
    %443 = vmatprep.subr.mxu0 0.0
    %444 = vmatpush1.msra.mxu0 0.0
    %445 = vmatprep.subr.mxu0 0.0
    %446 = vmatpush1.msra.mxu0 0.0
    %447 = vmatprep.subr.mxu0 0.0
    %448 = vmatpush1.msra.mxu0 0.0
    %449 = vmatprep.subr.mxu0 0.0
    %450 = vmatpush1.msra.mxu0 0.0
    %451 = vmatprep.subr.mxu0 0.0
    %452 = vmatpush1.msra.mxu0 0.0
    %453 = vmatprep.subr.mxu0 0.0
    %454 = vmatpush1.msra.mxu0 0.0
    %455 = vmatprep.subr.mxu0 0.0
    %456 = vmatpush1.msra.mxu0 0.0
    %457 = vmatprep.subr.mxu0 0.0
    %458 = vmatpush1.msra.mxu0 0.0
    %459 = vmatprep.subr.mxu0 0.0
    %460 = vmatpush1.msra.mxu0 0.0
    %461 = vmatprep.subr.mxu0 0.0
    %462 = vmatpush1.msra.mxu0 0.0
    %463 = vmatprep.subr.mxu0 0.0
    %464 = vmatpush1.msra.mxu0 0.0
    %465 = vmatprep.subr.mxu0 0.0
    %466 = vmatpush1.msra.mxu0 0.0
    %467 = vmatprep.subr.mxu0 0.0
    %468 = vmatpush1.msra.mxu0 0.0
    %469 = vmatprep.subr.mxu0 0.0
    %470 = vmatpush1.msra.mxu0 0.0
    %471 = vmatprep.mubr.f32.mxu0 0.0
    %472 = vmatmul.mubr.f32.gmra.mrb[0].mxu0 %v405
    %v473 = vpop.f32.mrb[0].mxu0
    %v474 = vadd.f32 0.0, %v473
    %v475 = vpop.f32.mrb[0].mxu0
    %476 = vdwg.mxu0
    %v478 = vrot.slane %v474, 6
    %v480 = vadd.f32 %v282, %v478
    %v481 = vxor.u32 %v480, 2147483648
    %v482 = vmul.f32 %v481, 1.442695
    %v483 = vpow.pop %v482
    %v484 = vadd.f32 %v483, 1.0
    %v485 = vrcp.pop %v484
    %v486 = vmul.f32 1.0, %v485
    %v487 = vtanh.pop %v480
    %v489 = vrot.slane %v392, 6
    %v491 = vmul.f32 %v486, %v489
    %493 = vrot.lane.b32.xlu0 %v487, 64
    %v494 = vpop.permute.xlu0 %493
    %v496 = vmul.f32 %v486, %v494
    %498 = vrot.lane.b32.xlu0 %v496, 32
    %v499 = vpop.permute.xlu0 %498
    %v501 = vadd.f32 %v491, %v499
    %v502 = vtanh.pop %v501
    %504 = vrot.lane.b32.xlu0 %v502, 64
    %v505 = vpop.permute.xlu0 %504
    %v507 = vmul.f32 %v486, %v505
    %509 = vrot.lane.b32.xlu0 %v507, 32
    %v510 = vpop.permute.xlu0 %509
    %vm512 = vcmask 257026
    %513 = vst.msk [vmem:[#allocation2] sm:$0xc] %vm512, %v510
    %v514 = vrot.slane %v507, 2
    %515 = vrot.lane.b32.xlu0 %v514, 32
    %v516 = vpop.permute.xlu0 %515
    %v517 = vsel %vm296, %v516, 0
    %519 = vmatprep.subr.mxu0 0.0
    %520 = vmatpush1.msra.mxu0 %v290
    %521 = vmatprep.subr.mxu0 0.0
    %522 = vmatpush1.msra.mxu0 %v291
    %523 = vmatprep.subr.mxu0 0.0
    %524 = vmatpush1.msra.mxu0 %v292
    %525 = vmatprep.subr.mxu0 0.0
    %526 = vmatpush1.msra.mxu0 %v293
    %527 = vmatprep.subr.mxu0 0.0
    %528 = vmatpush1.msra.mxu0 0.0
    %529 = vmatprep.subr.mxu0 0.0
    %530 = vmatpush1.msra.mxu0 0.0
    %531 = vmatprep.subr.mxu0 0.0
    %532 = vmatpush1.msra.mxu0 0.0
    %533 = vmatprep.subr.mxu0 0.0
    %534 = vmatpush1.msra.mxu0 0.0
    %535 = vmatprep.subr.mxu0 0.0
    %536 = vmatpush1.msra.mxu0 0.0
    %537 = vmatprep.subr.mxu0 0.0
    %538 = vmatpush1.msra.mxu0 0.0
    %539 = vmatprep.subr.mxu0 0.0
    %540 = vmatpush1.msra.mxu0 0.0
    %541 = vmatprep.subr.mxu0 0.0
    %542 = vmatpush1.msra.mxu0 0.0
    %543 = vmatprep.subr.mxu0 0.0
    %544 = vmatpush1.msra.mxu0 0.0
    %545 = vmatprep.subr.mxu0 0.0
    %546 = vmatpush1.msra.mxu0 0.0
    %547 = vmatprep.subr.mxu0 0.0
    %548 = vmatpush1.msra.mxu0 0.0
    %549 = vmatprep.subr.mxu0 0.0
    %550 = vmatpush1.msra.mxu0 0.0
    %551 = vmatprep.subr.mxu0 0.0
    %552 = vmatpush1.msra.mxu0 0.0
    %553 = vmatprep.subr.mxu0 0.0
    %554 = vmatpush1.msra.mxu0 0.0
    %555 = vmatprep.subr.mxu0 0.0
    %556 = vmatpush1.msra.mxu0 0.0
    %557 = vmatprep.subr.mxu0 0.0
    %558 = vmatpush1.msra.mxu0 0.0
    %559 = vmatprep.subr.mxu0 0.0
    %560 = vmatpush1.msra.mxu0 0.0
    %561 = vmatprep.subr.mxu0 0.0
    %562 = vmatpush1.msra.mxu0 0.0
    %563 = vmatprep.subr.mxu0 0.0
    %564 = vmatpush1.msra.mxu0 0.0
    %565 = vmatprep.subr.mxu0 0.0
    %566 = vmatpush1.msra.mxu0 0.0
    %567 = vmatprep.subr.mxu0 0.0
    %568 = vmatpush1.msra.mxu0 0.0
    %569 = vmatprep.subr.mxu0 0.0
    %570 = vmatpush1.msra.mxu0 0.0
    %571 = vmatprep.subr.mxu0 0.0
    %572 = vmatpush1.msra.mxu0 0.0
    %573 = vmatprep.subr.mxu0 0.0
    %574 = vmatpush1.msra.mxu0 0.0
    %575 = vmatprep.subr.mxu0 0.0
    %576 = vmatpush1.msra.mxu0 0.0
    %577 = vmatprep.subr.mxu0 0.0
    %578 = vmatpush1.msra.mxu0 0.0
    %579 = vmatprep.subr.mxu0 0.0
    %580 = vmatpush1.msra.mxu0 0.0
    %581 = vmatprep.subr.mxu0 0.0
    %582 = vmatpush1.msra.mxu0 0.0
    %583 = vmatprep.mubr.f32.mxu0 0.0
    %584 = vmatmul.mubr.f32.gmra.mrb[0].mxu0 %v517
    %v585 = vpop.f32.mrb[0].mxu0
    %v586 = vadd.f32 0.0, %v585
    %v587 = vpop.f32.mrb[0].mxu0
    %588 = vdwg.mxu0
    %v590 = vrot.slane %v586, 4
    %v592 = vadd.f32 %v282, %v590
    %v593 = vxor.u32 %v592, 2147483648
    %v594 = vmul.f32 %v593, 1.442695
    %v595 = vpow.pop %v594
    %v596 = vadd.f32 %v595, 1.0
    %v597 = vrcp.pop %v596
    %v598 = vmul.f32 1.0, %v597
    %v599 = vtanh.pop %v592
    %v601 = vrot.slane %v501, 6
    %v603 = vmul.f32 %v598, %v601
    %605 = vrot.lane.b32.xlu0 %v599, 64
    %v606 = vpop.permute.xlu0 %605
    %v608 = vmul.f32 %v598, %v606
    %610 = vrot.lane.b32.xlu0 %v608, 32
    %v611 = vpop.permute.xlu0 %610
    %v613 = vadd.f32 %v603, %v611
    %v614 = vtanh.pop %v613
    %616 = vrot.lane.b32.xlu0 %v614, 64
    %v617 = vpop.permute.xlu0 %616
    %v619 = vmul.f32 %v598, %v617
    %621 = vrot.lane.b32.xlu0 %v619, 32
    %v622 = vpop.permute.xlu0 %621
    %vm624 = vcmask 259076
    %625 = vst.msk [vmem:[#allocation2] sm:$0x30] %vm624, %v622
    %v626 = vrot.slane %v619, 4
    %627 = vrot.lane.b32.xlu0 %v626, 32
    %v628 = vpop.permute.xlu0 %627
    %v629 = vsel %vm296, %v628, 0
    %631 = vmatprep.subr.mxu0 0.0
    %632 = vmatpush1.msra.mxu0 %v290
    %633 = vmatprep.subr.mxu0 0.0
    %634 = vmatpush1.msra.mxu0 %v291
    %635 = vmatprep.subr.mxu0 0.0
    %636 = vmatpush1.msra.mxu0 %v292
    %637 = vmatprep.subr.mxu0 0.0
    %638 = vmatpush1.msra.mxu0 %v293
    %639 = vmatprep.subr.mxu0 0.0
    %640 = vmatpush1.msra.mxu0 0.0
    %641 = vmatprep.subr.mxu0 0.0
    %642 = vmatpush1.msra.mxu0 0.0
    %643 = vmatprep.subr.mxu0 0.0
    %644 = vmatpush1.msra.mxu0 0.0
    %645 = vmatprep.subr.mxu0 0.0
    %646 = vmatpush1.msra.mxu0 0.0
    %647 = vmatprep.subr.mxu0 0.0
    %648 = vmatpush1.msra.mxu0 0.0
    %649 = vmatprep.subr.mxu0 0.0
    %650 = vmatpush1.msra.mxu0 0.0
    %651 = vmatprep.subr.mxu0 0.0
    %652 = vmatpush1.msra.mxu0 0.0
    %653 = vmatprep.subr.mxu0 0.0
    %654 = vmatpush1.msra.mxu0 0.0
    %655 = vmatprep.subr.mxu0 0.0
    %656 = vmatpush1.msra.mxu0 0.0
    %657 = vmatprep.subr.mxu0 0.0
    %658 = vmatpush1.msra.mxu0 0.0
    %659 = vmatprep.subr.mxu0 0.0
    %660 = vmatpush1.msra.mxu0 0.0
    %661 = vmatprep.subr.mxu0 0.0
    %662 = vmatpush1.msra.mxu0 0.0
    %663 = vmatprep.subr.mxu0 0.0
    %664 = vmatpush1.msra.mxu0 0.0
    %665 = vmatprep.subr.mxu0 0.0
    %666 = vmatpush1.msra.mxu0 0.0
    %667 = vmatprep.subr.mxu0 0.0
    %668 = vmatpush1.msra.mxu0 0.0
    %669 = vmatprep.subr.mxu0 0.0
    %670 = vmatpush1.msra.mxu0 0.0
    %671 = vmatprep.subr.mxu0 0.0
    %672 = vmatpush1.msra.mxu0 0.0
    %673 = vmatprep.subr.mxu0 0.0
    %674 = vmatpush1.msra.mxu0 0.0
    %675 = vmatprep.subr.mxu0 0.0
    %676 = vmatpush1.msra.mxu0 0.0
    %677 = vmatprep.subr.mxu0 0.0
    %678 = vmatpush1.msra.mxu0 0.0
    %679 = vmatprep.subr.mxu0 0.0
    %680 = vmatpush1.msra.mxu0 0.0
    %681 = vmatprep.subr.mxu0 0.0
    %682 = vmatpush1.msra.mxu0 0.0
    %683 = vmatprep.subr.mxu0 0.0
    %684 = vmatpush1.msra.mxu0 0.0
    %685 = vmatprep.subr.mxu0 0.0
    %686 = vmatpush1.msra.mxu0 0.0
    %687 = vmatprep.subr.mxu0 0.0
    %688 = vmatpush1.msra.mxu0 0.0
    %689 = vmatprep.subr.mxu0 0.0
    %690 = vmatpush1.msra.mxu0 0.0
    %691 = vmatprep.subr.mxu0 0.0
    %692 = vmatpush1.msra.mxu0 0.0
    %693 = vmatprep.subr.mxu0 0.0
    %694 = vmatpush1.msra.mxu0 0.0
    %695 = vmatprep.mubr.f32.mxu0 0.0
    %696 = vmatmul.mubr.f32.gmra.mrb[0].mxu0 %v629
    %v697 = vpop.f32.mrb[0].mxu0
    %v698 = vadd.f32 0.0, %v697
    %v699 = vpop.f32.mrb[0].mxu0
    %700 = vdwg.mxu0
    %v702 = vrot.slane %v698, 2
    %v704 = vadd.f32 %v282, %v702
    %v705 = vxor.u32 %v704, 2147483648
    %v706 = vmul.f32 %v705, 1.442695
    %v707 = vpow.pop %v706
    %v708 = vadd.f32 %v707, 1.0
    %v709 = vrcp.pop %v708
    %v710 = vmul.f32 1.0, %v709
    %v711 = vtanh.pop %v704
    %v713 = vrot.slane %v613, 6
    %v715 = vmul.f32 %v710, %v713
    %717 = vrot.lane.b32.xlu0 %v711, 64
    %v718 = vpop.permute.xlu0 %717
    %v720 = vmul.f32 %v710, %v718
    %722 = vrot.lane.b32.xlu0 %v720, 32
    %v723 = vpop.permute.xlu0 %722
    %v725 = vadd.f32 %v715, %v723
    %v726 = vtanh.pop %v725
    %728 = vrot.lane.b32.xlu0 %v726, 64
    %v729 = vpop.permute.xlu0 %728
    %v731 = vmul.f32 %v710, %v729
    %733 = vrot.lane.b32.xlu0 %v731, 32
    %v734 = vpop.permute.xlu0 %733
    %vm736 = vcmask 261126
    %737 = vst.msk [vmem:[#allocation2] sm:$0xc0] %vm736, %v734
    %v738 = vrot.slane %v731, 6
    %739 = vrot.lane.b32.xlu0 %v738, 32
    %v740 = vpop.permute.xlu0 %739
    %v741 = vsel %vm296, %v740, 0
    %743 = vmatprep.subr.mxu0 0.0
    %744 = vmatpush1.msra.mxu0 %v290
    %745 = vmatprep.subr.mxu0 0.0
    %746 = vmatpush1.msra.mxu0 %v291
    %747 = vmatprep.subr.mxu0 0.0
    %748 = vmatpush1.msra.mxu0 %v292
    %749 = vmatprep.subr.mxu0 0.0
    %750 = vmatpush1.msra.mxu0 %v293
    %751 = vmatprep.subr.mxu0 0.0
    %752 = vmatpush1.msra.mxu0 0.0
    %753 = vmatprep.subr.mxu0 0.0
    %754 = vmatpush1.msra.mxu0 0.0
    %755 = vmatprep.subr.mxu0 0.0
    %756 = vmatpush1.msra.mxu0 0.0
    %757 = vmatprep.subr.mxu0 0.0
    %758 = vmatpush1.msra.mxu0 0.0
    %759 = vmatprep.subr.mxu0 0.0
    %760 = vmatpush1.msra.mxu0 0.0
    %761 = vmatprep.subr.mxu0 0.0
    %762 = vmatpush1.msra.mxu0 0.0
    %763 = vmatprep.subr.mxu0 0.0
    %764 = vmatpush1.msra.mxu0 0.0
    %765 = vmatprep.subr.mxu0 0.0
    %766 = vmatpush1.msra.mxu0 0.0
    %767 = vmatprep.subr.mxu0 0.0
    %768 = vmatpush1.msra.mxu0 0.0
    %769 = vmatprep.subr.mxu0 0.0
    %770 = vmatpush1.msra.mxu0 0.0
    %771 = vmatprep.subr.mxu0 0.0
    %772 = vmatpush1.msra.mxu0 0.0
    %773 = vmatprep.subr.mxu0 0.0
    %774 = vmatpush1.msra.mxu0 0.0
    %775 = vmatprep.subr.mxu0 0.0
    %776 = vmatpush1.msra.mxu0 0.0
    %777 = vmatprep.subr.mxu0 0.0
    %778 = vmatpush1.msra.mxu0 0.0
    %779 = vmatprep.subr.mxu0 0.0
    %780 = vmatpush1.msra.mxu0 0.0
    %781 = vmatprep.subr.mxu0 0.0
    %782 = vmatpush1.msra.mxu0 0.0
    %783 = vmatprep.subr.mxu0 0.0
    %784 = vmatpush1.msra.mxu0 0.0
    %785 = vmatprep.subr.mxu0 0.0
    %786 = vmatpush1.msra.mxu0 0.0
    %787 = vmatprep.subr.mxu0 0.0
    %788 = vmatpush1.msra.mxu0 0.0
    %789 = vmatprep.subr.mxu0 0.0
    %790 = vmatpush1.msra.mxu0 0.0
    %791 = vmatprep.subr.mxu0 0.0
    %792 = vmatpush1.msra.mxu0 0.0
    %793 = vmatprep.subr.mxu0 0.0
    %794 = vmatpush1.msra.mxu0 0.0
    %795 = vmatprep.subr.mxu0 0.0
    %796 = vmatpush1.msra.mxu0 0.0
    %797 = vmatprep.subr.mxu0 0.0
    %798 = vmatpush1.msra.mxu0 0.0
    %799 = vmatprep.subr.mxu0 0.0
    %800 = vmatpush1.msra.mxu0 0.0
    %801 = vmatprep.subr.mxu0 0.0
    %802 = vmatpush1.msra.mxu0 0.0
    %803 = vmatprep.subr.mxu0 0.0
    %804 = vmatpush1.msra.mxu0 0.0
    %805 = vmatprep.subr.mxu0 0.0
    %806 = vmatpush1.msra.mxu0 0.0
    %807 = vmatprep.mubr.f32.mxu0 0.0
    %808 = vmatmul.mubr.f32.gmra.mrb[0].mxu0 %v741
    %v809 = vpop.f32.mrb[0].mxu0
    %v810 = vadd.f32 0.0, %v809
    %v811 = vpop.f32.mrb[0].mxu0
    %812 = vdwg.mxu0
    %v813 = vadd.f32 %v287, %v810
    %v814 = vxor.u32 %v813, 2147483648
    %v815 = vmul.f32 %v814, 1.442695
    %v816 = vpow.pop %v815
    %v817 = vadd.f32 %v816, 1.0
    %v818 = vrcp.pop %v817
    %v819 = vmul.f32 1.0, %v818
    %v820 = vtanh.pop %v813
    %v822 = vrot.slane %v725, 6
    %v824 = vmul.f32 %v819, %v822
    %826 = vrot.lane.b32.xlu0 %v820, 64
    %v827 = vpop.permute.xlu0 %826
    %v829 = vmul.f32 %v819, %v827
    %831 = vrot.lane.b32.xlu0 %v829, 32
    %v832 = vpop.permute.xlu0 %831
    %v834 = vadd.f32 %v824, %v832
    %v835 = vtanh.pop %v834
    %837 = vrot.lane.b32.xlu0 %v835, 64
    %v838 = vpop.permute.xlu0 %837
    %v840 = vmul.f32 %v819, %v838
    %842 = vrot.lane.b32.xlu0 %v840, 32
    %v843 = vpop.permute.xlu0 %842
    %845 = vst.msk [vmem:[#allocation2 + $0x8] sm:$0x3] %vm403, %v843
    %v846 = vsel %vm296, %v843, 0
    %848 = vmatprep.subr.mxu0 0.0
    %849 = vmatpush1.msra.mxu0 %v290
    %850 = vmatprep.subr.mxu0 0.0
    %851 = vmatpush1.msra.mxu0 %v291
    %852 = vmatprep.subr.mxu0 0.0
    %853 = vmatpush1.msra.mxu0 %v292
    %854 = vmatprep.subr.mxu0 0.0
    %855 = vmatpush1.msra.mxu0 %v293
    %856 = vmatprep.subr.mxu0 0.0
    %857 = vmatpush1.msra.mxu0 0.0
    %858 = vmatprep.subr.mxu0 0.0
    %859 = vmatpush1.msra.mxu0 0.0
    %860 = vmatprep.subr.mxu0 0.0
    %861 = vmatpush1.msra.mxu0 0.0
    %862 = vmatprep.subr.mxu0 0.0
    %863 = vmatpush1.msra.mxu0 0.0
    %864 = vmatprep.subr.mxu0 0.0
    %865 = vmatpush1.msra.mxu0 0.0
    %866 = vmatprep.subr.mxu0 0.0
    %867 = vmatpush1.msra.mxu0 0.0
    %868 = vmatprep.subr.mxu0 0.0
    %869 = vmatpush1.msra.mxu0 0.0
    %870 = vmatprep.subr.mxu0 0.0
    %871 = vmatpush1.msra.mxu0 0.0
    %872 = vmatprep.subr.mxu0 0.0
    %873 = vmatpush1.msra.mxu0 0.0
    %874 = vmatprep.subr.mxu0 0.0
    %875 = vmatpush1.msra.mxu0 0.0
    %876 = vmatprep.subr.mxu0 0.0
    %877 = vmatpush1.msra.mxu0 0.0
    %878 = vmatprep.subr.mxu0 0.0
    %879 = vmatpush1.msra.mxu0 0.0
    %880 = vmatprep.subr.mxu0 0.0
    %881 = vmatpush1.msra.mxu0 0.0
    %882 = vmatprep.subr.mxu0 0.0
    %883 = vmatpush1.msra.mxu0 0.0
    %884 = vmatprep.subr.mxu0 0.0
    %885 = vmatpush1.msra.mxu0 0.0
    %886 = vmatprep.subr.mxu0 0.0
    %887 = vmatpush1.msra.mxu0 0.0
    %888 = vmatprep.subr.mxu0 0.0
    %889 = vmatpush1.msra.mxu0 0.0
    %890 = vmatprep.subr.mxu0 0.0
    %891 = vmatpush1.msra.mxu0 0.0
    %892 = vmatprep.subr.mxu0 0.0
    %893 = vmatpush1.msra.mxu0 0.0
    %894 = vmatprep.subr.mxu0 0.0
    %895 = vmatpush1.msra.mxu0 0.0
    %896 = vmatprep.subr.mxu0 0.0
    %897 = vmatpush1.msra.mxu0 0.0
    %898 = vmatprep.subr.mxu0 0.0
    %899 = vmatpush1.msra.mxu0 0.0
    %900 = vmatprep.subr.mxu0 0.0
    %901 = vmatpush1.msra.mxu0 0.0
    %902 = vmatprep.subr.mxu0 0.0
    %903 = vmatpush1.msra.mxu0 0.0
    %904 = vmatprep.subr.mxu0 0.0
    %905 = vmatpush1.msra.mxu0 0.0
    %906 = vmatprep.subr.mxu0 0.0
    %907 = vmatpush1.msra.mxu0 0.0
    %908 = vmatprep.subr.mxu0 0.0
    %909 = vmatpush1.msra.mxu0 0.0
    %910 = vmatprep.subr.mxu0 0.0
    %911 = vmatpush1.msra.mxu0 0.0
    %912 = vmatprep.mubr.f32.mxu0 0.0
    %913 = vmatmul.mubr.f32.gmra.mrb[0].mxu0 %v846
    %v914 = vpop.f32.mrb[0].mxu0
    %v915 = vadd.f32 0.0, %v914
    %v916 = vpop.f32.mrb[0].mxu0
    %917 = vdwg.mxu0
    %v919 = vrot.slane %v915, 6
    %v921 = vadd.f32 %v287, %v919
    %v922 = vxor.u32 %v921, 2147483648
    %v923 = vmul.f32 %v922, 1.442695
    %v924 = vpow.pop %v923
    %v925 = vadd.f32 %v924, 1.0
    %v926 = vrcp.pop %v925
    %v927 = vmul.f32 1.0, %v926
    %v928 = vtanh.pop %v921
    %v930 = vrot.slane %v834, 6
    %v932 = vmul.f32 %v927, %v930
    %934 = vrot.lane.b32.xlu0 %v928, 64
    %v935 = vpop.permute.xlu0 %934
    %v937 = vmul.f32 %v927, %v935
    %939 = vrot.lane.b32.xlu0 %v937, 32
    %v940 = vpop.permute.xlu0 %939
    %v942 = vadd.f32 %v932, %v940
    %v943 = vtanh.pop %v942
    %945 = vrot.lane.b32.xlu0 %v943, 64
    %v946 = vpop.permute.xlu0 %945
    %v948 = vmul.f32 %v927, %v946
    %950 = vrot.lane.b32.xlu0 %v948, 32
    %v951 = vpop.permute.xlu0 %950
    %953 = vst.msk [vmem:[#allocation2 + $0x8] sm:$0xc] %vm512, %v951
    %v954 = vrot.slane %v948, 2
    %955 = vrot.lane.b32.xlu0 %v954, 32
    %v956 = vpop.permute.xlu0 %955
    %v957 = vsel %vm296, %v956, 0
    %959 = vmatprep.subr.mxu0 0.0
    %960 = vmatpush1.msra.mxu0 %v290
    %961 = vmatprep.subr.mxu0 0.0
    %962 = vmatpush1.msra.mxu0 %v291
    %963 = vmatprep.subr.mxu0 0.0
    %964 = vmatpush1.msra.mxu0 %v292
    %965 = vmatprep.subr.mxu0 0.0
    %966 = vmatpush1.msra.mxu0 %v293
    %967 = vmatprep.subr.mxu0 0.0
    %968 = vmatpush1.msra.mxu0 0.0
    %969 = vmatprep.subr.mxu0 0.0
    %970 = vmatpush1.msra.mxu0 0.0
    %971 = vmatprep.subr.mxu0 0.0
    %972 = vmatpush1.msra.mxu0 0.0
    %973 = vmatprep.subr.mxu0 0.0
    %974 = vmatpush1.msra.mxu0 0.0
    %975 = vmatprep.subr.mxu0 0.0
    %976 = vmatpush1.msra.mxu0 0.0
    %977 = vmatprep.subr.mxu0 0.0
    %978 = vmatpush1.msra.mxu0 0.0
    %979 = vmatprep.subr.mxu0 0.0
    %980 = vmatpush1.msra.mxu0 0.0
    %981 = vmatprep.subr.mxu0 0.0
    %982 = vmatpush1.msra.mxu0 0.0
    %983 = vmatprep.subr.mxu0 0.0
    %984 = vmatpush1.msra.mxu0 0.0
    %985 = vmatprep.subr.mxu0 0.0
    %986 = vmatpush1.msra.mxu0 0.0
    %987 = vmatprep.subr.mxu0 0.0
    %988 = vmatpush1.msra.mxu0 0.0
    %989 = vmatprep.subr.mxu0 0.0
    %990 = vmatpush1.msra.mxu0 0.0
    %991 = vmatprep.subr.mxu0 0.0
    %992 = vmatpush1.msra.mxu0 0.0
    %993 = vmatprep.subr.mxu0 0.0
    %994 = vmatpush1.msra.mxu0 0.0
    %995 = vmatprep.subr.mxu0 0.0
    %996 = vmatpush1.msra.mxu0 0.0
    %997 = vmatprep.subr.mxu0 0.0
    %998 = vmatpush1.msra.mxu0 0.0
    %999 = vmatprep.subr.mxu0 0.0
    %1000 = vmatpush1.msra.mxu0 0.0
    %1001 = vmatprep.subr.mxu0 0.0
    %1002 = vmatpush1.msra.mxu0 0.0
    %1003 = vmatprep.subr.mxu0 0.0
    %1004 = vmatpush1.msra.mxu0 0.0
    %1005 = vmatprep.subr.mxu0 0.0
    %1006 = vmatpush1.msra.mxu0 0.0
    %1007 = vmatprep.subr.mxu0 0.0
    %1008 = vmatpush1.msra.mxu0 0.0
    %1009 = vmatprep.subr.mxu0 0.0
    %1010 = vmatpush1.msra.mxu0 0.0
    %1011 = vmatprep.subr.mxu0 0.0
    %1012 = vmatpush1.msra.mxu0 0.0
    %1013 = vmatprep.subr.mxu0 0.0
    %1014 = vmatpush1.msra.mxu0 0.0
    %1015 = vmatprep.subr.mxu0 0.0
    %1016 = vmatpush1.msra.mxu0 0.0
    %1017 = vmatprep.subr.mxu0 0.0
    %1018 = vmatpush1.msra.mxu0 0.0
    %1019 = vmatprep.subr.mxu0 0.0
    %1020 = vmatpush1.msra.mxu0 0.0
    %1021 = vmatprep.subr.mxu0 0.0
    %1022 = vmatpush1.msra.mxu0 0.0
    %1023 = vmatprep.mubr.f32.mxu0 0.0
    %1024 = vmatmul.mubr.f32.gmra.mrb[0].mxu0 %v957
    %v1025 = vpop.f32.mrb[0].mxu0
    %v1026 = vadd.f32 0.0, %v1025
    %v1027 = vpop.f32.mrb[0].mxu0
    %1028 = vdwg.mxu0
    %v1030 = vrot.slane %v1026, 4
    %v1032 = vadd.f32 %v287, %v1030
    %v1033 = vxor.u32 %v1032, 2147483648
    %v1034 = vmul.f32 %v1033, 1.442695
    %v1035 = vpow.pop %v1034
    %v1036 = vadd.f32 %v1035, 1.0
    %v1037 = vrcp.pop %v1036
    %v1038 = vmul.f32 1.0, %v1037
    %v1039 = vtanh.pop %v1032
    %v1041 = vrot.slane %v942, 6
    %v1043 = vmul.f32 %v1038, %v1041
    %1045 = vrot.lane.b32.xlu0 %v1039, 64
    %v1046 = vpop.permute.xlu0 %1045
    %v1048 = vmul.f32 %v1038, %v1046
    %1050 = vrot.lane.b32.xlu0 %v1048, 32
    %v1051 = vpop.permute.xlu0 %1050
    %v1053 = vadd.f32 %v1043, %v1051
    %v1054 = vtanh.pop %v1053
    %1056 = vrot.lane.b32.xlu0 %v1054, 64
    %v1057 = vpop.permute.xlu0 %1056
    %v1059 = vmul.f32 %v1038, %v1057
    %1061 = vrot.lane.b32.xlu0 %v1059, 32
    %v1062 = vpop.permute.xlu0 %1061
    %1064 = vst.msk [vmem:[#allocation2 + $0x8] sm:$0x30] %vm624, %v1062
    %v1065 = vrot.slane %v1059, 4
    %1066 = vrot.lane.b32.xlu0 %v1065, 32
    %v1067 = vpop.permute.xlu0 %1066
    %v1068 = vsel %vm296, %v1067, 0
    %1070 = vmatprep.subr.mxu0 0.0
    %1071 = vmatpush1.msra.mxu0 %v290
    %1072 = vmatprep.subr.mxu0 0.0
    %1073 = vmatpush1.msra.mxu0 %v291
    %1074 = vmatprep.subr.mxu0 0.0
    %1075 = vmatpush1.msra.mxu0 %v292
    %1076 = vmatprep.subr.mxu0 0.0
    %1077 = vmatpush1.msra.mxu0 %v293
    %1078 = vmatprep.subr.mxu0 0.0
    %1079 = vmatpush1.msra.mxu0 0.0
    %1080 = vmatprep.subr.mxu0 0.0
    %1081 = vmatpush1.msra.mxu0 0.0
    %1082 = vmatprep.subr.mxu0 0.0
    %1083 = vmatpush1.msra.mxu0 0.0
    %1084 = vmatprep.subr.mxu0 0.0
    %1085 = vmatpush1.msra.mxu0 0.0
    %1086 = vmatprep.subr.mxu0 0.0
    %1087 = vmatpush1.msra.mxu0 0.0
    %1088 = vmatprep.subr.mxu0 0.0
    %1089 = vmatpush1.msra.mxu0 0.0
    %1090 = vmatprep.subr.mxu0 0.0
    %1091 = vmatpush1.msra.mxu0 0.0
    %1092 = vmatprep.subr.mxu0 0.0
    %1093 = vmatpush1.msra.mxu0 0.0
    %1094 = vmatprep.subr.mxu0 0.0
    %1095 = vmatpush1.msra.mxu0 0.0
    %1096 = vmatprep.subr.mxu0 0.0
    %1097 = vmatpush1.msra.mxu0 0.0
    %1098 = vmatprep.subr.mxu0 0.0
    %1099 = vmatpush1.msra.mxu0 0.0
    %1100 = vmatprep.subr.mxu0 0.0
    %1101 = vmatpush1.msra.mxu0 0.0
    %1102 = vmatprep.subr.mxu0 0.0
    %1103 = vmatpush1.msra.mxu0 0.0
    %1104 = vmatprep.subr.mxu0 0.0
    %1105 = vmatpush1.msra.mxu0 0.0
    %1106 = vmatprep.subr.mxu0 0.0
    %1107 = vmatpush1.msra.mxu0 0.0
    %1108 = vmatprep.subr.mxu0 0.0
    %1109 = vmatpush1.msra.mxu0 0.0
    %1110 = vmatprep.subr.mxu0 0.0
    %1111 = vmatpush1.msra.mxu0 0.0
    %1112 = vmatprep.subr.mxu0 0.0
    %1113 = vmatpush1.msra.mxu0 0.0
    %1114 = vmatprep.subr.mxu0 0.0
    %1115 = vmatpush1.msra.mxu0 0.0
    %1116 = vmatprep.subr.mxu0 0.0
    %1117 = vmatpush1.msra.mxu0 0.0
    %1118 = vmatprep.subr.mxu0 0.0
    %1119 = vmatpush1.msra.mxu0 0.0
    %1120 = vmatprep.subr.mxu0 0.0
    %1121 = vmatpush1.msra.mxu0 0.0
    %1122 = vmatprep.subr.mxu0 0.0
    %1123 = vmatpush1.msra.mxu0 0.0
    %1124 = vmatprep.subr.mxu0 0.0
    %1125 = vmatpush1.msra.mxu0 0.0
    %1126 = vmatprep.subr.mxu0 0.0
    %1127 = vmatpush1.msra.mxu0 0.0
    %1128 = vmatprep.subr.mxu0 0.0
    %1129 = vmatpush1.msra.mxu0 0.0
    %1130 = vmatprep.subr.mxu0 0.0
    %1131 = vmatpush1.msra.mxu0 0.0
    %1132 = vmatprep.subr.mxu0 0.0
    %1133 = vmatpush1.msra.mxu0 0.0
    %1134 = vmatprep.mubr.f32.mxu0 0.0
    %1135 = vmatmul.mubr.f32.gmra.mrb[0].mxu0 %v1068
    %v1136 = vpop.f32.mrb[0].mxu0
    %v1137 = vadd.f32 0.0, %v1136
    %v1138 = vpop.f32.mrb[0].mxu0
    %1139 = vdwg.mxu0
    %v1141 = vrot.slane %v1137, 2
    %v1143 = vadd.f32 %v287, %v1141
    %v1144 = vxor.u32 %v1143, 2147483648
    %v1145 = vmul.f32 %v1144, 1.442695
    %v1146 = vpow.pop %v1145
    %v1147 = vadd.f32 %v1146, 1.0
    %v1148 = vrcp.pop %v1147
    %v1149 = vmul.f32 1.0, %v1148
    %v1150 = vtanh.pop %v1143
    %v1152 = vrot.slane %v1053, 6
    %v1154 = vmul.f32 %v1149, %v1152
    %1156 = vrot.lane.b32.xlu0 %v1150, 64
    %v1157 = vpop.permute.xlu0 %1156
    %v1159 = vmul.f32 %v1149, %v1157
    %1161 = vrot.lane.b32.xlu0 %v1159, 32
    %v1162 = vpop.permute.xlu0 %1161
    %v1164 = vadd.f32 %v1154, %v1162
    %v1165 = vtanh.pop %v1164
    %1167 = vrot.lane.b32.xlu0 %v1165, 64
    %v1168 = vpop.permute.xlu0 %1167
    %v1170 = vmul.f32 %v1149, %v1168
    %1172 = vrot.lane.b32.xlu0 %v1170, 32
    %v1173 = vpop.permute.xlu0 %1172
    %1175 = vst.msk [vmem:[#allocation2 + $0x8] sm:$0xc0] %vm736, %v1173
    %v1176 = vld [vmem:[#allocation2] sm:$0xff]
    %v1177 = vld [vmem:[#allocation2 + $0x8] sm:$0xff]
    %v1178 = vld [vmem:[%s6] sm:$0xff]
    %v1179 = vld [vmem:[%s6 + $0x8] sm:$0xff]
    %v1180 = vld [vmem:[%s6 + $0x10] sm:$0xff]
    %v1181 = vld [vmem:[%s6 + $0x18] sm:$0xff]
    %v1182 = vld [vmem:[#allocation12] sm:$0x1]
    %v1184 = vlaneseq
    %v1185 = vshrl.u32 %v1184, 7
    %v1186 = vsub.s32 0, %v1185
    %v1187 = vrot.slane %v1182, %v1186
    %v1190 = vsel %vm296, %v1176, 0
    %v1193 = vsel %vm296, %v1177, 0
    %1195 = vmatprep.subr.mxu0 0.0
    %1196 = vmatpush1.msra.mxu0 %v1178
    %1197 = vmatprep.subr.mxu0 0.0
    %1198 = vmatpush1.msra.mxu0 %v1179
    %1199 = vmatprep.subr.mxu0 0.0
    %1200 = vmatpush1.msra.mxu0 %v1180
    %1201 = vmatprep.subr.mxu0 0.0
    %1202 = vmatpush1.msra.mxu0 %v1181
    %1203 = vmatprep.subr.mxu0 0.0
    %1204 = vmatpush1.msra.mxu0 0.0
    %1205 = vmatprep.subr.mxu0 0.0
    %1206 = vmatpush1.msra.mxu0 0.0
    %1207 = vmatprep.subr.mxu0 0.0
    %1208 = vmatpush1.msra.mxu0 0.0
    %1209 = vmatprep.subr.mxu0 0.0
    %1210 = vmatpush1.msra.mxu0 0.0
    %1211 = vmatprep.subr.mxu0 0.0
    %1212 = vmatpush1.msra.mxu0 0.0
    %1213 = vmatprep.subr.mxu0 0.0
    %1214 = vmatpush1.msra.mxu0 0.0
    %1215 = vmatprep.subr.mxu0 0.0
    %1216 = vmatpush1.msra.mxu0 0.0
    %1217 = vmatprep.subr.mxu0 0.0
    %1218 = vmatpush1.msra.mxu0 0.0
    %1219 = vmatprep.subr.mxu0 0.0
    %1220 = vmatpush1.msra.mxu0 0.0
    %1221 = vmatprep.subr.mxu0 0.0
    %1222 = vmatpush1.msra.mxu0 0.0
    %1223 = vmatprep.subr.mxu0 0.0
    %1224 = vmatpush1.msra.mxu0 0.0
    %1225 = vmatprep.subr.mxu0 0.0
    %1226 = vmatpush1.msra.mxu0 0.0
    %1227 = vmatprep.subr.mxu0 0.0
    %1228 = vmatpush1.msra.mxu0 0.0
    %1229 = vmatprep.subr.mxu0 0.0
    %1230 = vmatpush1.msra.mxu0 0.0
    %1231 = vmatprep.subr.mxu0 0.0
    %1232 = vmatpush1.msra.mxu0 0.0
    %1233 = vmatprep.subr.mxu0 0.0
    %1234 = vmatpush1.msra.mxu0 0.0
    %1235 = vmatprep.subr.mxu0 0.0
    %1236 = vmatpush1.msra.mxu0 0.0
    %1237 = vmatprep.subr.mxu0 0.0
    %1238 = vmatpush1.msra.mxu0 0.0
    %1239 = vmatprep.subr.mxu0 0.0
    %1240 = vmatpush1.msra.mxu0 0.0
    %1241 = vmatprep.subr.mxu0 0.0
    %1242 = vmatpush1.msra.mxu0 0.0
    %1243 = vmatprep.subr.mxu0 0.0
    %1244 = vmatpush1.msra.mxu0 0.0
    %1245 = vmatprep.subr.mxu0 0.0
    %1246 = vmatpush1.msra.mxu0 0.0
    %1247 = vmatprep.subr.mxu0 0.0
    %1248 = vmatpush1.msra.mxu0 0.0
    %1249 = vmatprep.subr.mxu0 0.0
    %1250 = vmatpush1.msra.mxu0 0.0
    %1251 = vmatprep.subr.mxu0 0.0
    %1252 = vmatpush1.msra.mxu0 0.0
    %1253 = vmatprep.subr.mxu0 0.0
    %1254 = vmatpush1.msra.mxu0 0.0
    %1255 = vmatprep.subr.mxu0 0.0
    %1256 = vmatpush1.msra.mxu0 0.0
    %1257 = vmatprep.subr.mxu0 0.0
    %1258 = vmatpush1.msra.mxu0 0.0
    %1259 = vmatprep.mubr.f32.mxu0 0.0
    %1260 = vmatmul.mubr.f32.gmra.mrb[0].mxu0 %v1190
    %v1261 = vpop.f32.mrb[0].mxu0
    %v1262 = vadd.f32 %v1187, %v1261
    %v1263 = vpop.f32.mrb[0].mxu0
    %1264 = vmatprep.mubr.f32.mxu0 0.0
    %1265 = vmatmul.mubr.f32.gmra.mrb[0].mxu0 %v1193
    %v1266 = vpop.f32.mrb[0].mxu0
    %v1267 = vadd.f32 %v1187, %v1266
    %v1268 = vpop.f32.mrb[0].mxu0
    %1269 = vdwg.mxu0
    %v1270 = vld [vmem:[#allocation10] sm:$0xff]
    %v1271 = vld [vmem:[#allocation10 + $0x8] sm:$0xff]
    %v1272 = vld [vmem:[#allocation10 + $0x10] sm:$0xff]
    %v1273 = vld [vmem:[#allocation10 + $0x18] sm:$0xff]
    %s1274 = scalar_lea.vmem [#allocation5], 2
    %v1275 = vld [vmem:[%s1274] sm:$0x3]
    %s1276 = scalar_lea.vmem [#allocation7], 2
    %v1277 = vld [vmem:[%s1276] sm:$0x3]
    %v1279 = vsel %vm296, %v1275, 0
    %1281 = vmatprep.subr.mxu0 0.0
    %1282 = vmatpush1.msra.mxu0 %v1270
    %1283 = vmatprep.subr.mxu0 0.0
    %1284 = vmatpush1.msra.mxu0 %v1271
    %1285 = vmatprep.subr.mxu0 0.0
    %1286 = vmatpush1.msra.mxu0 %v1272
    %1287 = vmatprep.subr.mxu0 0.0
    %1288 = vmatpush1.msra.mxu0 %v1273
    %1289 = vmatprep.subr.mxu0 0.0
    %1290 = vmatpush1.msra.mxu0 0.0
    %1291 = vmatprep.subr.mxu0 0.0
    %1292 = vmatpush1.msra.mxu0 0.0
    %1293 = vmatprep.subr.mxu0 0.0
    %1294 = vmatpush1.msra.mxu0 0.0
    %1295 = vmatprep.subr.mxu0 0.0
    %1296 = vmatpush1.msra.mxu0 0.0
    %1297 = vmatprep.subr.mxu0 0.0
    %1298 = vmatpush1.msra.mxu0 0.0
    %1299 = vmatprep.subr.mxu0 0.0
    %1300 = vmatpush1.msra.mxu0 0.0
    %1301 = vmatprep.subr.mxu0 0.0
    %1302 = vmatpush1.msra.mxu0 0.0
    %1303 = vmatprep.subr.mxu0 0.0
    %1304 = vmatpush1.msra.mxu0 0.0
    %1305 = vmatprep.subr.mxu0 0.0
    %1306 = vmatpush1.msra.mxu0 0.0
    %1307 = vmatprep.subr.mxu0 0.0
    %1308 = vmatpush1.msra.mxu0 0.0
    %1309 = vmatprep.subr.mxu0 0.0
    %1310 = vmatpush1.msra.mxu0 0.0
    %1311 = vmatprep.subr.mxu0 0.0
    %1312 = vmatpush1.msra.mxu0 0.0
    %1313 = vmatprep.subr.mxu0 0.0
    %1314 = vmatpush1.msra.mxu0 0.0
    %1315 = vmatprep.subr.mxu0 0.0
    %1316 = vmatpush1.msra.mxu0 0.0
    %1317 = vmatprep.subr.mxu0 0.0
    %1318 = vmatpush1.msra.mxu0 0.0
    %1319 = vmatprep.subr.mxu0 0.0
    %1320 = vmatpush1.msra.mxu0 0.0
    %1321 = vmatprep.subr.mxu0 0.0
    %1322 = vmatpush1.msra.mxu0 0.0
    %1323 = vmatprep.subr.mxu0 0.0
    %1324 = vmatpush1.msra.mxu0 0.0
    %1325 = vmatprep.subr.mxu0 0.0
    %1326 = vmatpush1.msra.mxu0 0.0
    %1327 = vmatprep.subr.mxu0 0.0
    %1328 = vmatpush1.msra.mxu0 0.0
    %1329 = vmatprep.subr.mxu0 0.0
    %1330 = vmatpush1.msra.mxu0 0.0
    %1331 = vmatprep.subr.mxu0 0.0
    %1332 = vmatpush1.msra.mxu0 0.0
    %1333 = vmatprep.subr.mxu0 0.0
    %1334 = vmatpush1.msra.mxu0 0.0
    %1335 = vmatprep.subr.mxu0 0.0
    %1336 = vmatpush1.msra.mxu0 0.0
    %1337 = vmatprep.subr.mxu0 0.0
    %1338 = vmatpush1.msra.mxu0 0.0
    %1339 = vmatprep.subr.mxu0 0.0
    %1340 = vmatpush1.msra.mxu0 0.0
    %1341 = vmatprep.subr.mxu0 0.0
    %1342 = vmatpush1.msra.mxu0 0.0
    %1343 = vmatprep.subr.mxu0 0.0
    %1344 = vmatpush1.msra.mxu0 0.0
    %1345 = vmatprep.mubr.f32.mxu0 0.0
    %1346 = vmatmul.mubr.f32.gmra.mrb[0].mxu0 %v1279
    %v1347 = vpop.f32.mrb[0].mxu0
    %v1348 = vadd.f32 0.0, %v1347
    %v1349 = vpop.f32.mrb[0].mxu0
    %1350 = vdwg.mxu0
    %v1351 = vadd.f32 %v1262, %v1348
    %v1352 = vxor.u32 %v1351, 2147483648
    %v1353 = vmul.f32 %v1352, 1.442695
    %v1354 = vpow.pop %v1353
    %v1355 = vadd.f32 %v1354, 1.0
    %v1356 = vrcp.pop %v1355
    %v1357 = vmul.f32 1.0, %v1356
    %v1358 = vtanh.pop %v1351
    %1360 = vrot.lane.b32.xlu0 %v1277, 32
    %v1361 = vpop.permute.xlu0 %1360
    %v1363 = vmul.f32 %v1357, %v1361
    %1365 = vrot.lane.b32.xlu0 %v1358, 64
    %v1366 = vpop.permute.xlu0 %1365
    %v1368 = vmul.f32 %v1357, %v1366
    %1370 = vrot.lane.b32.xlu0 %v1368, 32
    %v1371 = vpop.permute.xlu0 %1370
    %v1373 = vadd.f32 %v1363, %v1371
    %v1374 = vtanh.pop %v1373
    %1376 = vrot.lane.b32.xlu0 %v1374, 64
    %v1377 = vpop.permute.xlu0 %1376
    %v1379 = vmul.f32 %v1357, %v1377
    %1381 = vrot.lane.b32.xlu0 %v1379, 32
    %v1382 = vpop.permute.xlu0 %1381
    %1384 = vst.msk [vmem:[#allocation3] sm:$0x3] %vm403, %v1382
    %v1385 = vsel %vm296, %v1382, 0
    %1387 = vmatprep.subr.mxu0 0.0
    %1388 = vmatpush1.msra.mxu0 %v1270
    %1389 = vmatprep.subr.mxu0 0.0
    %1390 = vmatpush1.msra.mxu0 %v1271
    %1391 = vmatprep.subr.mxu0 0.0
    %1392 = vmatpush1.msra.mxu0 %v1272
    %1393 = vmatprep.subr.mxu0 0.0
    %1394 = vmatpush1.msra.mxu0 %v1273
    %1395 = vmatprep.subr.mxu0 0.0
    %1396 = vmatpush1.msra.mxu0 0.0
    %1397 = vmatprep.subr.mxu0 0.0
    %1398 = vmatpush1.msra.mxu0 0.0
    %1399 = vmatprep.subr.mxu0 0.0
    %1400 = vmatpush1.msra.mxu0 0.0
    %1401 = vmatprep.subr.mxu0 0.0
    %1402 = vmatpush1.msra.mxu0 0.0
    %1403 = vmatprep.subr.mxu0 0.0
    %1404 = vmatpush1.msra.mxu0 0.0
    %1405 = vmatprep.subr.mxu0 0.0
    %1406 = vmatpush1.msra.mxu0 0.0
    %1407 = vmatprep.subr.mxu0 0.0
    %1408 = vmatpush1.msra.mxu0 0.0
    %1409 = vmatprep.subr.mxu0 0.0
    %1410 = vmatpush1.msra.mxu0 0.0
    %1411 = vmatprep.subr.mxu0 0.0
    %1412 = vmatpush1.msra.mxu0 0.0
    %1413 = vmatprep.subr.mxu0 0.0
    %1414 = vmatpush1.msra.mxu0 0.0
    %1415 = vmatprep.subr.mxu0 0.0
    %1416 = vmatpush1.msra.mxu0 0.0
    %1417 = vmatprep.subr.mxu0 0.0
    %1418 = vmatpush1.msra.mxu0 0.0
    %1419 = vmatprep.subr.mxu0 0.0
    %1420 = vmatpush1.msra.mxu0 0.0
    %1421 = vmatprep.subr.mxu0 0.0
    %1422 = vmatpush1.msra.mxu0 0.0
    %1423 = vmatprep.subr.mxu0 0.0
    %1424 = vmatpush1.msra.mxu0 0.0
    %1425 = vmatprep.subr.mxu0 0.0
    %1426 = vmatpush1.msra.mxu0 0.0
    %1427 = vmatprep.subr.mxu0 0.0
    %1428 = vmatpush1.msra.mxu0 0.0
    %1429 = vmatprep.subr.mxu0 0.0
    %1430 = vmatpush1.msra.mxu0 0.0
    %1431 = vmatprep.subr.mxu0 0.0
    %1432 = vmatpush1.msra.mxu0 0.0
    %1433 = vmatprep.subr.mxu0 0.0
    %1434 = vmatpush1.msra.mxu0 0.0
    %1435 = vmatprep.subr.mxu0 0.0
    %1436 = vmatpush1.msra.mxu0 0.0
    %1437 = vmatprep.subr.mxu0 0.0
    %1438 = vmatpush1.msra.mxu0 0.0
    %1439 = vmatprep.subr.mxu0 0.0
    %1440 = vmatpush1.msra.mxu0 0.0
    %1441 = vmatprep.subr.mxu0 0.0
    %1442 = vmatpush1.msra.mxu0 0.0
    %1443 = vmatprep.subr.mxu0 0.0
    %1444 = vmatpush1.msra.mxu0 0.0
    %1445 = vmatprep.subr.mxu0 0.0
    %1446 = vmatpush1.msra.mxu0 0.0
    %1447 = vmatprep.subr.mxu0 0.0
    %1448 = vmatpush1.msra.mxu0 0.0
    %1449 = vmatprep.subr.mxu0 0.0
    %1450 = vmatpush1.msra.mxu0 0.0
    %1451 = vmatprep.mubr.f32.mxu0 0.0
    %1452 = vmatmul.mubr.f32.gmra.mrb[0].mxu0 %v1385
    %v1453 = vpop.f32.mrb[0].mxu0
    %v1454 = vadd.f32 0.0, %v1453
    %v1455 = vpop.f32.mrb[0].mxu0
    %1456 = vdwg.mxu0
    %v1458 = vrot.slane %v1454, 6
    %v1460 = vadd.f32 %v1262, %v1458
    %v1461 = vxor.u32 %v1460, 2147483648
    %v1462 = vmul.f32 %v1461, 1.442695
    %v1463 = vpow.pop %v1462
    %v1464 = vadd.f32 %v1463, 1.0
    %v1465 = vrcp.pop %v1464
    %v1466 = vmul.f32 1.0, %v1465
    %v1467 = vtanh.pop %v1460
    %v1469 = vrot.slane %v1373, 6
    %v1471 = vmul.f32 %v1466, %v1469
    %1473 = vrot.lane.b32.xlu0 %v1467, 64
    %v1474 = vpop.permute.xlu0 %1473
    %v1476 = vmul.f32 %v1466, %v1474
    %1478 = vrot.lane.b32.xlu0 %v1476, 32
    %v1479 = vpop.permute.xlu0 %1478
    %v1481 = vadd.f32 %v1471, %v1479
    %v1482 = vtanh.pop %v1481
    %1484 = vrot.lane.b32.xlu0 %v1482, 64
    %v1485 = vpop.permute.xlu0 %1484
    %v1487 = vmul.f32 %v1466, %v1485
    %1489 = vrot.lane.b32.xlu0 %v1487, 32
    %v1490 = vpop.permute.xlu0 %1489
    %1492 = vst.msk [vmem:[#allocation3] sm:$0xc] %vm512, %v1490
    %v1493 = vrot.slane %v1487, 2
    %1494 = vrot.lane.b32.xlu0 %v1493, 32
    %v1495 = vpop.permute.xlu0 %1494
    %v1496 = vsel %vm296, %v1495, 0
    %1498 = vmatprep.subr.mxu0 0.0
    %1499 = vmatpush1.msra.mxu0 %v1270
    %1500 = vmatprep.subr.mxu0 0.0
    %1501 = vmatpush1.msra.mxu0 %v1271
    %1502 = vmatprep.subr.mxu0 0.0
    %1503 = vmatpush1.msra.mxu0 %v1272
    %1504 = vmatprep.subr.mxu0 0.0
    %1505 = vmatpush1.msra.mxu0 %v1273
    %1506 = vmatprep.subr.mxu0 0.0
    %1507 = vmatpush1.msra.mxu0 0.0
    %1508 = vmatprep.subr.mxu0 0.0
    %1509 = vmatpush1.msra.mxu0 0.0
    %1510 = vmatprep.subr.mxu0 0.0
    %1511 = vmatpush1.msra.mxu0 0.0
    %1512 = vmatprep.subr.mxu0 0.0
    %1513 = vmatpush1.msra.mxu0 0.0
    %1514 = vmatprep.subr.mxu0 0.0
    %1515 = vmatpush1.msra.mxu0 0.0
    %1516 = vmatprep.subr.mxu0 0.0
    %1517 = vmatpush1.msra.mxu0 0.0
    %1518 = vmatprep.subr.mxu0 0.0
    %1519 = vmatpush1.msra.mxu0 0.0
    %1520 = vmatprep.subr.mxu0 0.0
    %1521 = vmatpush1.msra.mxu0 0.0
    %1522 = vmatprep.subr.mxu0 0.0
    %1523 = vmatpush1.msra.mxu0 0.0
    %1524 = vmatprep.subr.mxu0 0.0
    %1525 = vmatpush1.msra.mxu0 0.0
    %1526 = vmatprep.subr.mxu0 0.0
    %1527 = vmatpush1.msra.mxu0 0.0
    %1528 = vmatprep.subr.mxu0 0.0
    %1529 = vmatpush1.msra.mxu0 0.0
    %1530 = vmatprep.subr.mxu0 0.0
    %1531 = vmatpush1.msra.mxu0 0.0
    %1532 = vmatprep.subr.mxu0 0.0
    %1533 = vmatpush1.msra.mxu0 0.0
    %1534 = vmatprep.subr.mxu0 0.0
    %1535 = vmatpush1.msra.mxu0 0.0
    %1536 = vmatprep.subr.mxu0 0.0
    %1537 = vmatpush1.msra.mxu0 0.0
    %1538 = vmatprep.subr.mxu0 0.0
    %1539 = vmatpush1.msra.mxu0 0.0
    %1540 = vmatprep.subr.mxu0 0.0
    %1541 = vmatpush1.msra.mxu0 0.0
    %1542 = vmatprep.subr.mxu0 0.0
    %1543 = vmatpush1.msra.mxu0 0.0
    %1544 = vmatprep.subr.mxu0 0.0
    %1545 = vmatpush1.msra.mxu0 0.0
    %1546 = vmatprep.subr.mxu0 0.0
    %1547 = vmatpush1.msra.mxu0 0.0
    %1548 = vmatprep.subr.mxu0 0.0
    %1549 = vmatpush1.msra.mxu0 0.0
    %1550 = vmatprep.subr.mxu0 0.0
    %1551 = vmatpush1.msra.mxu0 0.0
    %1552 = vmatprep.subr.mxu0 0.0
    %1553 = vmatpush1.msra.mxu0 0.0
    %1554 = vmatprep.subr.mxu0 0.0
    %1555 = vmatpush1.msra.mxu0 0.0
    %1556 = vmatprep.subr.mxu0 0.0
    %1557 = vmatpush1.msra.mxu0 0.0
    %1558 = vmatprep.subr.mxu0 0.0
    %1559 = vmatpush1.msra.mxu0 0.0
    %1560 = vmatprep.subr.mxu0 0.0
    %1561 = vmatpush1.msra.mxu0 0.0
    %1562 = vmatprep.mubr.f32.mxu0 0.0
    %1563 = vmatmul.mubr.f32.gmra.mrb[0].mxu0 %v1496
    %v1564 = vpop.f32.mrb[0].mxu0
    %v1565 = vadd.f32 0.0, %v1564
    %v1566 = vpop.f32.mrb[0].mxu0
    %1567 = vdwg.mxu0
    %v1569 = vrot.slane %v1565, 4
    %v1571 = vadd.f32 %v1262, %v1569
    %v1572 = vxor.u32 %v1571, 2147483648
    %v1573 = vmul.f32 %v1572, 1.442695
    %v1574 = vpow.pop %v1573
    %v1575 = vadd.f32 %v1574, 1.0
    %v1576 = vrcp.pop %v1575
    %v1577 = vmul.f32 1.0, %v1576
    %v1578 = vtanh.pop %v1571
    %v1580 = vrot.slane %v1481, 6
    %v1582 = vmul.f32 %v1577, %v1580
    %1584 = vrot.lane.b32.xlu0 %v1578, 64
    %v1585 = vpop.permute.xlu0 %1584
    %v1587 = vmul.f32 %v1577, %v1585
    %1589 = vrot.lane.b32.xlu0 %v1587, 32
    %v1590 = vpop.permute.xlu0 %1589
    %v1592 = vadd.f32 %v1582, %v1590
    %v1593 = vtanh.pop %v1592
    %1595 = vrot.lane.b32.xlu0 %v1593, 64
    %v1596 = vpop.permute.xlu0 %1595
    %v1598 = vmul.f32 %v1577, %v1596
    %1600 = vrot.lane.b32.xlu0 %v1598, 32
    %v1601 = vpop.permute.xlu0 %1600
    %1603 = vst.msk [vmem:[#allocation3] sm:$0x30] %vm624, %v1601
    %v1604 = vrot.slane %v1598, 4
    %1605 = vrot.lane.b32.xlu0 %v1604, 32
    %v1606 = vpop.permute.xlu0 %1605
    %v1607 = vsel %vm296, %v1606, 0
    %1609 = vmatprep.subr.mxu0 0.0
    %1610 = vmatpush1.msra.mxu0 %v1270
    %1611 = vmatprep.subr.mxu0 0.0
    %1612 = vmatpush1.msra.mxu0 %v1271
    %1613 = vmatprep.subr.mxu0 0.0
    %1614 = vmatpush1.msra.mxu0 %v1272
    %1615 = vmatprep.subr.mxu0 0.0
    %1616 = vmatpush1.msra.mxu0 %v1273
    %1617 = vmatprep.subr.mxu0 0.0
    %1618 = vmatpush1.msra.mxu0 0.0
    %1619 = vmatprep.subr.mxu0 0.0
    %1620 = vmatpush1.msra.mxu0 0.0
    %1621 = vmatprep.subr.mxu0 0.0
    %1622 = vmatpush1.msra.mxu0 0.0
    %1623 = vmatprep.subr.mxu0 0.0
    %1624 = vmatpush1.msra.mxu0 0.0
    %1625 = vmatprep.subr.mxu0 0.0
    %1626 = vmatpush1.msra.mxu0 0.0
    %1627 = vmatprep.subr.mxu0 0.0
    %1628 = vmatpush1.msra.mxu0 0.0
    %1629 = vmatprep.subr.mxu0 0.0
    %1630 = vmatpush1.msra.mxu0 0.0
    %1631 = vmatprep.subr.mxu0 0.0
    %1632 = vmatpush1.msra.mxu0 0.0
    %1633 = vmatprep.subr.mxu0 0.0
    %1634 = vmatpush1.msra.mxu0 0.0
    %1635 = vmatprep.subr.mxu0 0.0
    %1636 = vmatpush1.msra.mxu0 0.0
    %1637 = vmatprep.subr.mxu0 0.0
    %1638 = vmatpush1.msra.mxu0 0.0
    %1639 = vmatprep.subr.mxu0 0.0
    %1640 = vmatpush1.msra.mxu0 0.0
    %1641 = vmatprep.subr.mxu0 0.0
    %1642 = vmatpush1.msra.mxu0 0.0
    %1643 = vmatprep.subr.mxu0 0.0
    %1644 = vmatpush1.msra.mxu0 0.0
    %1645 = vmatprep.subr.mxu0 0.0
    %1646 = vmatpush1.msra.mxu0 0.0
    %1647 = vmatprep.subr.mxu0 0.0
    %1648 = vmatpush1.msra.mxu0 0.0
    %1649 = vmatprep.subr.mxu0 0.0
    %1650 = vmatpush1.msra.mxu0 0.0
    %1651 = vmatprep.subr.mxu0 0.0
    %1652 = vmatpush1.msra.mxu0 0.0
    %1653 = vmatprep.subr.mxu0 0.0
    %1654 = vmatpush1.msra.mxu0 0.0
    %1655 = vmatprep.subr.mxu0 0.0
    %1656 = vmatpush1.msra.mxu0 0.0
    %1657 = vmatprep.subr.mxu0 0.0
    %1658 = vmatpush1.msra.mxu0 0.0
    %1659 = vmatprep.subr.mxu0 0.0
    %1660 = vmatpush1.msra.mxu0 0.0
    %1661 = vmatprep.subr.mxu0 0.0
    %1662 = vmatpush1.msra.mxu0 0.0
    %1663 = vmatprep.subr.mxu0 0.0
    %1664 = vmatpush1.msra.mxu0 0.0
    %1665 = vmatprep.subr.mxu0 0.0
    %1666 = vmatpush1.msra.mxu0 0.0
    %1667 = vmatprep.subr.mxu0 0.0
    %1668 = vmatpush1.msra.mxu0 0.0
    %1669 = vmatprep.subr.mxu0 0.0
    %1670 = vmatpush1.msra.mxu0 0.0
    %1671 = vmatprep.subr.mxu0 0.0
    %1672 = vmatpush1.msra.mxu0 0.0
    %1673 = vmatprep.mubr.f32.mxu0 0.0
    %1674 = vmatmul.mubr.f32.gmra.mrb[0].mxu0 %v1607
    %v1675 = vpop.f32.mrb[0].mxu0
    %v1676 = vadd.f32 0.0, %v1675
    %v1677 = vpop.f32.mrb[0].mxu0
    %1678 = vdwg.mxu0
    %v1680 = vrot.slane %v1676, 2
    %v1682 = vadd.f32 %v1262, %v1680
    %v1683 = vxor.u32 %v1682, 2147483648
    %v1684 = vmul.f32 %v1683, 1.442695
    %v1685 = vpow.pop %v1684
    %v1686 = vadd.f32 %v1685, 1.0
    %v1687 = vrcp.pop %v1686
    %v1688 = vmul.f32 1.0, %v1687
    %v1689 = vtanh.pop %v1682
    %v1691 = vrot.slane %v1592, 6
    %v1693 = vmul.f32 %v1688, %v1691
    %1695 = vrot.lane.b32.xlu0 %v1689, 64
    %v1696 = vpop.permute.xlu0 %1695
    %v1698 = vmul.f32 %v1688, %v1696
    %1700 = vrot.lane.b32.xlu0 %v1698, 32
    %v1701 = vpop.permute.xlu0 %1700
    %v1703 = vadd.f32 %v1693, %v1701
    %v1704 = vtanh.pop %v1703
    %1706 = vrot.lane.b32.xlu0 %v1704, 64
    %v1707 = vpop.permute.xlu0 %1706
    %v1709 = vmul.f32 %v1688, %v1707
    %1711 = vrot.lane.b32.xlu0 %v1709, 32
    %v1712 = vpop.permute.xlu0 %1711
    %1714 = vst.msk [vmem:[#allocation3] sm:$0xc0] %vm736, %v1712
    %v1715 = vrot.slane %v1709, 6
    %1716 = vrot.lane.b32.xlu0 %v1715, 32
    %v1717 = vpop.permute.xlu0 %1716
    %v1718 = vsel %vm296, %v1717, 0
    %1720 = vmatprep.subr.mxu0 0.0
    %1721 = vmatpush1.msra.mxu0 %v1270
    %1722 = vmatprep.subr.mxu0 0.0
    %1723 = vmatpush1.msra.mxu0 %v1271
    %1724 = vmatprep.subr.mxu0 0.0
    %1725 = vmatpush1.msra.mxu0 %v1272
    %1726 = vmatprep.subr.mxu0 0.0
    %1727 = vmatpush1.msra.mxu0 %v1273
    %1728 = vmatprep.subr.mxu0 0.0
    %1729 = vmatpush1.msra.mxu0 0.0
    %1730 = vmatprep.subr.mxu0 0.0
    %1731 = vmatpush1.msra.mxu0 0.0
    %1732 = vmatprep.subr.mxu0 0.0
    %1733 = vmatpush1.msra.mxu0 0.0
    %1734 = vmatprep.subr.mxu0 0.0
    %1735 = vmatpush1.msra.mxu0 0.0
    %1736 = vmatprep.subr.mxu0 0.0
    %1737 = vmatpush1.msra.mxu0 0.0
    %1738 = vmatprep.subr.mxu0 0.0
    %1739 = vmatpush1.msra.mxu0 0.0
    %1740 = vmatprep.subr.mxu0 0.0
    %1741 = vmatpush1.msra.mxu0 0.0
    %1742 = vmatprep.subr.mxu0 0.0
    %1743 = vmatpush1.msra.mxu0 0.0
    %1744 = vmatprep.subr.mxu0 0.0
    %1745 = vmatpush1.msra.mxu0 0.0
    %1746 = vmatprep.subr.mxu0 0.0
    %1747 = vmatpush1.msra.mxu0 0.0
    %1748 = vmatprep.subr.mxu0 0.0
    %1749 = vmatpush1.msra.mxu0 0.0
    %1750 = vmatprep.subr.mxu0 0.0
    %1751 = vmatpush1.msra.mxu0 0.0
    %1752 = vmatprep.subr.mxu0 0.0
    %1753 = vmatpush1.msra.mxu0 0.0
    %1754 = vmatprep.subr.mxu0 0.0
    %1755 = vmatpush1.msra.mxu0 0.0
    %1756 = vmatprep.subr.mxu0 0.0
    %1757 = vmatpush1.msra.mxu0 0.0
    %1758 = vmatprep.subr.mxu0 0.0
    %1759 = vmatpush1.msra.mxu0 0.0
    %1760 = vmatprep.subr.mxu0 0.0
    %1761 = vmatpush1.msra.mxu0 0.0
    %1762 = vmatprep.subr.mxu0 0.0
    %1763 = vmatpush1.msra.mxu0 0.0
    %1764 = vmatprep.subr.mxu0 0.0
    %1765 = vmatpush1.msra.mxu0 0.0
    %1766 = vmatprep.subr.mxu0 0.0
    %1767 = vmatpush1.msra.mxu0 0.0
    %1768 = vmatprep.subr.mxu0 0.0
    %1769 = vmatpush1.msra.mxu0 0.0
    %1770 = vmatprep.subr.mxu0 0.0
    %1771 = vmatpush1.msra.mxu0 0.0
    %1772 = vmatprep.subr.mxu0 0.0
    %1773 = vmatpush1.msra.mxu0 0.0
    %1774 = vmatprep.subr.mxu0 0.0
    %1775 = vmatpush1.msra.mxu0 0.0
    %1776 = vmatprep.subr.mxu0 0.0
    %1777 = vmatpush1.msra.mxu0 0.0
    %1778 = vmatprep.subr.mxu0 0.0
    %1779 = vmatpush1.msra.mxu0 0.0
    %1780 = vmatprep.subr.mxu0 0.0
    %1781 = vmatpush1.msra.mxu0 0.0
    %1782 = vmatprep.subr.mxu0 0.0
    %1783 = vmatpush1.msra.mxu0 0.0
    %1784 = vmatprep.mubr.f32.mxu0 0.0
    %1785 = vmatmul.mubr.f32.gmra.mrb[0].mxu0 %v1718
    %v1786 = vpop.f32.mrb[0].mxu0
    %v1787 = vadd.f32 0.0, %v1786
    %v1788 = vpop.f32.mrb[0].mxu0
    %1789 = vdwg.mxu0
    %v1790 = vadd.f32 %v1267, %v1787
    %v1791 = vxor.u32 %v1790, 2147483648
    %v1792 = vmul.f32 %v1791, 1.442695
    %v1793 = vpow.pop %v1792
    %v1794 = vadd.f32 %v1793, 1.0
    %v1795 = vrcp.pop %v1794
    %v1796 = vmul.f32 1.0, %v1795
    %v1797 = vtanh.pop %v1790
    %v1799 = vrot.slane %v1703, 6
    %v1801 = vmul.f32 %v1796, %v1799
    %1803 = vrot.lane.b32.xlu0 %v1797, 64
    %v1804 = vpop.permute.xlu0 %1803
    %v1806 = vmul.f32 %v1796, %v1804
    %1808 = vrot.lane.b32.xlu0 %v1806, 32
    %v1809 = vpop.permute.xlu0 %1808
    %v1811 = vadd.f32 %v1801, %v1809
    %v1812 = vtanh.pop %v1811
    %1814 = vrot.lane.b32.xlu0 %v1812, 64
    %v1815 = vpop.permute.xlu0 %1814
    %v1817 = vmul.f32 %v1796, %v1815
    %1819 = vrot.lane.b32.xlu0 %v1817, 32
    %v1820 = vpop.permute.xlu0 %1819
    %1822 = vst.msk [vmem:[#allocation3 + $0x8] sm:$0x3] %vm403, %v1820
    %v1823 = vsel %vm296, %v1820, 0
    %1825 = vmatprep.subr.mxu0 0.0
    %1826 = vmatpush1.msra.mxu0 %v1270
    %1827 = vmatprep.subr.mxu0 0.0
    %1828 = vmatpush1.msra.mxu0 %v1271
    %1829 = vmatprep.subr.mxu0 0.0
    %1830 = vmatpush1.msra.mxu0 %v1272
    %1831 = vmatprep.subr.mxu0 0.0
    %1832 = vmatpush1.msra.mxu0 %v1273
    %1833 = vmatprep.subr.mxu0 0.0
    %1834 = vmatpush1.msra.mxu0 0.0
    %1835 = vmatprep.subr.mxu0 0.0
    %1836 = vmatpush1.msra.mxu0 0.0
    %1837 = vmatprep.subr.mxu0 0.0
    %1838 = vmatpush1.msra.mxu0 0.0
    %1839 = vmatprep.subr.mxu0 0.0
    %1840 = vmatpush1.msra.mxu0 0.0
    %1841 = vmatprep.subr.mxu0 0.0
    %1842 = vmatpush1.msra.mxu0 0.0
    %1843 = vmatprep.subr.mxu0 0.0
    %1844 = vmatpush1.msra.mxu0 0.0
    %1845 = vmatprep.subr.mxu0 0.0
    %1846 = vmatpush1.msra.mxu0 0.0
    %1847 = vmatprep.subr.mxu0 0.0
    %1848 = vmatpush1.msra.mxu0 0.0
    %1849 = vmatprep.subr.mxu0 0.0
    %1850 = vmatpush1.msra.mxu0 0.0
    %1851 = vmatprep.subr.mxu0 0.0
    %1852 = vmatpush1.msra.mxu0 0.0
    %1853 = vmatprep.subr.mxu0 0.0
    %1854 = vmatpush1.msra.mxu0 0.0
    %1855 = vmatprep.subr.mxu0 0.0
    %1856 = vmatpush1.msra.mxu0 0.0
    %1857 = vmatprep.subr.mxu0 0.0
    %1858 = vmatpush1.msra.mxu0 0.0
    %1859 = vmatprep.subr.mxu0 0.0
    %1860 = vmatpush1.msra.mxu0 0.0
    %1861 = vmatprep.subr.mxu0 0.0
    %1862 = vmatpush1.msra.mxu0 0.0
    %1863 = vmatprep.subr.mxu0 0.0
    %1864 = vmatpush1.msra.mxu0 0.0
    %1865 = vmatprep.subr.mxu0 0.0
    %1866 = vmatpush1.msra.mxu0 0.0
    %1867 = vmatprep.subr.mxu0 0.0
    %1868 = vmatpush1.msra.mxu0 0.0
    %1869 = vmatprep.subr.mxu0 0.0
    %1870 = vmatpush1.msra.mxu0 0.0
    %1871 = vmatprep.subr.mxu0 0.0
    %1872 = vmatpush1.msra.mxu0 0.0
    %1873 = vmatprep.subr.mxu0 0.0
    %1874 = vmatpush1.msra.mxu0 0.0
    %1875 = vmatprep.subr.mxu0 0.0
    %1876 = vmatpush1.msra.mxu0 0.0
    %1877 = vmatprep.subr.mxu0 0.0
    %1878 = vmatpush1.msra.mxu0 0.0
    %1879 = vmatprep.subr.mxu0 0.0
    %1880 = vmatpush1.msra.mxu0 0.0
    %1881 = vmatprep.subr.mxu0 0.0
    %1882 = vmatpush1.msra.mxu0 0.0
    %1883 = vmatprep.subr.mxu0 0.0
    %1884 = vmatpush1.msra.mxu0 0.0
    %1885 = vmatprep.subr.mxu0 0.0
    %1886 = vmatpush1.msra.mxu0 0.0
    %1887 = vmatprep.subr.mxu0 0.0
    %1888 = vmatpush1.msra.mxu0 0.0
    %1889 = vmatprep.mubr.f32.mxu0 0.0
    %1890 = vmatmul.mubr.f32.gmra.mrb[0].mxu0 %v1823
    %v1891 = vpop.f32.mrb[0].mxu0
    %v1892 = vadd.f32 0.0, %v1891
    %v1893 = vpop.f32.mrb[0].mxu0
    %1894 = vdwg.mxu0
    %v1896 = vrot.slane %v1892, 6
    %v1898 = vadd.f32 %v1267, %v1896
    %v1899 = vxor.u32 %v1898, 2147483648
    %v1900 = vmul.f32 %v1899, 1.442695
    %v1901 = vpow.pop %v1900
    %v1902 = vadd.f32 %v1901, 1.0
    %v1903 = vrcp.pop %v1902
    %v1904 = vmul.f32 1.0, %v1903
    %v1905 = vtanh.pop %v1898
    %v1907 = vrot.slane %v1811, 6
    %v1909 = vmul.f32 %v1904, %v1907
    %1911 = vrot.lane.b32.xlu0 %v1905, 64
    %v1912 = vpop.permute.xlu0 %1911
    %v1914 = vmul.f32 %v1904, %v1912
    %1916 = vrot.lane.b32.xlu0 %v1914, 32
    %v1917 = vpop.permute.xlu0 %1916
    %v1919 = vadd.f32 %v1909, %v1917
    %v1920 = vtanh.pop %v1919
    %1922 = vrot.lane.b32.xlu0 %v1920, 64
    %v1923 = vpop.permute.xlu0 %1922
    %v1925 = vmul.f32 %v1904, %v1923
    %1927 = vrot.lane.b32.xlu0 %v1925, 32
    %v1928 = vpop.permute.xlu0 %1927
    %1930 = vst.msk [vmem:[#allocation3 + $0x8] sm:$0xc] %vm512, %v1928
    %v1931 = vrot.slane %v1925, 2
    %1932 = vrot.lane.b32.xlu0 %v1931, 32
    %v1933 = vpop.permute.xlu0 %1932
    %v1934 = vsel %vm296, %v1933, 0
    %1936 = vmatprep.subr.mxu0 0.0
    %1937 = vmatpush1.msra.mxu0 %v1270
    %1938 = vmatprep.subr.mxu0 0.0
    %1939 = vmatpush1.msra.mxu0 %v1271
    %1940 = vmatprep.subr.mxu0 0.0
    %1941 = vmatpush1.msra.mxu0 %v1272
    %1942 = vmatprep.subr.mxu0 0.0
    %1943 = vmatpush1.msra.mxu0 %v1273
    %1944 = vmatprep.subr.mxu0 0.0
    %1945 = vmatpush1.msra.mxu0 0.0
    %1946 = vmatprep.subr.mxu0 0.0
    %1947 = vmatpush1.msra.mxu0 0.0
    %1948 = vmatprep.subr.mxu0 0.0
    %1949 = vmatpush1.msra.mxu0 0.0
    %1950 = vmatprep.subr.mxu0 0.0
    %1951 = vmatpush1.msra.mxu0 0.0
    %1952 = vmatprep.subr.mxu0 0.0
    %1953 = vmatpush1.msra.mxu0 0.0
    %1954 = vmatprep.subr.mxu0 0.0
    %1955 = vmatpush1.msra.mxu0 0.0
    %1956 = vmatprep.subr.mxu0 0.0
    %1957 = vmatpush1.msra.mxu0 0.0
    %1958 = vmatprep.subr.mxu0 0.0
    %1959 = vmatpush1.msra.mxu0 0.0
    %1960 = vmatprep.subr.mxu0 0.0
    %1961 = vmatpush1.msra.mxu0 0.0
    %1962 = vmatprep.subr.mxu0 0.0
    %1963 = vmatpush1.msra.mxu0 0.0
    %1964 = vmatprep.subr.mxu0 0.0
    %1965 = vmatpush1.msra.mxu0 0.0
    %1966 = vmatprep.subr.mxu0 0.0
    %1967 = vmatpush1.msra.mxu0 0.0
    %1968 = vmatprep.subr.mxu0 0.0
    %1969 = vmatpush1.msra.mxu0 0.0
    %1970 = vmatprep.subr.mxu0 0.0
    %1971 = vmatpush1.msra.mxu0 0.0
    %1972 = vmatprep.subr.mxu0 0.0
    %1973 = vmatpush1.msra.mxu0 0.0
    %1974 = vmatprep.subr.mxu0 0.0
    %1975 = vmatpush1.msra.mxu0 0.0
    %1976 = vmatprep.subr.mxu0 0.0
    %1977 = vmatpush1.msra.mxu0 0.0
    %1978 = vmatprep.subr.mxu0 0.0
    %1979 = vmatpush1.msra.mxu0 0.0
    %1980 = vmatprep.subr.mxu0 0.0
    %1981 = vmatpush1.msra.mxu0 0.0
    %1982 = vmatprep.subr.mxu0 0.0
    %1983 = vmatpush1.msra.mxu0 0.0
    %1984 = vmatprep.subr.mxu0 0.0
    %1985 = vmatpush1.msra.mxu0 0.0
    %1986 = vmatprep.subr.mxu0 0.0
    %1987 = vmatpush1.msra.mxu0 0.0
    %1988 = vmatprep.subr.mxu0 0.0
    %1989 = vmatpush1.msra.mxu0 0.0
    %1990 = vmatprep.subr.mxu0 0.0
    %1991 = vmatpush1.msra.mxu0 0.0
    %1992 = vmatprep.subr.mxu0 0.0
    %1993 = vmatpush1.msra.mxu0 0.0
    %1994 = vmatprep.subr.mxu0 0.0
    %1995 = vmatpush1.msra.mxu0 0.0
    %1996 = vmatprep.subr.mxu0 0.0
    %1997 = vmatpush1.msra.mxu0 0.0
    %1998 = vmatprep.subr.mxu0 0.0
    %1999 = vmatpush1.msra.mxu0 0.0
    %2000 = vmatprep.mubr.f32.mxu0 0.0
    %2001 = vmatmul.mubr.f32.gmra.mrb[0].mxu0 %v1934
    %v2002 = vpop.f32.mrb[0].mxu0
    %v2003 = vadd.f32 0.0, %v2002
    %v2004 = vpop.f32.mrb[0].mxu0
    %2005 = vdwg.mxu0
    %v2007 = vrot.slane %v2003, 4
    %v2009 = vadd.f32 %v1267, %v2007
    %v2010 = vxor.u32 %v2009, 2147483648
    %v2011 = vmul.f32 %v2010, 1.442695
    %v2012 = vpow.pop %v2011
    %v2013 = vadd.f32 %v2012, 1.0
    %v2014 = vrcp.pop %v2013
    %v2015 = vmul.f32 1.0, %v2014
    %v2016 = vtanh.pop %v2009
    %v2018 = vrot.slane %v1919, 6
    %v2020 = vmul.f32 %v2015, %v2018
    %2022 = vrot.lane.b32.xlu0 %v2016, 64
    %v2023 = vpop.permute.xlu0 %2022
    %v2025 = vmul.f32 %v2015, %v2023
    %2027 = vrot.lane.b32.xlu0 %v2025, 32
    %v2028 = vpop.permute.xlu0 %2027
    %v2030 = vadd.f32 %v2020, %v2028
    %v2031 = vtanh.pop %v2030
    %2033 = vrot.lane.b32.xlu0 %v2031, 64
    %v2034 = vpop.permute.xlu0 %2033
    %v2036 = vmul.f32 %v2015, %v2034
    %2038 = vrot.lane.b32.xlu0 %v2036, 32
    %v2039 = vpop.permute.xlu0 %2038
    %2041 = vst.msk [vmem:[#allocation3 + $0x8] sm:$0x30] %vm624, %v2039
    %v2042 = vrot.slane %v2036, 4
    %2043 = vrot.lane.b32.xlu0 %v2042, 32
    %v2044 = vpop.permute.xlu0 %2043
    %v2045 = vsel %vm296, %v2044, 0
    %2047 = vmatprep.subr.mxu0 0.0
    %2048 = vmatpush1.msra.mxu0 %v1270
    %2049 = vmatprep.subr.mxu0 0.0
    %2050 = vmatpush1.msra.mxu0 %v1271
    %2051 = vmatprep.subr.mxu0 0.0
    %2052 = vmatpush1.msra.mxu0 %v1272
    %2053 = vmatprep.subr.mxu0 0.0
    %2054 = vmatpush1.msra.mxu0 %v1273
    %2055 = vmatprep.subr.mxu0 0.0
    %2056 = vmatpush1.msra.mxu0 0.0
    %2057 = vmatprep.subr.mxu0 0.0
    %2058 = vmatpush1.msra.mxu0 0.0
    %2059 = vmatprep.subr.mxu0 0.0
    %2060 = vmatpush1.msra.mxu0 0.0
    %2061 = vmatprep.subr.mxu0 0.0
    %2062 = vmatpush1.msra.mxu0 0.0
    %2063 = vmatprep.subr.mxu0 0.0
    %2064 = vmatpush1.msra.mxu0 0.0
    %2065 = vmatprep.subr.mxu0 0.0
    %2066 = vmatpush1.msra.mxu0 0.0
    %2067 = vmatprep.subr.mxu0 0.0
    %2068 = vmatpush1.msra.mxu0 0.0
    %2069 = vmatprep.subr.mxu0 0.0
    %2070 = vmatpush1.msra.mxu0 0.0
    %2071 = vmatprep.subr.mxu0 0.0
    %2072 = vmatpush1.msra.mxu0 0.0
    %2073 = vmatprep.subr.mxu0 0.0
    %2074 = vmatpush1.msra.mxu0 0.0
    %2075 = vmatprep.subr.mxu0 0.0
    %2076 = vmatpush1.msra.mxu0 0.0
    %2077 = vmatprep.subr.mxu0 0.0
    %2078 = vmatpush1.msra.mxu0 0.0
    %2079 = vmatprep.subr.mxu0 0.0
    %2080 = vmatpush1.msra.mxu0 0.0
    %2081 = vmatprep.subr.mxu0 0.0
    %2082 = vmatpush1.msra.mxu0 0.0
    %2083 = vmatprep.subr.mxu0 0.0
    %2084 = vmatpush1.msra.mxu0 0.0
    %2085 = vmatprep.subr.mxu0 0.0
    %2086 = vmatpush1.msra.mxu0 0.0
    %2087 = vmatprep.subr.mxu0 0.0
    %2088 = vmatpush1.msra.mxu0 0.0
    %2089 = vmatprep.subr.mxu0 0.0
    %2090 = vmatpush1.msra.mxu0 0.0
    %2091 = vmatprep.subr.mxu0 0.0
    %2092 = vmatpush1.msra.mxu0 0.0
    %2093 = vmatprep.subr.mxu0 0.0
    %2094 = vmatpush1.msra.mxu0 0.0
    %2095 = vmatprep.subr.mxu0 0.0
    %2096 = vmatpush1.msra.mxu0 0.0
    %2097 = vmatprep.subr.mxu0 0.0
    %2098 = vmatpush1.msra.mxu0 0.0
    %2099 = vmatprep.subr.mxu0 0.0
    %2100 = vmatpush1.msra.mxu0 0.0
    %2101 = vmatprep.subr.mxu0 0.0
    %2102 = vmatpush1.msra.mxu0 0.0
    %2103 = vmatprep.subr.mxu0 0.0
    %2104 = vmatpush1.msra.mxu0 0.0
    %2105 = vmatprep.subr.mxu0 0.0
    %2106 = vmatpush1.msra.mxu0 0.0
    %2107 = vmatprep.subr.mxu0 0.0
    %2108 = vmatpush1.msra.mxu0 0.0
    %2109 = vmatprep.subr.mxu0 0.0
    %2110 = vmatpush1.msra.mxu0 0.0
    %2111 = vmatprep.mubr.f32.mxu0 0.0
    %2112 = vmatmul.mubr.f32.gmra.mrb[0].mxu0 %v2045
    %v2113 = vpop.f32.mrb[0].mxu0
    %v2114 = vadd.f32 0.0, %v2113
    %v2115 = vpop.f32.mrb[0].mxu0
    %2116 = vdwg.mxu0
    %v2118 = vrot.slane %v2114, 2
    %v2120 = vadd.f32 %v1267, %v2118
    %v2121 = vxor.u32 %v2120, 2147483648
    %v2122 = vmul.f32 %v2121, 1.442695
    %v2123 = vpow.pop %v2122
    %v2124 = vadd.f32 %v2123, 1.0
    %v2125 = vrcp.pop %v2124
    %v2126 = vmul.f32 1.0, %v2125
    %v2127 = vtanh.pop %v2120
    %v2129 = vrot.slane %v2030, 6
    %v2131 = vmul.f32 %v2126, %v2129
    %2133 = vrot.lane.b32.xlu0 %v2127, 64
    %v2134 = vpop.permute.xlu0 %2133
    %v2136 = vmul.f32 %v2126, %v2134
    %2138 = vrot.lane.b32.xlu0 %v2136, 32
    %v2139 = vpop.permute.xlu0 %2138
    %v2141 = vadd.f32 %v2131, %v2139
    %v2142 = vtanh.pop %v2141
    %2144 = vrot.lane.b32.xlu0 %v2142, 64
    %v2145 = vpop.permute.xlu0 %2144
    %v2147 = vmul.f32 %v2126, %v2145
    %2149 = vrot.lane.b32.xlu0 %v2147, 32
    %v2150 = vpop.permute.xlu0 %2149
    %2152 = vst.msk [vmem:[#allocation3 + $0x8] sm:$0xc0] %vm736, %v2150
    %v2153 = vld [vmem:[#allocation3] sm:$0xff]
    %v2154 = vld [vmem:[#allocation3 + $0x8] sm:$0xff]
    %v2155 = vld [vmem:[#allocation13] sm:$0xff]
    %v2156 = vld [vmem:[#allocation13 + $0x8] sm:$0xff]
    %v2157 = vld [vmem:[#allocation13 + $0x10] sm:$0xff]
    %v2158 = vld [vmem:[#allocation13 + $0x18] sm:$0xff]
    %v2159 = vld [vmem:[#allocation16] sm:$0x1]
    %v2161 = vlaneseq
    %v2162 = vshrl.u32 %v2161, 7
    %v2163 = vsub.s32 0, %v2162
    %v2164 = vrot.slane %v2159, %v2163
    %v2167 = vsel %vm296, %v2153, 0
    %v2170 = vsel %vm296, %v2154, 0
    %2172 = vmatprep.subr.mxu0 0.0
    %2173 = vmatpush1.msra.mxu0 %v2155
    %2174 = vmatprep.subr.mxu0 0.0
    %2175 = vmatpush1.msra.mxu0 %v2156
    %2176 = vmatprep.subr.mxu0 0.0
    %2177 = vmatpush1.msra.mxu0 %v2157
    %2178 = vmatprep.subr.mxu0 0.0
    %2179 = vmatpush1.msra.mxu0 %v2158
    %2180 = vmatprep.subr.mxu0 0.0
    %2181 = vmatpush1.msra.mxu0 0.0
    %2182 = vmatprep.subr.mxu0 0.0
    %2183 = vmatpush1.msra.mxu0 0.0
    %2184 = vmatprep.subr.mxu0 0.0
    %2185 = vmatpush1.msra.mxu0 0.0
    %2186 = vmatprep.subr.mxu0 0.0
    %2187 = vmatpush1.msra.mxu0 0.0
    %2188 = vmatprep.subr.mxu0 0.0
    %2189 = vmatpush1.msra.mxu0 0.0
    %2190 = vmatprep.subr.mxu0 0.0
    %2191 = vmatpush1.msra.mxu0 0.0
    %2192 = vmatprep.subr.mxu0 0.0
    %2193 = vmatpush1.msra.mxu0 0.0
    %2194 = vmatprep.subr.mxu0 0.0
    %2195 = vmatpush1.msra.mxu0 0.0
    %2196 = vmatprep.subr.mxu0 0.0
    %2197 = vmatpush1.msra.mxu0 0.0
    %2198 = vmatprep.subr.mxu0 0.0
    %2199 = vmatpush1.msra.mxu0 0.0
    %2200 = vmatprep.subr.mxu0 0.0
    %2201 = vmatpush1.msra.mxu0 0.0
    %2202 = vmatprep.subr.mxu0 0.0
    %2203 = vmatpush1.msra.mxu0 0.0
    %2204 = vmatprep.subr.mxu0 0.0
    %2205 = vmatpush1.msra.mxu0 0.0
    %2206 = vmatprep.subr.mxu0 0.0
    %2207 = vmatpush1.msra.mxu0 0.0
    %2208 = vmatprep.subr.mxu0 0.0
    %2209 = vmatpush1.msra.mxu0 0.0
    %2210 = vmatprep.subr.mxu0 0.0
    %2211 = vmatpush1.msra.mxu0 0.0
    %2212 = vmatprep.subr.mxu0 0.0
    %2213 = vmatpush1.msra.mxu0 0.0
    %2214 = vmatprep.subr.mxu0 0.0
    %2215 = vmatpush1.msra.mxu0 0.0
    %2216 = vmatprep.subr.mxu0 0.0
    %2217 = vmatpush1.msra.mxu0 0.0
    %2218 = vmatprep.subr.mxu0 0.0
    %2219 = vmatpush1.msra.mxu0 0.0
    %2220 = vmatprep.subr.mxu0 0.0
    %2221 = vmatpush1.msra.mxu0 0.0
    %2222 = vmatprep.subr.mxu0 0.0
    %2223 = vmatpush1.msra.mxu0 0.0
    %2224 = vmatprep.subr.mxu0 0.0
    %2225 = vmatpush1.msra.mxu0 0.0
    %2226 = vmatprep.subr.mxu0 0.0
    %2227 = vmatpush1.msra.mxu0 0.0
    %2228 = vmatprep.subr.mxu0 0.0
    %2229 = vmatpush1.msra.mxu0 0.0
    %2230 = vmatprep.subr.mxu0 0.0
    %2231 = vmatpush1.msra.mxu0 0.0
    %2232 = vmatprep.subr.mxu0 0.0
    %2233 = vmatpush1.msra.mxu0 0.0
    %2234 = vmatprep.subr.mxu0 0.0
    %2235 = vmatpush1.msra.mxu0 0.0
    %2236 = vmatprep.mubr.f32.mxu0 0.0
    %2237 = vmatmul.mubr.f32.gmra.mrb[0].mxu0 %v2167
    %v2238 = vpop.f32.mrb[0].mxu0
    %v2239 = vadd.f32 %v2164, %v2238
    %v2240 = vpop.f32.mrb[0].mxu0
    %2241 = vmatprep.mubr.f32.mxu0 0.0
    %2242 = vmatmul.mubr.f32.gmra.mrb[0].mxu0 %v2170
    %v2243 = vpop.f32.mrb[0].mxu0
    %v2244 = vadd.f32 %v2164, %v2243
    %v2245 = vpop.f32.mrb[0].mxu0
    %2246 = vdwg.mxu0
    %v2247 = vld [vmem:[#allocation15] sm:$0xff]
    %v2248 = vld [vmem:[#allocation15 + $0x8] sm:$0xff]
    %v2249 = vld [vmem:[#allocation15 + $0x10] sm:$0xff]
    %v2250 = vld [vmem:[#allocation15 + $0x18] sm:$0xff]
    %v2251 = vld [vmem:[#allocation5] sm:$0x3]
    %v2252 = vld [vmem:[#allocation7] sm:$0x3]
    %v2254 = vsel %vm296, %v2251, 0
    %2256 = vmatprep.subr.mxu0 0.0
    %2257 = vmatpush1.msra.mxu0 %v2247
    %2258 = vmatprep.subr.mxu0 0.0
    %2259 = vmatpush1.msra.mxu0 %v2248
    %2260 = vmatprep.subr.mxu0 0.0
    %2261 = vmatpush1.msra.mxu0 %v2249
    %2262 = vmatprep.subr.mxu0 0.0
    %2263 = vmatpush1.msra.mxu0 %v2250
    %2264 = vmatprep.subr.mxu0 0.0
    %2265 = vmatpush1.msra.mxu0 0.0
    %2266 = vmatprep.subr.mxu0 0.0
    %2267 = vmatpush1.msra.mxu0 0.0
    %2268 = vmatprep.subr.mxu0 0.0
    %2269 = vmatpush1.msra.mxu0 0.0
    %2270 = vmatprep.subr.mxu0 0.0
    %2271 = vmatpush1.msra.mxu0 0.0
    %2272 = vmatprep.subr.mxu0 0.0
    %2273 = vmatpush1.msra.mxu0 0.0
    %2274 = vmatprep.subr.mxu0 0.0
    %2275 = vmatpush1.msra.mxu0 0.0
    %2276 = vmatprep.subr.mxu0 0.0
    %2277 = vmatpush1.msra.mxu0 0.0
    %2278 = vmatprep.subr.mxu0 0.0
    %2279 = vmatpush1.msra.mxu0 0.0
    %2280 = vmatprep.subr.mxu0 0.0
    %2281 = vmatpush1.msra.mxu0 0.0
    %2282 = vmatprep.subr.mxu0 0.0
    %2283 = vmatpush1.msra.mxu0 0.0
    %2284 = vmatprep.subr.mxu0 0.0
    %2285 = vmatpush1.msra.mxu0 0.0
    %2286 = vmatprep.subr.mxu0 0.0
    %2287 = vmatpush1.msra.mxu0 0.0
    %2288 = vmatprep.subr.mxu0 0.0
    %2289 = vmatpush1.msra.mxu0 0.0
    %2290 = vmatprep.subr.mxu0 0.0
    %2291 = vmatpush1.msra.mxu0 0.0
    %2292 = vmatprep.subr.mxu0 0.0
    %2293 = vmatpush1.msra.mxu0 0.0
    %2294 = vmatprep.subr.mxu0 0.0
    %2295 = vmatpush1.msra.mxu0 0.0
    %2296 = vmatprep.subr.mxu0 0.0
    %2297 = vmatpush1.msra.mxu0 0.0
    %2298 = vmatprep.subr.mxu0 0.0
    %2299 = vmatpush1.msra.mxu0 0.0
    %2300 = vmatprep.subr.mxu0 0.0
    %2301 = vmatpush1.msra.mxu0 0.0
    %2302 = vmatprep.subr.mxu0 0.0
    %2303 = vmatpush1.msra.mxu0 0.0
    %2304 = vmatprep.subr.mxu0 0.0
    %2305 = vmatpush1.msra.mxu0 0.0
    %2306 = vmatprep.subr.mxu0 0.0
    %2307 = vmatpush1.msra.mxu0 0.0
    %2308 = vmatprep.subr.mxu0 0.0
    %2309 = vmatpush1.msra.mxu0 0.0
    %2310 = vmatprep.subr.mxu0 0.0
    %2311 = vmatpush1.msra.mxu0 0.0
    %2312 = vmatprep.subr.mxu0 0.0
    %2313 = vmatpush1.msra.mxu0 0.0
    %2314 = vmatprep.subr.mxu0 0.0
    %2315 = vmatpush1.msra.mxu0 0.0
    %2316 = vmatprep.subr.mxu0 0.0
    %2317 = vmatpush1.msra.mxu0 0.0
    %2318 = vmatprep.subr.mxu0 0.0
    %2319 = vmatpush1.msra.mxu0 0.0
    %2320 = vmatprep.mubr.f32.mxu0 0.0
    %2321 = vmatmul.mubr.f32.gmra.mrb[0].mxu0 %v2254
    %v2322 = vpop.f32.mrb[0].mxu0
    %v2323 = vadd.f32 0.0, %v2322
    %v2324 = vpop.f32.mrb[0].mxu0
    %2325 = vdwg.mxu0
    %v2326 = vadd.f32 %v2239, %v2323
    %v2327 = vxor.u32 %v2326, 2147483648
    %v2328 = vmul.f32 %v2327, 1.442695
    %v2329 = vpow.pop %v2328
    %v2330 = vadd.f32 %v2329, 1.0
    %v2331 = vrcp.pop %v2330
    %v2332 = vmul.f32 1.0, %v2331
    %v2333 = vtanh.pop %v2326
    %2335 = vrot.lane.b32.xlu0 %v2252, 32
    %v2336 = vpop.permute.xlu0 %2335
    %v2338 = vmul.f32 %v2332, %v2336
    %2340 = vrot.lane.b32.xlu0 %v2333, 64
    %v2341 = vpop.permute.xlu0 %2340
    %v2343 = vmul.f32 %v2332, %v2341
    %2345 = vrot.lane.b32.xlu0 %v2343, 32
    %v2346 = vpop.permute.xlu0 %2345
    %v2348 = vadd.f32 %v2338, %v2346
    %v2349 = vtanh.pop %v2348
    %2351 = vrot.lane.b32.xlu0 %v2349, 64
    %v2352 = vpop.permute.xlu0 %2351
    %v2354 = vmul.f32 %v2332, %v2352
    %2356 = vrot.lane.b32.xlu0 %v2354, 32
    %v2357 = vpop.permute.xlu0 %2356
    %2359 = vst.msk [vmem:[#allocation2] sm:$0x3] %vm403, %v2357
    %v2360 = vsel %vm296, %v2357, 0
    %2362 = vmatprep.subr.mxu0 0.0
    %2363 = vmatpush1.msra.mxu0 %v2247
    %2364 = vmatprep.subr.mxu0 0.0
    %2365 = vmatpush1.msra.mxu0 %v2248
    %2366 = vmatprep.subr.mxu0 0.0
    %2367 = vmatpush1.msra.mxu0 %v2249
    %2368 = vmatprep.subr.mxu0 0.0
    %2369 = vmatpush1.msra.mxu0 %v2250
    %2370 = vmatprep.subr.mxu0 0.0
    %2371 = vmatpush1.msra.mxu0 0.0
    %2372 = vmatprep.subr.mxu0 0.0
    %2373 = vmatpush1.msra.mxu0 0.0
    %2374 = vmatprep.subr.mxu0 0.0
    %2375 = vmatpush1.msra.mxu0 0.0
    %2376 = vmatprep.subr.mxu0 0.0
    %2377 = vmatpush1.msra.mxu0 0.0
    %2378 = vmatprep.subr.mxu0 0.0
    %2379 = vmatpush1.msra.mxu0 0.0
    %2380 = vmatprep.subr.mxu0 0.0
    %2381 = vmatpush1.msra.mxu0 0.0
    %2382 = vmatprep.subr.mxu0 0.0
    %2383 = vmatpush1.msra.mxu0 0.0
    %2384 = vmatprep.subr.mxu0 0.0
    %2385 = vmatpush1.msra.mxu0 0.0
    %2386 = vmatprep.subr.mxu0 0.0
    %2387 = vmatpush1.msra.mxu0 0.0
    %2388 = vmatprep.subr.mxu0 0.0
    %2389 = vmatpush1.msra.mxu0 0.0
    %2390 = vmatprep.subr.mxu0 0.0
    %2391 = vmatpush1.msra.mxu0 0.0
    %2392 = vmatprep.subr.mxu0 0.0
    %2393 = vmatpush1.msra.mxu0 0.0
    %2394 = vmatprep.subr.mxu0 0.0
    %2395 = vmatpush1.msra.mxu0 0.0
    %2396 = vmatprep.subr.mxu0 0.0
    %2397 = vmatpush1.msra.mxu0 0.0
    %2398 = vmatprep.subr.mxu0 0.0
    %2399 = vmatpush1.msra.mxu0 0.0
    %2400 = vmatprep.subr.mxu0 0.0
    %2401 = vmatpush1.msra.mxu0 0.0
    %2402 = vmatprep.subr.mxu0 0.0
    %2403 = vmatpush1.msra.mxu0 0.0
    %2404 = vmatprep.subr.mxu0 0.0
    %2405 = vmatpush1.msra.mxu0 0.0
    %2406 = vmatprep.subr.mxu0 0.0
    %2407 = vmatpush1.msra.mxu0 0.0
    %2408 = vmatprep.subr.mxu0 0.0
    %2409 = vmatpush1.msra.mxu0 0.0
    %2410 = vmatprep.subr.mxu0 0.0
    %2411 = vmatpush1.msra.mxu0 0.0
    %2412 = vmatprep.subr.mxu0 0.0
    %2413 = vmatpush1.msra.mxu0 0.0
    %2414 = vmatprep.subr.mxu0 0.0
    %2415 = vmatpush1.msra.mxu0 0.0
    %2416 = vmatprep.subr.mxu0 0.0
    %2417 = vmatpush1.msra.mxu0 0.0
    %2418 = vmatprep.subr.mxu0 0.0
    %2419 = vmatpush1.msra.mxu0 0.0
    %2420 = vmatprep.subr.mxu0 0.0
    %2421 = vmatpush1.msra.mxu0 0.0
    %2422 = vmatprep.subr.mxu0 0.0
    %2423 = vmatpush1.msra.mxu0 0.0
    %2424 = vmatprep.subr.mxu0 0.0
    %2425 = vmatpush1.msra.mxu0 0.0
    %2426 = vmatprep.mubr.f32.mxu0 0.0
    %2427 = vmatmul.mubr.f32.gmra.mrb[0].mxu0 %v2360
    %v2428 = vpop.f32.mrb[0].mxu0
    %v2429 = vadd.f32 0.0, %v2428
    %v2430 = vpop.f32.mrb[0].mxu0
    %2431 = vdwg.mxu0
    %v2433 = vrot.slane %v2429, 6
    %v2435 = vadd.f32 %v2239, %v2433
    %v2436 = vxor.u32 %v2435, 2147483648
    %v2437 = vmul.f32 %v2436, 1.442695
    %v2438 = vpow.pop %v2437
    %v2439 = vadd.f32 %v2438, 1.0
    %v2440 = vrcp.pop %v2439
    %v2441 = vmul.f32 1.0, %v2440
    %v2442 = vtanh.pop %v2435
    %v2444 = vrot.slane %v2348, 6
    %v2446 = vmul.f32 %v2441, %v2444
    %2448 = vrot.lane.b32.xlu0 %v2442, 64
    %v2449 = vpop.permute.xlu0 %2448
    %v2451 = vmul.f32 %v2441, %v2449
    %2453 = vrot.lane.b32.xlu0 %v2451, 32
    %v2454 = vpop.permute.xlu0 %2453
    %v2456 = vadd.f32 %v2446, %v2454
    %v2457 = vtanh.pop %v2456
    %2459 = vrot.lane.b32.xlu0 %v2457, 64
    %v2460 = vpop.permute.xlu0 %2459
    %v2462 = vmul.f32 %v2441, %v2460
    %2464 = vrot.lane.b32.xlu0 %v2462, 32
    %v2465 = vpop.permute.xlu0 %2464
    %2467 = vst.msk [vmem:[#allocation2] sm:$0xc] %vm512, %v2465
    %v2468 = vrot.slane %v2462, 2
    %2469 = vrot.lane.b32.xlu0 %v2468, 32
    %v2470 = vpop.permute.xlu0 %2469
    %v2471 = vsel %vm296, %v2470, 0
    %2473 = vmatprep.subr.mxu0 0.0
    %2474 = vmatpush1.msra.mxu0 %v2247
    %2475 = vmatprep.subr.mxu0 0.0
    %2476 = vmatpush1.msra.mxu0 %v2248
    %2477 = vmatprep.subr.mxu0 0.0
    %2478 = vmatpush1.msra.mxu0 %v2249
    %2479 = vmatprep.subr.mxu0 0.0
    %2480 = vmatpush1.msra.mxu0 %v2250
    %2481 = vmatprep.subr.mxu0 0.0
    %2482 = vmatpush1.msra.mxu0 0.0
    %2483 = vmatprep.subr.mxu0 0.0
    %2484 = vmatpush1.msra.mxu0 0.0
    %2485 = vmatprep.subr.mxu0 0.0
    %2486 = vmatpush1.msra.mxu0 0.0
    %2487 = vmatprep.subr.mxu0 0.0
    %2488 = vmatpush1.msra.mxu0 0.0
    %2489 = vmatprep.subr.mxu0 0.0
    %2490 = vmatpush1.msra.mxu0 0.0
    %2491 = vmatprep.subr.mxu0 0.0
    %2492 = vmatpush1.msra.mxu0 0.0
    %2493 = vmatprep.subr.mxu0 0.0
    %2494 = vmatpush1.msra.mxu0 0.0
    %2495 = vmatprep.subr.mxu0 0.0
    %2496 = vmatpush1.msra.mxu0 0.0
    %2497 = vmatprep.subr.mxu0 0.0
    %2498 = vmatpush1.msra.mxu0 0.0
    %2499 = vmatprep.subr.mxu0 0.0
    %2500 = vmatpush1.msra.mxu0 0.0
    %2501 = vmatprep.subr.mxu0 0.0
    %2502 = vmatpush1.msra.mxu0 0.0
    %2503 = vmatprep.subr.mxu0 0.0
    %2504 = vmatpush1.msra.mxu0 0.0
    %2505 = vmatprep.subr.mxu0 0.0
    %2506 = vmatpush1.msra.mxu0 0.0
    %2507 = vmatprep.subr.mxu0 0.0
    %2508 = vmatpush1.msra.mxu0 0.0
    %2509 = vmatprep.subr.mxu0 0.0
    %2510 = vmatpush1.msra.mxu0 0.0
    %2511 = vmatprep.subr.mxu0 0.0
    %2512 = vmatpush1.msra.mxu0 0.0
    %2513 = vmatprep.subr.mxu0 0.0
    %2514 = vmatpush1.msra.mxu0 0.0
    %2515 = vmatprep.subr.mxu0 0.0
    %2516 = vmatpush1.msra.mxu0 0.0
    %2517 = vmatprep.subr.mxu0 0.0
    %2518 = vmatpush1.msra.mxu0 0.0
    %2519 = vmatprep.subr.mxu0 0.0
    %2520 = vmatpush1.msra.mxu0 0.0
    %2521 = vmatprep.subr.mxu0 0.0
    %2522 = vmatpush1.msra.mxu0 0.0
    %2523 = vmatprep.subr.mxu0 0.0
    %2524 = vmatpush1.msra.mxu0 0.0
    %2525 = vmatprep.subr.mxu0 0.0
    %2526 = vmatpush1.msra.mxu0 0.0
    %2527 = vmatprep.subr.mxu0 0.0
    %2528 = vmatpush1.msra.mxu0 0.0
    %2529 = vmatprep.subr.mxu0 0.0
    %2530 = vmatpush1.msra.mxu0 0.0
    %2531 = vmatprep.subr.mxu0 0.0
    %2532 = vmatpush1.msra.mxu0 0.0
    %2533 = vmatprep.subr.mxu0 0.0
    %2534 = vmatpush1.msra.mxu0 0.0
    %2535 = vmatprep.subr.mxu0 0.0
    %2536 = vmatpush1.msra.mxu0 0.0
    %2537 = vmatprep.mubr.f32.mxu0 0.0
    %2538 = vmatmul.mubr.f32.gmra.mrb[0].mxu0 %v2471
    %v2539 = vpop.f32.mrb[0].mxu0
    %v2540 = vadd.f32 0.0, %v2539
    %v2541 = vpop.f32.mrb[0].mxu0
    %2542 = vdwg.mxu0
    %v2544 = vrot.slane %v2540, 4
    %v2546 = vadd.f32 %v2239, %v2544
    %v2547 = vxor.u32 %v2546, 2147483648
    %v2548 = vmul.f32 %v2547, 1.442695
    %v2549 = vpow.pop %v2548
    %v2550 = vadd.f32 %v2549, 1.0
    %v2551 = vrcp.pop %v2550
    %v2552 = vmul.f32 1.0, %v2551
    %v2553 = vtanh.pop %v2546
    %v2555 = vrot.slane %v2456, 6
    %v2557 = vmul.f32 %v2552, %v2555
    %2559 = vrot.lane.b32.xlu0 %v2553, 64
    %v2560 = vpop.permute.xlu0 %2559
    %v2562 = vmul.f32 %v2552, %v2560
    %2564 = vrot.lane.b32.xlu0 %v2562, 32
    %v2565 = vpop.permute.xlu0 %2564
    %v2567 = vadd.f32 %v2557, %v2565
    %v2568 = vtanh.pop %v2567
    %2570 = vrot.lane.b32.xlu0 %v2568, 64
    %v2571 = vpop.permute.xlu0 %2570
    %v2573 = vmul.f32 %v2552, %v2571
    %2575 = vrot.lane.b32.xlu0 %v2573, 32
    %v2576 = vpop.permute.xlu0 %2575
    %2578 = vst.msk [vmem:[#allocation2] sm:$0x30] %vm624, %v2576
    %v2579 = vrot.slane %v2573, 4
    %2580 = vrot.lane.b32.xlu0 %v2579, 32
    %v2581 = vpop.permute.xlu0 %2580
    %v2582 = vsel %vm296, %v2581, 0
    %2584 = vmatprep.subr.mxu0 0.0
    %2585 = vmatpush1.msra.mxu0 %v2247
    %2586 = vmatprep.subr.mxu0 0.0
    %2587 = vmatpush1.msra.mxu0 %v2248
    %2588 = vmatprep.subr.mxu0 0.0
    %2589 = vmatpush1.msra.mxu0 %v2249
    %2590 = vmatprep.subr.mxu0 0.0
    %2591 = vmatpush1.msra.mxu0 %v2250
    %2592 = vmatprep.subr.mxu0 0.0
    %2593 = vmatpush1.msra.mxu0 0.0
    %2594 = vmatprep.subr.mxu0 0.0
    %2595 = vmatpush1.msra.mxu0 0.0
    %2596 = vmatprep.subr.mxu0 0.0
    %2597 = vmatpush1.msra.mxu0 0.0
    %2598 = vmatprep.subr.mxu0 0.0
    %2599 = vmatpush1.msra.mxu0 0.0
    %2600 = vmatprep.subr.mxu0 0.0
    %2601 = vmatpush1.msra.mxu0 0.0
    %2602 = vmatprep.subr.mxu0 0.0
    %2603 = vmatpush1.msra.mxu0 0.0
    %2604 = vmatprep.subr.mxu0 0.0
    %2605 = vmatpush1.msra.mxu0 0.0
    %2606 = vmatprep.subr.mxu0 0.0
    %2607 = vmatpush1.msra.mxu0 0.0
    %2608 = vmatprep.subr.mxu0 0.0
    %2609 = vmatpush1.msra.mxu0 0.0
    %2610 = vmatprep.subr.mxu0 0.0
    %2611 = vmatpush1.msra.mxu0 0.0
    %2612 = vmatprep.subr.mxu0 0.0
    %2613 = vmatpush1.msra.mxu0 0.0
    %2614 = vmatprep.subr.mxu0 0.0
    %2615 = vmatpush1.msra.mxu0 0.0
    %2616 = vmatprep.subr.mxu0 0.0
    %2617 = vmatpush1.msra.mxu0 0.0
    %2618 = vmatprep.subr.mxu0 0.0
    %2619 = vmatpush1.msra.mxu0 0.0
    %2620 = vmatprep.subr.mxu0 0.0
    %2621 = vmatpush1.msra.mxu0 0.0
    %2622 = vmatprep.subr.mxu0 0.0
    %2623 = vmatpush1.msra.mxu0 0.0
    %2624 = vmatprep.subr.mxu0 0.0
    %2625 = vmatpush1.msra.mxu0 0.0
    %2626 = vmatprep.subr.mxu0 0.0
    %2627 = vmatpush1.msra.mxu0 0.0
    %2628 = vmatprep.subr.mxu0 0.0
    %2629 = vmatpush1.msra.mxu0 0.0
    %2630 = vmatprep.subr.mxu0 0.0
    %2631 = vmatpush1.msra.mxu0 0.0
    %2632 = vmatprep.subr.mxu0 0.0
    %2633 = vmatpush1.msra.mxu0 0.0
    %2634 = vmatprep.subr.mxu0 0.0
    %2635 = vmatpush1.msra.mxu0 0.0
    %2636 = vmatprep.subr.mxu0 0.0
    %2637 = vmatpush1.msra.mxu0 0.0
    %2638 = vmatprep.subr.mxu0 0.0
    %2639 = vmatpush1.msra.mxu0 0.0
    %2640 = vmatprep.subr.mxu0 0.0
    %2641 = vmatpush1.msra.mxu0 0.0
    %2642 = vmatprep.subr.mxu0 0.0
    %2643 = vmatpush1.msra.mxu0 0.0
    %2644 = vmatprep.subr.mxu0 0.0
    %2645 = vmatpush1.msra.mxu0 0.0
    %2646 = vmatprep.subr.mxu0 0.0
    %2647 = vmatpush1.msra.mxu0 0.0
    %2648 = vmatprep.mubr.f32.mxu0 0.0
    %2649 = vmatmul.mubr.f32.gmra.mrb[0].mxu0 %v2582
    %v2650 = vpop.f32.mrb[0].mxu0
    %v2651 = vadd.f32 0.0, %v2650
    %v2652 = vpop.f32.mrb[0].mxu0
    %2653 = vdwg.mxu0
    %v2655 = vrot.slane %v2651, 2
    %v2657 = vadd.f32 %v2239, %v2655
    %v2658 = vxor.u32 %v2657, 2147483648
    %v2659 = vmul.f32 %v2658, 1.442695
    %v2660 = vpow.pop %v2659
    %v2661 = vadd.f32 %v2660, 1.0
    %v2662 = vrcp.pop %v2661
    %v2663 = vmul.f32 1.0, %v2662
    %v2664 = vtanh.pop %v2657
    %v2666 = vrot.slane %v2567, 6
    %v2668 = vmul.f32 %v2663, %v2666
    %2670 = vrot.lane.b32.xlu0 %v2664, 64
    %v2671 = vpop.permute.xlu0 %2670
    %v2673 = vmul.f32 %v2663, %v2671
    %2675 = vrot.lane.b32.xlu0 %v2673, 32
    %v2676 = vpop.permute.xlu0 %2675
    %v2678 = vadd.f32 %v2668, %v2676
    %v2679 = vtanh.pop %v2678
    %2681 = vrot.lane.b32.xlu0 %v2679, 64
    %v2682 = vpop.permute.xlu0 %2681
    %v2684 = vmul.f32 %v2663, %v2682
    %2686 = vrot.lane.b32.xlu0 %v2684, 32
    %v2687 = vpop.permute.xlu0 %2686
    %2689 = vst.msk [vmem:[#allocation2] sm:$0xc0] %vm736, %v2687
    %v2690 = vrot.slane %v2684, 6
    %2691 = vrot.lane.b32.xlu0 %v2690, 32
    %v2692 = vpop.permute.xlu0 %2691
    %v2693 = vsel %vm296, %v2692, 0
    %2695 = vmatprep.subr.mxu0 0.0
    %2696 = vmatpush1.msra.mxu0 %v2247
    %2697 = vmatprep.subr.mxu0 0.0
    %2698 = vmatpush1.msra.mxu0 %v2248
    %2699 = vmatprep.subr.mxu0 0.0
    %2700 = vmatpush1.msra.mxu0 %v2249
    %2701 = vmatprep.subr.mxu0 0.0
    %2702 = vmatpush1.msra.mxu0 %v2250
    %2703 = vmatprep.subr.mxu0 0.0
    %2704 = vmatpush1.msra.mxu0 0.0
    %2705 = vmatprep.subr.mxu0 0.0
    %2706 = vmatpush1.msra.mxu0 0.0
    %2707 = vmatprep.subr.mxu0 0.0
    %2708 = vmatpush1.msra.mxu0 0.0
    %2709 = vmatprep.subr.mxu0 0.0
    %2710 = vmatpush1.msra.mxu0 0.0
    %2711 = vmatprep.subr.mxu0 0.0
    %2712 = vmatpush1.msra.mxu0 0.0
    %2713 = vmatprep.subr.mxu0 0.0
    %2714 = vmatpush1.msra.mxu0 0.0
    %2715 = vmatprep.subr.mxu0 0.0
    %2716 = vmatpush1.msra.mxu0 0.0
    %2717 = vmatprep.subr.mxu0 0.0
    %2718 = vmatpush1.msra.mxu0 0.0
    %2719 = vmatprep.subr.mxu0 0.0
    %2720 = vmatpush1.msra.mxu0 0.0
    %2721 = vmatprep.subr.mxu0 0.0
    %2722 = vmatpush1.msra.mxu0 0.0
    %2723 = vmatprep.subr.mxu0 0.0
    %2724 = vmatpush1.msra.mxu0 0.0
    %2725 = vmatprep.subr.mxu0 0.0
    %2726 = vmatpush1.msra.mxu0 0.0
    %2727 = vmatprep.subr.mxu0 0.0
    %2728 = vmatpush1.msra.mxu0 0.0
    %2729 = vmatprep.subr.mxu0 0.0
    %2730 = vmatpush1.msra.mxu0 0.0
    %2731 = vmatprep.subr.mxu0 0.0
    %2732 = vmatpush1.msra.mxu0 0.0
    %2733 = vmatprep.subr.mxu0 0.0
    %2734 = vmatpush1.msra.mxu0 0.0
    %2735 = vmatprep.subr.mxu0 0.0
    %2736 = vmatpush1.msra.mxu0 0.0
    %2737 = vmatprep.subr.mxu0 0.0
    %2738 = vmatpush1.msra.mxu0 0.0
    %2739 = vmatprep.subr.mxu0 0.0
    %2740 = vmatpush1.msra.mxu0 0.0
    %2741 = vmatprep.subr.mxu0 0.0
    %2742 = vmatpush1.msra.mxu0 0.0
    %2743 = vmatprep.subr.mxu0 0.0
    %2744 = vmatpush1.msra.mxu0 0.0
    %2745 = vmatprep.subr.mxu0 0.0
    %2746 = vmatpush1.msra.mxu0 0.0
    %2747 = vmatprep.subr.mxu0 0.0
    %2748 = vmatpush1.msra.mxu0 0.0
    %2749 = vmatprep.subr.mxu0 0.0
    %2750 = vmatpush1.msra.mxu0 0.0
    %2751 = vmatprep.subr.mxu0 0.0
    %2752 = vmatpush1.msra.mxu0 0.0
    %2753 = vmatprep.subr.mxu0 0.0
    %2754 = vmatpush1.msra.mxu0 0.0
    %2755 = vmatprep.subr.mxu0 0.0
    %2756 = vmatpush1.msra.mxu0 0.0
    %2757 = vmatprep.subr.mxu0 0.0
    %2758 = vmatpush1.msra.mxu0 0.0
    %2759 = vmatprep.mubr.f32.mxu0 0.0
    %2760 = vmatmul.mubr.f32.gmra.mrb[0].mxu0 %v2693
    %v2761 = vpop.f32.mrb[0].mxu0
    %v2762 = vadd.f32 0.0, %v2761
    %v2763 = vpop.f32.mrb[0].mxu0
    %2764 = vdwg.mxu0
    %v2765 = vadd.f32 %v2244, %v2762
    %v2766 = vxor.u32 %v2765, 2147483648
    %v2767 = vmul.f32 %v2766, 1.442695
    %v2768 = vpow.pop %v2767
    %v2769 = vadd.f32 %v2768, 1.0
    %v2770 = vrcp.pop %v2769
    %v2771 = vmul.f32 1.0, %v2770
    %v2772 = vtanh.pop %v2765
    %v2774 = vrot.slane %v2678, 6
    %v2776 = vmul.f32 %v2771, %v2774
    %2778 = vrot.lane.b32.xlu0 %v2772, 64
    %v2779 = vpop.permute.xlu0 %2778
    %v2781 = vmul.f32 %v2771, %v2779
    %2783 = vrot.lane.b32.xlu0 %v2781, 32
    %v2784 = vpop.permute.xlu0 %2783
    %v2786 = vadd.f32 %v2776, %v2784
    %v2787 = vtanh.pop %v2786
    %2789 = vrot.lane.b32.xlu0 %v2787, 64
    %v2790 = vpop.permute.xlu0 %2789
    %v2792 = vmul.f32 %v2771, %v2790
    %2794 = vrot.lane.b32.xlu0 %v2792, 32
    %v2795 = vpop.permute.xlu0 %2794
    %2797 = vst.msk [vmem:[#allocation2 + $0x8] sm:$0x3] %vm403, %v2795
    %v2798 = vsel %vm296, %v2795, 0
    %2800 = vmatprep.subr.mxu0 0.0
    %2801 = vmatpush1.msra.mxu0 %v2247
    %2802 = vmatprep.subr.mxu0 0.0
    %2803 = vmatpush1.msra.mxu0 %v2248
    %2804 = vmatprep.subr.mxu0 0.0
    %2805 = vmatpush1.msra.mxu0 %v2249
    %2806 = vmatprep.subr.mxu0 0.0
    %2807 = vmatpush1.msra.mxu0 %v2250
    %2808 = vmatprep.subr.mxu0 0.0
    %2809 = vmatpush1.msra.mxu0 0.0
    %2810 = vmatprep.subr.mxu0 0.0
    %2811 = vmatpush1.msra.mxu0 0.0
    %2812 = vmatprep.subr.mxu0 0.0
    %2813 = vmatpush1.msra.mxu0 0.0
    %2814 = vmatprep.subr.mxu0 0.0
    %2815 = vmatpush1.msra.mxu0 0.0
    %2816 = vmatprep.subr.mxu0 0.0
    %2817 = vmatpush1.msra.mxu0 0.0
    %2818 = vmatprep.subr.mxu0 0.0
    %2819 = vmatpush1.msra.mxu0 0.0
    %2820 = vmatprep.subr.mxu0 0.0
    %2821 = vmatpush1.msra.mxu0 0.0
    %2822 = vmatprep.subr.mxu0 0.0
    %2823 = vmatpush1.msra.mxu0 0.0
    %2824 = vmatprep.subr.mxu0 0.0
    %2825 = vmatpush1.msra.mxu0 0.0
    %2826 = vmatprep.subr.mxu0 0.0
    %2827 = vmatpush1.msra.mxu0 0.0
    %2828 = vmatprep.subr.mxu0 0.0
    %2829 = vmatpush1.msra.mxu0 0.0
    %2830 = vmatprep.subr.mxu0 0.0
    %2831 = vmatpush1.msra.mxu0 0.0
    %2832 = vmatprep.subr.mxu0 0.0
    %2833 = vmatpush1.msra.mxu0 0.0
    %2834 = vmatprep.subr.mxu0 0.0
    %2835 = vmatpush1.msra.mxu0 0.0
    %2836 = vmatprep.subr.mxu0 0.0
    %2837 = vmatpush1.msra.mxu0 0.0
    %2838 = vmatprep.subr.mxu0 0.0
    %2839 = vmatpush1.msra.mxu0 0.0
    %2840 = vmatprep.subr.mxu0 0.0
    %2841 = vmatpush1.msra.mxu0 0.0
    %2842 = vmatprep.subr.mxu0 0.0
    %2843 = vmatpush1.msra.mxu0 0.0
    %2844 = vmatprep.subr.mxu0 0.0
    %2845 = vmatpush1.msra.mxu0 0.0
    %2846 = vmatprep.subr.mxu0 0.0
    %2847 = vmatpush1.msra.mxu0 0.0
    %2848 = vmatprep.subr.mxu0 0.0
    %2849 = vmatpush1.msra.mxu0 0.0
    %2850 = vmatprep.subr.mxu0 0.0
    %2851 = vmatpush1.msra.mxu0 0.0
    %2852 = vmatprep.subr.mxu0 0.0
    %2853 = vmatpush1.msra.mxu0 0.0
    %2854 = vmatprep.subr.mxu0 0.0
    %2855 = vmatpush1.msra.mxu0 0.0
    %2856 = vmatprep.subr.mxu0 0.0
    %2857 = vmatpush1.msra.mxu0 0.0
    %2858 = vmatprep.subr.mxu0 0.0
    %2859 = vmatpush1.msra.mxu0 0.0
    %2860 = vmatprep.subr.mxu0 0.0
    %2861 = vmatpush1.msra.mxu0 0.0
    %2862 = vmatprep.subr.mxu0 0.0
    %2863 = vmatpush1.msra.mxu0 0.0
    %2864 = vmatprep.mubr.f32.mxu0 0.0
    %2865 = vmatmul.mubr.f32.gmra.mrb[0].mxu0 %v2798
    %v2866 = vpop.f32.mrb[0].mxu0
    %v2867 = vadd.f32 0.0, %v2866
    %v2868 = vpop.f32.mrb[0].mxu0
    %2869 = vdwg.mxu0
    %v2871 = vrot.slane %v2867, 6
    %v2873 = vadd.f32 %v2244, %v2871
    %v2874 = vxor.u32 %v2873, 2147483648
    %v2875 = vmul.f32 %v2874, 1.442695
    %v2876 = vpow.pop %v2875
    %v2877 = vadd.f32 %v2876, 1.0
    %v2878 = vrcp.pop %v2877
    %v2879 = vmul.f32 1.0, %v2878
    %v2880 = vtanh.pop %v2873
    %v2882 = vrot.slane %v2786, 6
    %v2884 = vmul.f32 %v2879, %v2882
    %2886 = vrot.lane.b32.xlu0 %v2880, 64
    %v2887 = vpop.permute.xlu0 %2886
    %v2889 = vmul.f32 %v2879, %v2887
    %2891 = vrot.lane.b32.xlu0 %v2889, 32
    %v2892 = vpop.permute.xlu0 %2891
    %v2894 = vadd.f32 %v2884, %v2892
    %v2895 = vtanh.pop %v2894
    %2897 = vrot.lane.b32.xlu0 %v2895, 64
    %v2898 = vpop.permute.xlu0 %2897
    %v2900 = vmul.f32 %v2879, %v2898
    %2902 = vrot.lane.b32.xlu0 %v2900, 32
    %v2903 = vpop.permute.xlu0 %2902
    %2905 = vst.msk [vmem:[#allocation2 + $0x8] sm:$0xc] %vm512, %v2903
    %v2906 = vrot.slane %v2900, 2
    %2907 = vrot.lane.b32.xlu0 %v2906, 32
    %v2908 = vpop.permute.xlu0 %2907
    %v2909 = vsel %vm296, %v2908, 0
    %2911 = vmatprep.subr.mxu0 0.0
    %2912 = vmatpush1.msra.mxu0 %v2247
    %2913 = vmatprep.subr.mxu0 0.0
    %2914 = vmatpush1.msra.mxu0 %v2248
    %2915 = vmatprep.subr.mxu0 0.0
    %2916 = vmatpush1.msra.mxu0 %v2249
    %2917 = vmatprep.subr.mxu0 0.0
    %2918 = vmatpush1.msra.mxu0 %v2250
    %2919 = vmatprep.subr.mxu0 0.0
    %2920 = vmatpush1.msra.mxu0 0.0
    %2921 = vmatprep.subr.mxu0 0.0
    %2922 = vmatpush1.msra.mxu0 0.0
    %2923 = vmatprep.subr.mxu0 0.0
    %2924 = vmatpush1.msra.mxu0 0.0
    %2925 = vmatprep.subr.mxu0 0.0
    %2926 = vmatpush1.msra.mxu0 0.0
    %2927 = vmatprep.subr.mxu0 0.0
    %2928 = vmatpush1.msra.mxu0 0.0
    %2929 = vmatprep.subr.mxu0 0.0
    %2930 = vmatpush1.msra.mxu0 0.0
    %2931 = vmatprep.subr.mxu0 0.0
    %2932 = vmatpush1.msra.mxu0 0.0
    %2933 = vmatprep.subr.mxu0 0.0
    %2934 = vmatpush1.msra.mxu0 0.0
    %2935 = vmatprep.subr.mxu0 0.0
    %2936 = vmatpush1.msra.mxu0 0.0
    %2937 = vmatprep.subr.mxu0 0.0
    %2938 = vmatpush1.msra.mxu0 0.0
    %2939 = vmatprep.subr.mxu0 0.0
    %2940 = vmatpush1.msra.mxu0 0.0
    %2941 = vmatprep.subr.mxu0 0.0
    %2942 = vmatpush1.msra.mxu0 0.0
    %2943 = vmatprep.subr.mxu0 0.0
    %2944 = vmatpush1.msra.mxu0 0.0
    %2945 = vmatprep.subr.mxu0 0.0
    %2946 = vmatpush1.msra.mxu0 0.0
    %2947 = vmatprep.subr.mxu0 0.0
    %2948 = vmatpush1.msra.mxu0 0.0
    %2949 = vmatprep.subr.mxu0 0.0
    %2950 = vmatpush1.msra.mxu0 0.0
    %2951 = vmatprep.subr.mxu0 0.0
    %2952 = vmatpush1.msra.mxu0 0.0
    %2953 = vmatprep.subr.mxu0 0.0
    %2954 = vmatpush1.msra.mxu0 0.0
    %2955 = vmatprep.subr.mxu0 0.0
    %2956 = vmatpush1.msra.mxu0 0.0
    %2957 = vmatprep.subr.mxu0 0.0
    %2958 = vmatpush1.msra.mxu0 0.0
    %2959 = vmatprep.subr.mxu0 0.0
    %2960 = vmatpush1.msra.mxu0 0.0
    %2961 = vmatprep.subr.mxu0 0.0
    %2962 = vmatpush1.msra.mxu0 0.0
    %2963 = vmatprep.subr.mxu0 0.0
    %2964 = vmatpush1.msra.mxu0 0.0
    %2965 = vmatprep.subr.mxu0 0.0
    %2966 = vmatpush1.msra.mxu0 0.0
    %2967 = vmatprep.subr.mxu0 0.0
    %2968 = vmatpush1.msra.mxu0 0.0
    %2969 = vmatprep.subr.mxu0 0.0
    %2970 = vmatpush1.msra.mxu0 0.0
    %2971 = vmatprep.subr.mxu0 0.0
    %2972 = vmatpush1.msra.mxu0 0.0
    %2973 = vmatprep.subr.mxu0 0.0
    %2974 = vmatpush1.msra.mxu0 0.0
    %2975 = vmatprep.mubr.f32.mxu0 0.0
    %2976 = vmatmul.mubr.f32.gmra.mrb[0].mxu0 %v2909
    %v2977 = vpop.f32.mrb[0].mxu0
    %v2978 = vadd.f32 0.0, %v2977
    %v2979 = vpop.f32.mrb[0].mxu0
    %2980 = vdwg.mxu0
    %v2982 = vrot.slane %v2978, 4
    %v2984 = vadd.f32 %v2244, %v2982
    %v2985 = vxor.u32 %v2984, 2147483648
    %v2986 = vmul.f32 %v2985, 1.442695
    %v2987 = vpow.pop %v2986
    %v2988 = vadd.f32 %v2987, 1.0
    %v2989 = vrcp.pop %v2988
    %v2990 = vmul.f32 1.0, %v2989
    %v2991 = vtanh.pop %v2984
    %v2993 = vrot.slane %v2894, 6
    %v2995 = vmul.f32 %v2990, %v2993
    %2997 = vrot.lane.b32.xlu0 %v2991, 64
    %v2998 = vpop.permute.xlu0 %2997
    %v3000 = vmul.f32 %v2990, %v2998
    %3002 = vrot.lane.b32.xlu0 %v3000, 32
    %v3003 = vpop.permute.xlu0 %3002
    %v3005 = vadd.f32 %v2995, %v3003
    %v3006 = vtanh.pop %v3005
    %3008 = vrot.lane.b32.xlu0 %v3006, 64
    %v3009 = vpop.permute.xlu0 %3008
    %v3011 = vmul.f32 %v2990, %v3009
    %3013 = vrot.lane.b32.xlu0 %v3011, 32
    %v3014 = vpop.permute.xlu0 %3013
    %3016 = vst.msk [vmem:[#allocation2 + $0x8] sm:$0x30] %vm624, %v3014
    %v3017 = vrot.slane %v3011, 4
    %3018 = vrot.lane.b32.xlu0 %v3017, 32
    %v3019 = vpop.permute.xlu0 %3018
    %v3020 = vsel %vm296, %v3019, 0
    %3022 = vmatprep.subr.mxu0 0.0
    %3023 = vmatpush1.msra.mxu0 %v2247
    %3024 = vmatprep.subr.mxu0 0.0
    %3025 = vmatpush1.msra.mxu0 %v2248
    %3026 = vmatprep.subr.mxu0 0.0
    %3027 = vmatpush1.msra.mxu0 %v2249
    %3028 = vmatprep.subr.mxu0 0.0
    %3029 = vmatpush1.msra.mxu0 %v2250
    %3030 = vmatprep.subr.mxu0 0.0
    %3031 = vmatpush1.msra.mxu0 0.0
    %3032 = vmatprep.subr.mxu0 0.0
    %3033 = vmatpush1.msra.mxu0 0.0
    %3034 = vmatprep.subr.mxu0 0.0
    %3035 = vmatpush1.msra.mxu0 0.0
    %3036 = vmatprep.subr.mxu0 0.0
    %3037 = vmatpush1.msra.mxu0 0.0
    %3038 = vmatprep.subr.mxu0 0.0
    %3039 = vmatpush1.msra.mxu0 0.0
    %3040 = vmatprep.subr.mxu0 0.0
    %3041 = vmatpush1.msra.mxu0 0.0
    %3042 = vmatprep.subr.mxu0 0.0
    %3043 = vmatpush1.msra.mxu0 0.0
    %3044 = vmatprep.subr.mxu0 0.0
    %3045 = vmatpush1.msra.mxu0 0.0
    %3046 = vmatprep.subr.mxu0 0.0
    %3047 = vmatpush1.msra.mxu0 0.0
    %3048 = vmatprep.subr.mxu0 0.0
    %3049 = vmatpush1.msra.mxu0 0.0
    %3050 = vmatprep.subr.mxu0 0.0
    %3051 = vmatpush1.msra.mxu0 0.0
    %3052 = vmatprep.subr.mxu0 0.0
    %3053 = vmatpush1.msra.mxu0 0.0
    %3054 = vmatprep.subr.mxu0 0.0
    %3055 = vmatpush1.msra.mxu0 0.0
    %3056 = vmatprep.subr.mxu0 0.0
    %3057 = vmatpush1.msra.mxu0 0.0
    %3058 = vmatprep.subr.mxu0 0.0
    %3059 = vmatpush1.msra.mxu0 0.0
    %3060 = vmatprep.subr.mxu0 0.0
    %3061 = vmatpush1.msra.mxu0 0.0
    %3062 = vmatprep.subr.mxu0 0.0
    %3063 = vmatpush1.msra.mxu0 0.0
    %3064 = vmatprep.subr.mxu0 0.0
    %3065 = vmatpush1.msra.mxu0 0.0
    %3066 = vmatprep.subr.mxu0 0.0
    %3067 = vmatpush1.msra.mxu0 0.0
    %3068 = vmatprep.subr.mxu0 0.0
    %3069 = vmatpush1.msra.mxu0 0.0
    %3070 = vmatprep.subr.mxu0 0.0
    %3071 = vmatpush1.msra.mxu0 0.0
    %3072 = vmatprep.subr.mxu0 0.0
    %3073 = vmatpush1.msra.mxu0 0.0
    %3074 = vmatprep.subr.mxu0 0.0
    %3075 = vmatpush1.msra.mxu0 0.0
    %3076 = vmatprep.subr.mxu0 0.0
    %3077 = vmatpush1.msra.mxu0 0.0
    %3078 = vmatprep.subr.mxu0 0.0
    %3079 = vmatpush1.msra.mxu0 0.0
    %3080 = vmatprep.subr.mxu0 0.0
    %3081 = vmatpush1.msra.mxu0 0.0
    %3082 = vmatprep.subr.mxu0 0.0
    %3083 = vmatpush1.msra.mxu0 0.0
    %3084 = vmatprep.subr.mxu0 0.0
    %3085 = vmatpush1.msra.mxu0 0.0
    %3086 = vmatprep.mubr.f32.mxu0 0.0
    %3087 = vmatmul.mubr.f32.gmra.mrb[0].mxu0 %v3020
    %v3088 = vpop.f32.mrb[0].mxu0
    %v3089 = vadd.f32 0.0, %v3088
    %v3090 = vpop.f32.mrb[0].mxu0
    %3091 = vdwg.mxu0
    %v3093 = vrot.slane %v3089, 2
    %v3095 = vadd.f32 %v2244, %v3093
    %v3096 = vxor.u32 %v3095, 2147483648
    %v3097 = vmul.f32 %v3096, 1.442695
    %v3098 = vpow.pop %v3097
    %v3099 = vadd.f32 %v3098, 1.0
    %v3100 = vrcp.pop %v3099
    %v3101 = vmul.f32 1.0, %v3100
    %v3102 = vtanh.pop %v3095
    %v3104 = vrot.slane %v3005, 6
    %v3106 = vmul.f32 %v3101, %v3104
    %3108 = vrot.lane.b32.xlu0 %v3102, 64
    %v3109 = vpop.permute.xlu0 %3108
    %v3111 = vmul.f32 %v3101, %v3109
    %3113 = vrot.lane.b32.xlu0 %v3111, 32
    %v3114 = vpop.permute.xlu0 %3113
    %v3116 = vadd.f32 %v3106, %v3114
    %v3117 = vtanh.pop %v3116
    %3119 = vrot.lane.b32.xlu0 %v3117, 64
    %v3120 = vpop.permute.xlu0 %3119
    %v3122 = vmul.f32 %v3101, %v3120
    %3124 = vrot.lane.b32.xlu0 %v3122, 32
    %v3125 = vpop.permute.xlu0 %3124
    %3127 = vst.msk [vmem:[#allocation2 + $0x8] sm:$0xc0] %vm736, %v3125
    %v3128 = vld [vmem:[#allocation2] sm:$0xff]
    %v3129 = vld [vmem:[#allocation2 + $0x8] sm:$0xff]
    %v3130 = vld [vmem:[%s12] sm:$0xff]
    %v3131 = vld [vmem:[%s12 + $0x8] sm:$0xff]
    %v3132 = vld [vmem:[%s12 + $0x10] sm:$0xff]
    %v3133 = vld [vmem:[%s12 + $0x18] sm:$0xff]
    %v3134 = vld [vmem:[%s14] sm:$0x1]
    %v3136 = vlaneseq
    %v3137 = vshrl.u32 %v3136, 7
    %v3138 = vsub.s32 0, %v3137
    %v3139 = vrot.slane %v3134, %v3138
    %v3142 = vsel %vm296, %v3128, 0
    %v3145 = vsel %vm296, %v3129, 0
    %3147 = vmatprep.subr.mxu0 0.0
    %3148 = vmatpush1.msra.mxu0 %v3130
    %3149 = vmatprep.subr.mxu0 0.0
    %3150 = vmatpush1.msra.mxu0 %v3131
    %3151 = vmatprep.subr.mxu0 0.0
    %3152 = vmatpush1.msra.mxu0 %v3132
    %3153 = vmatprep.subr.mxu0 0.0
    %3154 = vmatpush1.msra.mxu0 %v3133
    %3155 = vmatprep.subr.mxu0 0.0
    %3156 = vmatpush1.msra.mxu0 0.0
    %3157 = vmatprep.subr.mxu0 0.0
    %3158 = vmatpush1.msra.mxu0 0.0
    %3159 = vmatprep.subr.mxu0 0.0
    %3160 = vmatpush1.msra.mxu0 0.0
    %3161 = vmatprep.subr.mxu0 0.0
    %3162 = vmatpush1.msra.mxu0 0.0
    %3163 = vmatprep.subr.mxu0 0.0
    %3164 = vmatpush1.msra.mxu0 0.0
    %3165 = vmatprep.subr.mxu0 0.0
    %3166 = vmatpush1.msra.mxu0 0.0
    %3167 = vmatprep.subr.mxu0 0.0
    %3168 = vmatpush1.msra.mxu0 0.0
    %3169 = vmatprep.subr.mxu0 0.0
    %3170 = vmatpush1.msra.mxu0 0.0
    %3171 = vmatprep.subr.mxu0 0.0
    %3172 = vmatpush1.msra.mxu0 0.0
    %3173 = vmatprep.subr.mxu0 0.0
    %3174 = vmatpush1.msra.mxu0 0.0
    %3175 = vmatprep.subr.mxu0 0.0
    %3176 = vmatpush1.msra.mxu0 0.0
    %3177 = vmatprep.subr.mxu0 0.0
    %3178 = vmatpush1.msra.mxu0 0.0
    %3179 = vmatprep.subr.mxu0 0.0
    %3180 = vmatpush1.msra.mxu0 0.0
    %3181 = vmatprep.subr.mxu0 0.0
    %3182 = vmatpush1.msra.mxu0 0.0
    %3183 = vmatprep.subr.mxu0 0.0
    %3184 = vmatpush1.msra.mxu0 0.0
    %3185 = vmatprep.subr.mxu0 0.0
    %3186 = vmatpush1.msra.mxu0 0.0
    %3187 = vmatprep.subr.mxu0 0.0
    %3188 = vmatpush1.msra.mxu0 0.0
    %3189 = vmatprep.subr.mxu0 0.0
    %3190 = vmatpush1.msra.mxu0 0.0
    %3191 = vmatprep.subr.mxu0 0.0
    %3192 = vmatpush1.msra.mxu0 0.0
    %3193 = vmatprep.subr.mxu0 0.0
    %3194 = vmatpush1.msra.mxu0 0.0
    %3195 = vmatprep.subr.mxu0 0.0
    %3196 = vmatpush1.msra.mxu0 0.0
    %3197 = vmatprep.subr.mxu0 0.0
    %3198 = vmatpush1.msra.mxu0 0.0
    %3199 = vmatprep.subr.mxu0 0.0
    %3200 = vmatpush1.msra.mxu0 0.0
    %3201 = vmatprep.subr.mxu0 0.0
    %3202 = vmatpush1.msra.mxu0 0.0
    %3203 = vmatprep.subr.mxu0 0.0
    %3204 = vmatpush1.msra.mxu0 0.0
    %3205 = vmatprep.subr.mxu0 0.0
    %3206 = vmatpush1.msra.mxu0 0.0
    %3207 = vmatprep.subr.mxu0 0.0
    %3208 = vmatpush1.msra.mxu0 0.0
    %3209 = vmatprep.subr.mxu0 0.0
    %3210 = vmatpush1.msra.mxu0 0.0
    %3211 = vmatprep.mubr.f32.mxu0 0.0
    %3212 = vmatmul.mubr.f32.gmra.mrb[0].mxu0 %v3142
    %v3213 = vpop.f32.mrb[0].mxu0
    %v3214 = vadd.f32 %v3139, %v3213
    %v3215 = vpop.f32.mrb[0].mxu0
    %3216 = vmatprep.mubr.f32.mxu0 0.0
    %3217 = vmatmul.mubr.f32.gmra.mrb[0].mxu0 %v3145
    %v3218 = vpop.f32.mrb[0].mxu0
    %v3219 = vadd.f32 %v3139, %v3218
    %v3220 = vpop.f32.mrb[0].mxu0
    %3221 = vdwg.mxu0
    %v3222 = vld [vmem:[#allocation18] sm:$0xff]
    %v3223 = vld [vmem:[#allocation18 + $0x8] sm:$0xff]
    %v3224 = vld [vmem:[#allocation18 + $0x10] sm:$0xff]
    %v3225 = vld [vmem:[#allocation18 + $0x18] sm:$0xff]
    %v3226 = vld [vmem:[%s1274] sm:$0x3]
    %v3227 = vld [vmem:[%s1276] sm:$0x3]
    %v3229 = vsel %vm296, %v3226, 0
    %3231 = vmatprep.subr.mxu0 0.0
    %3232 = vmatpush1.msra.mxu0 %v3222
    %3233 = vmatprep.subr.mxu0 0.0
    %3234 = vmatpush1.msra.mxu0 %v3223
    %3235 = vmatprep.subr.mxu0 0.0
    %3236 = vmatpush1.msra.mxu0 %v3224
    %3237 = vmatprep.subr.mxu0 0.0
    %3238 = vmatpush1.msra.mxu0 %v3225
    %3239 = vmatprep.subr.mxu0 0.0
    %3240 = vmatpush1.msra.mxu0 0.0
    %3241 = vmatprep.subr.mxu0 0.0
    %3242 = vmatpush1.msra.mxu0 0.0
    %3243 = vmatprep.subr.mxu0 0.0
    %3244 = vmatpush1.msra.mxu0 0.0
    %3245 = vmatprep.subr.mxu0 0.0
    %3246 = vmatpush1.msra.mxu0 0.0
    %3247 = vmatprep.subr.mxu0 0.0
    %3248 = vmatpush1.msra.mxu0 0.0
    %3249 = vmatprep.subr.mxu0 0.0
    %3250 = vmatpush1.msra.mxu0 0.0
    %3251 = vmatprep.subr.mxu0 0.0
    %3252 = vmatpush1.msra.mxu0 0.0
    %3253 = vmatprep.subr.mxu0 0.0
    %3254 = vmatpush1.msra.mxu0 0.0
    %3255 = vmatprep.subr.mxu0 0.0
    %3256 = vmatpush1.msra.mxu0 0.0
    %3257 = vmatprep.subr.mxu0 0.0
    %3258 = vmatpush1.msra.mxu0 0.0
    %3259 = vmatprep.subr.mxu0 0.0
    %3260 = vmatpush1.msra.mxu0 0.0
    %3261 = vmatprep.subr.mxu0 0.0
    %3262 = vmatpush1.msra.mxu0 0.0
    %3263 = vmatprep.subr.mxu0 0.0
    %3264 = vmatpush1.msra.mxu0 0.0
    %3265 = vmatprep.subr.mxu0 0.0
    %3266 = vmatpush1.msra.mxu0 0.0
    %3267 = vmatprep.subr.mxu0 0.0
    %3268 = vmatpush1.msra.mxu0 0.0
    %3269 = vmatprep.subr.mxu0 0.0
    %3270 = vmatpush1.msra.mxu0 0.0
    %3271 = vmatprep.subr.mxu0 0.0
    %3272 = vmatpush1.msra.mxu0 0.0
    %3273 = vmatprep.subr.mxu0 0.0
    %3274 = vmatpush1.msra.mxu0 0.0
    %3275 = vmatprep.subr.mxu0 0.0
    %3276 = vmatpush1.msra.mxu0 0.0
    %3277 = vmatprep.subr.mxu0 0.0
    %3278 = vmatpush1.msra.mxu0 0.0
    %3279 = vmatprep.subr.mxu0 0.0
    %3280 = vmatpush1.msra.mxu0 0.0
    %3281 = vmatprep.subr.mxu0 0.0
    %3282 = vmatpush1.msra.mxu0 0.0
    %3283 = vmatprep.subr.mxu0 0.0
    %3284 = vmatpush1.msra.mxu0 0.0
    %3285 = vmatprep.subr.mxu0 0.0
    %3286 = vmatpush1.msra.mxu0 0.0
    %3287 = vmatprep.subr.mxu0 0.0
    %3288 = vmatpush1.msra.mxu0 0.0
    %3289 = vmatprep.subr.mxu0 0.0
    %3290 = vmatpush1.msra.mxu0 0.0
    %3291 = vmatprep.subr.mxu0 0.0
    %3292 = vmatpush1.msra.mxu0 0.0
    %3293 = vmatprep.subr.mxu0 0.0
    %3294 = vmatpush1.msra.mxu0 0.0
    %3295 = vmatprep.mubr.f32.mxu0 0.0
    %3296 = vmatmul.mubr.f32.gmra.mrb[0].mxu0 %v3229
    %v3297 = vpop.f32.mrb[0].mxu0
    %v3298 = vadd.f32 0.0, %v3297
    %v3299 = vpop.f32.mrb[0].mxu0
    %3300 = vdwg.mxu0
    %v3301 = vadd.f32 %v3214, %v3298
    %v3302 = vxor.u32 %v3301, 2147483648
    %v3303 = vmul.f32 %v3302, 1.442695
    %v3304 = vpow.pop %v3303
    %v3305 = vadd.f32 %v3304, 1.0
    %v3306 = vrcp.pop %v3305
    %v3307 = vmul.f32 1.0, %v3306
    %v3308 = vtanh.pop %v3301
    %3310 = vrot.lane.b32.xlu0 %v3227, 32
    %v3311 = vpop.permute.xlu0 %3310
    %v3313 = vmul.f32 %v3307, %v3311
    %3315 = vrot.lane.b32.xlu0 %v3308, 64
    %v3316 = vpop.permute.xlu0 %3315
    %v3318 = vmul.f32 %v3307, %v3316
    %3320 = vrot.lane.b32.xlu0 %v3318, 32
    %v3321 = vpop.permute.xlu0 %3320
    %v3323 = vadd.f32 %v3313, %v3321
    %v3324 = vtanh.pop %v3323
    %3326 = vrot.lane.b32.xlu0 %v3324, 64
    %v3327 = vpop.permute.xlu0 %3326
    %v3329 = vmul.f32 %v3307, %v3327
    %3331 = vrot.lane.b32.xlu0 %v3329, 32
    %v3332 = vpop.permute.xlu0 %3331
    %v3333 = vsel %vm296, %v3332, 0
    %3335 = vmatprep.subr.mxu0 0.0
    %3336 = vmatpush1.msra.mxu0 %v3222
    %3337 = vmatprep.subr.mxu0 0.0
    %3338 = vmatpush1.msra.mxu0 %v3223
    %3339 = vmatprep.subr.mxu0 0.0
    %3340 = vmatpush1.msra.mxu0 %v3224
    %3341 = vmatprep.subr.mxu0 0.0
    %3342 = vmatpush1.msra.mxu0 %v3225
    %3343 = vmatprep.subr.mxu0 0.0
    %3344 = vmatpush1.msra.mxu0 0.0
    %3345 = vmatprep.subr.mxu0 0.0
    %3346 = vmatpush1.msra.mxu0 0.0
    %3347 = vmatprep.subr.mxu0 0.0
    %3348 = vmatpush1.msra.mxu0 0.0
    %3349 = vmatprep.subr.mxu0 0.0
    %3350 = vmatpush1.msra.mxu0 0.0
    %3351 = vmatprep.subr.mxu0 0.0
    %3352 = vmatpush1.msra.mxu0 0.0
    %3353 = vmatprep.subr.mxu0 0.0
    %3354 = vmatpush1.msra.mxu0 0.0
    %3355 = vmatprep.subr.mxu0 0.0
    %3356 = vmatpush1.msra.mxu0 0.0
    %3357 = vmatprep.subr.mxu0 0.0
    %3358 = vmatpush1.msra.mxu0 0.0
    %3359 = vmatprep.subr.mxu0 0.0
    %3360 = vmatpush1.msra.mxu0 0.0
    %3361 = vmatprep.subr.mxu0 0.0
    %3362 = vmatpush1.msra.mxu0 0.0
    %3363 = vmatprep.subr.mxu0 0.0
    %3364 = vmatpush1.msra.mxu0 0.0
    %3365 = vmatprep.subr.mxu0 0.0
    %3366 = vmatpush1.msra.mxu0 0.0
    %3367 = vmatprep.subr.mxu0 0.0
    %3368 = vmatpush1.msra.mxu0 0.0
    %3369 = vmatprep.subr.mxu0 0.0
    %3370 = vmatpush1.msra.mxu0 0.0
    %3371 = vmatprep.subr.mxu0 0.0
    %3372 = vmatpush1.msra.mxu0 0.0
    %3373 = vmatprep.subr.mxu0 0.0
    %3374 = vmatpush1.msra.mxu0 0.0
    %3375 = vmatprep.subr.mxu0 0.0
    %3376 = vmatpush1.msra.mxu0 0.0
    %3377 = vmatprep.subr.mxu0 0.0
    %3378 = vmatpush1.msra.mxu0 0.0
    %3379 = vmatprep.subr.mxu0 0.0
    %3380 = vmatpush1.msra.mxu0 0.0
    %3381 = vmatprep.subr.mxu0 0.0
    %3382 = vmatpush1.msra.mxu0 0.0
    %3383 = vmatprep.subr.mxu0 0.0
    %3384 = vmatpush1.msra.mxu0 0.0
    %3385 = vmatprep.subr.mxu0 0.0
    %3386 = vmatpush1.msra.mxu0 0.0
    %3387 = vmatprep.subr.mxu0 0.0
    %3388 = vmatpush1.msra.mxu0 0.0
    %3389 = vmatprep.subr.mxu0 0.0
    %3390 = vmatpush1.msra.mxu0 0.0
    %3391 = vmatprep.subr.mxu0 0.0
    %3392 = vmatpush1.msra.mxu0 0.0
    %3393 = vmatprep.subr.mxu0 0.0
    %3394 = vmatpush1.msra.mxu0 0.0
    %3395 = vmatprep.subr.mxu0 0.0
    %3396 = vmatpush1.msra.mxu0 0.0
    %3397 = vmatprep.subr.mxu0 0.0
    %3398 = vmatpush1.msra.mxu0 0.0
    %3399 = vmatprep.mubr.f32.mxu0 0.0
    %3400 = vmatmul.mubr.f32.gmra.mrb[0].mxu0 %v3333
    %v3401 = vpop.f32.mrb[0].mxu0
    %v3402 = vadd.f32 0.0, %v3401
    %v3403 = vpop.f32.mrb[0].mxu0
    %3404 = vdwg.mxu0
    %v3406 = vrot.slane %v3402, 6
    %v3408 = vadd.f32 %v3214, %v3406
    %v3409 = vxor.u32 %v3408, 2147483648
    %v3410 = vmul.f32 %v3409, 1.442695
    %v3411 = vpow.pop %v3410
    %v3412 = vadd.f32 %v3411, 1.0
    %v3413 = vrcp.pop %v3412
    %v3414 = vmul.f32 1.0, %v3413
    %v3415 = vtanh.pop %v3408
    %v3417 = vrot.slane %v3323, 6
    %v3419 = vmul.f32 %v3414, %v3417
    %3421 = vrot.lane.b32.xlu0 %v3415, 64
    %v3422 = vpop.permute.xlu0 %3421
    %v3424 = vmul.f32 %v3414, %v3422
    %3426 = vrot.lane.b32.xlu0 %v3424, 32
    %v3427 = vpop.permute.xlu0 %3426
    %v3429 = vadd.f32 %v3419, %v3427
    %v3430 = vtanh.pop %v3429
    %3432 = vrot.lane.b32.xlu0 %v3430, 64
    %v3433 = vpop.permute.xlu0 %3432
    %v3435 = vmul.f32 %v3414, %v3433
    %v3437 = vrot.slane %v3435, 2
    %3438 = vrot.lane.b32.xlu0 %v3437, 32
    %v3439 = vpop.permute.xlu0 %3438
    %v3440 = vsel %vm296, %v3439, 0
    %3442 = vmatprep.subr.mxu0 0.0
    %3443 = vmatpush1.msra.mxu0 %v3222
    %3444 = vmatprep.subr.mxu0 0.0
    %3445 = vmatpush1.msra.mxu0 %v3223
    %3446 = vmatprep.subr.mxu0 0.0
    %3447 = vmatpush1.msra.mxu0 %v3224
    %3448 = vmatprep.subr.mxu0 0.0
    %3449 = vmatpush1.msra.mxu0 %v3225
    %3450 = vmatprep.subr.mxu0 0.0
    %3451 = vmatpush1.msra.mxu0 0.0
    %3452 = vmatprep.subr.mxu0 0.0
    %3453 = vmatpush1.msra.mxu0 0.0
    %3454 = vmatprep.subr.mxu0 0.0
    %3455 = vmatpush1.msra.mxu0 0.0
    %3456 = vmatprep.subr.mxu0 0.0
    %3457 = vmatpush1.msra.mxu0 0.0
    %3458 = vmatprep.subr.mxu0 0.0
    %3459 = vmatpush1.msra.mxu0 0.0
    %3460 = vmatprep.subr.mxu0 0.0
    %3461 = vmatpush1.msra.mxu0 0.0
    %3462 = vmatprep.subr.mxu0 0.0
    %3463 = vmatpush1.msra.mxu0 0.0
    %3464 = vmatprep.subr.mxu0 0.0
    %3465 = vmatpush1.msra.mxu0 0.0
    %3466 = vmatprep.subr.mxu0 0.0
    %3467 = vmatpush1.msra.mxu0 0.0
    %3468 = vmatprep.subr.mxu0 0.0
    %3469 = vmatpush1.msra.mxu0 0.0
    %3470 = vmatprep.subr.mxu0 0.0
    %3471 = vmatpush1.msra.mxu0 0.0
    %3472 = vmatprep.subr.mxu0 0.0
    %3473 = vmatpush1.msra.mxu0 0.0
    %3474 = vmatprep.subr.mxu0 0.0
    %3475 = vmatpush1.msra.mxu0 0.0
    %3476 = vmatprep.subr.mxu0 0.0
    %3477 = vmatpush1.msra.mxu0 0.0
    %3478 = vmatprep.subr.mxu0 0.0
    %3479 = vmatpush1.msra.mxu0 0.0
    %3480 = vmatprep.subr.mxu0 0.0
    %3481 = vmatpush1.msra.mxu0 0.0
    %3482 = vmatprep.subr.mxu0 0.0
    %3483 = vmatpush1.msra.mxu0 0.0
    %3484 = vmatprep.subr.mxu0 0.0
    %3485 = vmatpush1.msra.mxu0 0.0
    %3486 = vmatprep.subr.mxu0 0.0
    %3487 = vmatpush1.msra.mxu0 0.0
    %3488 = vmatprep.subr.mxu0 0.0
    %3489 = vmatpush1.msra.mxu0 0.0
    %3490 = vmatprep.subr.mxu0 0.0
    %3491 = vmatpush1.msra.mxu0 0.0
    %3492 = vmatprep.subr.mxu0 0.0
    %3493 = vmatpush1.msra.mxu0 0.0
    %3494 = vmatprep.subr.mxu0 0.0
    %3495 = vmatpush1.msra.mxu0 0.0
    %3496 = vmatprep.subr.mxu0 0.0
    %3497 = vmatpush1.msra.mxu0 0.0
    %3498 = vmatprep.subr.mxu0 0.0
    %3499 = vmatpush1.msra.mxu0 0.0
    %3500 = vmatprep.subr.mxu0 0.0
    %3501 = vmatpush1.msra.mxu0 0.0
    %3502 = vmatprep.subr.mxu0 0.0
    %3503 = vmatpush1.msra.mxu0 0.0
    %3504 = vmatprep.subr.mxu0 0.0
    %3505 = vmatpush1.msra.mxu0 0.0
    %3506 = vmatprep.mubr.f32.mxu0 0.0
    %3507 = vmatmul.mubr.f32.gmra.mrb[0].mxu0 %v3440
    %v3508 = vpop.f32.mrb[0].mxu0
    %v3509 = vadd.f32 0.0, %v3508
    %v3510 = vpop.f32.mrb[0].mxu0
    %3511 = vdwg.mxu0
    %v3513 = vrot.slane %v3509, 4
    %v3515 = vadd.f32 %v3214, %v3513
    %v3516 = vxor.u32 %v3515, 2147483648
    %v3517 = vmul.f32 %v3516, 1.442695
    %v3518 = vpow.pop %v3517
    %v3519 = vadd.f32 %v3518, 1.0
    %v3520 = vrcp.pop %v3519
    %v3521 = vmul.f32 1.0, %v3520
    %v3522 = vtanh.pop %v3515
    %v3524 = vrot.slane %v3429, 6
    %v3526 = vmul.f32 %v3521, %v3524
    %3528 = vrot.lane.b32.xlu0 %v3522, 64
    %v3529 = vpop.permute.xlu0 %3528
    %v3531 = vmul.f32 %v3521, %v3529
    %3533 = vrot.lane.b32.xlu0 %v3531, 32
    %v3534 = vpop.permute.xlu0 %3533
    %v3536 = vadd.f32 %v3526, %v3534
    %v3537 = vtanh.pop %v3536
    %3539 = vrot.lane.b32.xlu0 %v3537, 64
    %v3540 = vpop.permute.xlu0 %3539
    %v3542 = vmul.f32 %v3521, %v3540
    %v3544 = vrot.slane %v3542, 4
    %3545 = vrot.lane.b32.xlu0 %v3544, 32
    %v3546 = vpop.permute.xlu0 %3545
    %v3547 = vsel %vm296, %v3546, 0
    %3549 = vmatprep.subr.mxu0 0.0
    %3550 = vmatpush1.msra.mxu0 %v3222
    %3551 = vmatprep.subr.mxu0 0.0
    %3552 = vmatpush1.msra.mxu0 %v3223
    %3553 = vmatprep.subr.mxu0 0.0
    %3554 = vmatpush1.msra.mxu0 %v3224
    %3555 = vmatprep.subr.mxu0 0.0
    %3556 = vmatpush1.msra.mxu0 %v3225
    %3557 = vmatprep.subr.mxu0 0.0
    %3558 = vmatpush1.msra.mxu0 0.0
    %3559 = vmatprep.subr.mxu0 0.0
    %3560 = vmatpush1.msra.mxu0 0.0
    %3561 = vmatprep.subr.mxu0 0.0
    %3562 = vmatpush1.msra.mxu0 0.0
    %3563 = vmatprep.subr.mxu0 0.0
    %3564 = vmatpush1.msra.mxu0 0.0
    %3565 = vmatprep.subr.mxu0 0.0
    %3566 = vmatpush1.msra.mxu0 0.0
    %3567 = vmatprep.subr.mxu0 0.0
    %3568 = vmatpush1.msra.mxu0 0.0
    %3569 = vmatprep.subr.mxu0 0.0
    %3570 = vmatpush1.msra.mxu0 0.0
    %3571 = vmatprep.subr.mxu0 0.0
    %3572 = vmatpush1.msra.mxu0 0.0
    %3573 = vmatprep.subr.mxu0 0.0
    %3574 = vmatpush1.msra.mxu0 0.0
    %3575 = vmatprep.subr.mxu0 0.0
    %3576 = vmatpush1.msra.mxu0 0.0
    %3577 = vmatprep.subr.mxu0 0.0
    %3578 = vmatpush1.msra.mxu0 0.0
    %3579 = vmatprep.subr.mxu0 0.0
    %3580 = vmatpush1.msra.mxu0 0.0
    %3581 = vmatprep.subr.mxu0 0.0
    %3582 = vmatpush1.msra.mxu0 0.0
    %3583 = vmatprep.subr.mxu0 0.0
    %3584 = vmatpush1.msra.mxu0 0.0
    %3585 = vmatprep.subr.mxu0 0.0
    %3586 = vmatpush1.msra.mxu0 0.0
    %3587 = vmatprep.subr.mxu0 0.0
    %3588 = vmatpush1.msra.mxu0 0.0
    %3589 = vmatprep.subr.mxu0 0.0
    %3590 = vmatpush1.msra.mxu0 0.0
    %3591 = vmatprep.subr.mxu0 0.0
    %3592 = vmatpush1.msra.mxu0 0.0
    %3593 = vmatprep.subr.mxu0 0.0
    %3594 = vmatpush1.msra.mxu0 0.0
    %3595 = vmatprep.subr.mxu0 0.0
    %3596 = vmatpush1.msra.mxu0 0.0
    %3597 = vmatprep.subr.mxu0 0.0
    %3598 = vmatpush1.msra.mxu0 0.0
    %3599 = vmatprep.subr.mxu0 0.0
    %3600 = vmatpush1.msra.mxu0 0.0
    %3601 = vmatprep.subr.mxu0 0.0
    %3602 = vmatpush1.msra.mxu0 0.0
    %3603 = vmatprep.subr.mxu0 0.0
    %3604 = vmatpush1.msra.mxu0 0.0
    %3605 = vmatprep.subr.mxu0 0.0
    %3606 = vmatpush1.msra.mxu0 0.0
    %3607 = vmatprep.subr.mxu0 0.0
    %3608 = vmatpush1.msra.mxu0 0.0
    %3609 = vmatprep.subr.mxu0 0.0
    %3610 = vmatpush1.msra.mxu0 0.0
    %3611 = vmatprep.subr.mxu0 0.0
    %3612 = vmatpush1.msra.mxu0 0.0
    %3613 = vmatprep.mubr.f32.mxu0 0.0
    %3614 = vmatmul.mubr.f32.gmra.mrb[0].mxu0 %v3547
    %v3615 = vpop.f32.mrb[0].mxu0
    %v3616 = vadd.f32 0.0, %v3615
    %v3617 = vpop.f32.mrb[0].mxu0
    %3618 = vdwg.mxu0
    %v3620 = vrot.slane %v3616, 2
    %v3622 = vadd.f32 %v3214, %v3620
    %v3623 = vxor.u32 %v3622, 2147483648
    %v3624 = vmul.f32 %v3623, 1.442695
    %v3625 = vpow.pop %v3624
    %v3626 = vadd.f32 %v3625, 1.0
    %v3627 = vrcp.pop %v3626
    %v3628 = vmul.f32 1.0, %v3627
    %v3629 = vtanh.pop %v3622
    %v3631 = vrot.slane %v3536, 6
    %v3633 = vmul.f32 %v3628, %v3631
    %3635 = vrot.lane.b32.xlu0 %v3629, 64
    %v3636 = vpop.permute.xlu0 %3635
    %v3638 = vmul.f32 %v3628, %v3636
    %3640 = vrot.lane.b32.xlu0 %v3638, 32
    %v3641 = vpop.permute.xlu0 %3640
    %v3643 = vadd.f32 %v3633, %v3641
    %v3644 = vtanh.pop %v3643
    %3646 = vrot.lane.b32.xlu0 %v3644, 64
    %v3647 = vpop.permute.xlu0 %3646
    %v3649 = vmul.f32 %v3628, %v3647
    %v3651 = vrot.slane %v3649, 6
    %3652 = vrot.lane.b32.xlu0 %v3651, 32
    %v3653 = vpop.permute.xlu0 %3652
    %v3654 = vsel %vm296, %v3653, 0
    %3656 = vmatprep.subr.mxu0 0.0
    %3657 = vmatpush1.msra.mxu0 %v3222
    %3658 = vmatprep.subr.mxu0 0.0
    %3659 = vmatpush1.msra.mxu0 %v3223
    %3660 = vmatprep.subr.mxu0 0.0
    %3661 = vmatpush1.msra.mxu0 %v3224
    %3662 = vmatprep.subr.mxu0 0.0
    %3663 = vmatpush1.msra.mxu0 %v3225
    %3664 = vmatprep.subr.mxu0 0.0
    %3665 = vmatpush1.msra.mxu0 0.0
    %3666 = vmatprep.subr.mxu0 0.0
    %3667 = vmatpush1.msra.mxu0 0.0
    %3668 = vmatprep.subr.mxu0 0.0
    %3669 = vmatpush1.msra.mxu0 0.0
    %3670 = vmatprep.subr.mxu0 0.0
    %3671 = vmatpush1.msra.mxu0 0.0
    %3672 = vmatprep.subr.mxu0 0.0
    %3673 = vmatpush1.msra.mxu0 0.0
    %3674 = vmatprep.subr.mxu0 0.0
    %3675 = vmatpush1.msra.mxu0 0.0
    %3676 = vmatprep.subr.mxu0 0.0
    %3677 = vmatpush1.msra.mxu0 0.0
    %3678 = vmatprep.subr.mxu0 0.0
    %3679 = vmatpush1.msra.mxu0 0.0
    %3680 = vmatprep.subr.mxu0 0.0
    %3681 = vmatpush1.msra.mxu0 0.0
    %3682 = vmatprep.subr.mxu0 0.0
    %3683 = vmatpush1.msra.mxu0 0.0
    %3684 = vmatprep.subr.mxu0 0.0
    %3685 = vmatpush1.msra.mxu0 0.0
    %3686 = vmatprep.subr.mxu0 0.0
    %3687 = vmatpush1.msra.mxu0 0.0
    %3688 = vmatprep.subr.mxu0 0.0
    %3689 = vmatpush1.msra.mxu0 0.0
    %3690 = vmatprep.subr.mxu0 0.0
    %3691 = vmatpush1.msra.mxu0 0.0
    %3692 = vmatprep.subr.mxu0 0.0
    %3693 = vmatpush1.msra.mxu0 0.0
    %3694 = vmatprep.subr.mxu0 0.0
    %3695 = vmatpush1.msra.mxu0 0.0
    %3696 = vmatprep.subr.mxu0 0.0
    %3697 = vmatpush1.msra.mxu0 0.0
    %3698 = vmatprep.subr.mxu0 0.0
    %3699 = vmatpush1.msra.mxu0 0.0
    %3700 = vmatprep.subr.mxu0 0.0
    %3701 = vmatpush1.msra.mxu0 0.0
    %3702 = vmatprep.subr.mxu0 0.0
    %3703 = vmatpush1.msra.mxu0 0.0
    %3704 = vmatprep.subr.mxu0 0.0
    %3705 = vmatpush1.msra.mxu0 0.0
    %3706 = vmatprep.subr.mxu0 0.0
    %3707 = vmatpush1.msra.mxu0 0.0
    %3708 = vmatprep.subr.mxu0 0.0
    %3709 = vmatpush1.msra.mxu0 0.0
    %3710 = vmatprep.subr.mxu0 0.0
    %3711 = vmatpush1.msra.mxu0 0.0
    %3712 = vmatprep.subr.mxu0 0.0
    %3713 = vmatpush1.msra.mxu0 0.0
    %3714 = vmatprep.subr.mxu0 0.0
    %3715 = vmatpush1.msra.mxu0 0.0
    %3716 = vmatprep.subr.mxu0 0.0
    %3717 = vmatpush1.msra.mxu0 0.0
    %3718 = vmatprep.subr.mxu0 0.0
    %3719 = vmatpush1.msra.mxu0 0.0
    %3720 = vmatprep.mubr.f32.mxu0 0.0
    %3721 = vmatmul.mubr.f32.gmra.mrb[0].mxu0 %v3654
    %v3722 = vpop.f32.mrb[0].mxu0
    %v3723 = vadd.f32 0.0, %v3722
    %v3724 = vpop.f32.mrb[0].mxu0
    %3725 = vdwg.mxu0
    %v3726 = vadd.f32 %v3219, %v3723
    %v3727 = vxor.u32 %v3726, 2147483648
    %v3728 = vmul.f32 %v3727, 1.442695
    %v3729 = vpow.pop %v3728
    %v3730 = vadd.f32 %v3729, 1.0
    %v3731 = vrcp.pop %v3730
    %v3732 = vmul.f32 1.0, %v3731
    %v3733 = vtanh.pop %v3726
    %v3735 = vrot.slane %v3643, 6
    %v3737 = vmul.f32 %v3732, %v3735
    %3739 = vrot.lane.b32.xlu0 %v3733, 64
    %v3740 = vpop.permute.xlu0 %3739
    %v3742 = vmul.f32 %v3732, %v3740
    %3744 = vrot.lane.b32.xlu0 %v3742, 32
    %v3745 = vpop.permute.xlu0 %3744
    %v3747 = vadd.f32 %v3737, %v3745
    %v3748 = vtanh.pop %v3747
    %3750 = vrot.lane.b32.xlu0 %v3748, 64
    %v3751 = vpop.permute.xlu0 %3750
    %v3753 = vmul.f32 %v3732, %v3751
    %3755 = vrot.lane.b32.xlu0 %v3753, 32
    %v3756 = vpop.permute.xlu0 %3755
    %v3757 = vsel %vm296, %v3756, 0
    %3759 = vmatprep.subr.mxu0 0.0
    %3760 = vmatpush1.msra.mxu0 %v3222
    %3761 = vmatprep.subr.mxu0 0.0
    %3762 = vmatpush1.msra.mxu0 %v3223
    %3763 = vmatprep.subr.mxu0 0.0
    %3764 = vmatpush1.msra.mxu0 %v3224
    %3765 = vmatprep.subr.mxu0 0.0
    %3766 = vmatpush1.msra.mxu0 %v3225
    %3767 = vmatprep.subr.mxu0 0.0
    %3768 = vmatpush1.msra.mxu0 0.0
    %3769 = vmatprep.subr.mxu0 0.0
    %3770 = vmatpush1.msra.mxu0 0.0
    %3771 = vmatprep.subr.mxu0 0.0
    %3772 = vmatpush1.msra.mxu0 0.0
    %3773 = vmatprep.subr.mxu0 0.0
    %3774 = vmatpush1.msra.mxu0 0.0
    %3775 = vmatprep.subr.mxu0 0.0
    %3776 = vmatpush1.msra.mxu0 0.0
    %3777 = vmatprep.subr.mxu0 0.0
    %3778 = vmatpush1.msra.mxu0 0.0
    %3779 = vmatprep.subr.mxu0 0.0
    %3780 = vmatpush1.msra.mxu0 0.0
    %3781 = vmatprep.subr.mxu0 0.0
    %3782 = vmatpush1.msra.mxu0 0.0
    %3783 = vmatprep.subr.mxu0 0.0
    %3784 = vmatpush1.msra.mxu0 0.0
    %3785 = vmatprep.subr.mxu0 0.0
    %3786 = vmatpush1.msra.mxu0 0.0
    %3787 = vmatprep.subr.mxu0 0.0
    %3788 = vmatpush1.msra.mxu0 0.0
    %3789 = vmatprep.subr.mxu0 0.0
    %3790 = vmatpush1.msra.mxu0 0.0
    %3791 = vmatprep.subr.mxu0 0.0
    %3792 = vmatpush1.msra.mxu0 0.0
    %3793 = vmatprep.subr.mxu0 0.0
    %3794 = vmatpush1.msra.mxu0 0.0
    %3795 = vmatprep.subr.mxu0 0.0
    %3796 = vmatpush1.msra.mxu0 0.0
    %3797 = vmatprep.subr.mxu0 0.0
    %3798 = vmatpush1.msra.mxu0 0.0
    %3799 = vmatprep.subr.mxu0 0.0
    %3800 = vmatpush1.msra.mxu0 0.0
    %3801 = vmatprep.subr.mxu0 0.0
    %3802 = vmatpush1.msra.mxu0 0.0
    %3803 = vmatprep.subr.mxu0 0.0
    %3804 = vmatpush1.msra.mxu0 0.0
    %3805 = vmatprep.subr.mxu0 0.0
    %3806 = vmatpush1.msra.mxu0 0.0
    %3807 = vmatprep.subr.mxu0 0.0
    %3808 = vmatpush1.msra.mxu0 0.0
    %3809 = vmatprep.subr.mxu0 0.0
    %3810 = vmatpush1.msra.mxu0 0.0
    %3811 = vmatprep.subr.mxu0 0.0
    %3812 = vmatpush1.msra.mxu0 0.0
    %3813 = vmatprep.subr.mxu0 0.0
    %3814 = vmatpush1.msra.mxu0 0.0
    %3815 = vmatprep.subr.mxu0 0.0
    %3816 = vmatpush1.msra.mxu0 0.0
    %3817 = vmatprep.subr.mxu0 0.0
    %3818 = vmatpush1.msra.mxu0 0.0
    %3819 = vmatprep.subr.mxu0 0.0
    %3820 = vmatpush1.msra.mxu0 0.0
    %3821 = vmatprep.subr.mxu0 0.0
    %3822 = vmatpush1.msra.mxu0 0.0
    %3823 = vmatprep.mubr.f32.mxu0 0.0
    %3824 = vmatmul.mubr.f32.gmra.mrb[0].mxu0 %v3757
    %v3825 = vpop.f32.mrb[0].mxu0
    %v3826 = vadd.f32 0.0, %v3825
    %v3827 = vpop.f32.mrb[0].mxu0
    %3828 = vdwg.mxu0
    %v3830 = vrot.slane %v3826, 6
    %v3832 = vadd.f32 %v3219, %v3830
    %v3833 = vxor.u32 %v3832, 2147483648
    %v3834 = vmul.f32 %v3833, 1.442695
    %v3835 = vpow.pop %v3834
    %v3836 = vadd.f32 %v3835, 1.0
    %v3837 = vrcp.pop %v3836
    %v3838 = vmul.f32 1.0, %v3837
    %v3839 = vtanh.pop %v3832
    %v3841 = vrot.slane %v3747, 6
    %v3843 = vmul.f32 %v3838, %v3841
    %3845 = vrot.lane.b32.xlu0 %v3839, 64
    %v3846 = vpop.permute.xlu0 %3845
    %v3848 = vmul.f32 %v3838, %v3846
    %3850 = vrot.lane.b32.xlu0 %v3848, 32
    %v3851 = vpop.permute.xlu0 %3850
    %v3853 = vadd.f32 %v3843, %v3851
    %v3854 = vtanh.pop %v3853
    %3856 = vrot.lane.b32.xlu0 %v3854, 64
    %v3857 = vpop.permute.xlu0 %3856
    %v3859 = vmul.f32 %v3838, %v3857
    %v3861 = vrot.slane %v3859, 2
    %3862 = vrot.lane.b32.xlu0 %v3861, 32
    %v3863 = vpop.permute.xlu0 %3862
    %v3864 = vsel %vm296, %v3863, 0
    %3866 = vmatprep.subr.mxu0 0.0
    %3867 = vmatpush1.msra.mxu0 %v3222
    %3868 = vmatprep.subr.mxu0 0.0
    %3869 = vmatpush1.msra.mxu0 %v3223
    %3870 = vmatprep.subr.mxu0 0.0
    %3871 = vmatpush1.msra.mxu0 %v3224
    %3872 = vmatprep.subr.mxu0 0.0
    %3873 = vmatpush1.msra.mxu0 %v3225
    %3874 = vmatprep.subr.mxu0 0.0
    %3875 = vmatpush1.msra.mxu0 0.0
    %3876 = vmatprep.subr.mxu0 0.0
    %3877 = vmatpush1.msra.mxu0 0.0
    %3878 = vmatprep.subr.mxu0 0.0
    %3879 = vmatpush1.msra.mxu0 0.0
    %3880 = vmatprep.subr.mxu0 0.0
    %3881 = vmatpush1.msra.mxu0 0.0
    %3882 = vmatprep.subr.mxu0 0.0
    %3883 = vmatpush1.msra.mxu0 0.0
    %3884 = vmatprep.subr.mxu0 0.0
    %3885 = vmatpush1.msra.mxu0 0.0
    %3886 = vmatprep.subr.mxu0 0.0
    %3887 = vmatpush1.msra.mxu0 0.0
    %3888 = vmatprep.subr.mxu0 0.0
    %3889 = vmatpush1.msra.mxu0 0.0
    %3890 = vmatprep.subr.mxu0 0.0
    %3891 = vmatpush1.msra.mxu0 0.0
    %3892 = vmatprep.subr.mxu0 0.0
    %3893 = vmatpush1.msra.mxu0 0.0
    %3894 = vmatprep.subr.mxu0 0.0
    %3895 = vmatpush1.msra.mxu0 0.0
    %3896 = vmatprep.subr.mxu0 0.0
    %3897 = vmatpush1.msra.mxu0 0.0
    %3898 = vmatprep.subr.mxu0 0.0
    %3899 = vmatpush1.msra.mxu0 0.0
    %3900 = vmatprep.subr.mxu0 0.0
    %3901 = vmatpush1.msra.mxu0 0.0
    %3902 = vmatprep.subr.mxu0 0.0
    %3903 = vmatpush1.msra.mxu0 0.0
    %3904 = vmatprep.subr.mxu0 0.0
    %3905 = vmatpush1.msra.mxu0 0.0
    %3906 = vmatprep.subr.mxu0 0.0
    %3907 = vmatpush1.msra.mxu0 0.0
    %3908 = vmatprep.subr.mxu0 0.0
    %3909 = vmatpush1.msra.mxu0 0.0
    %3910 = vmatprep.subr.mxu0 0.0
    %3911 = vmatpush1.msra.mxu0 0.0
    %3912 = vmatprep.subr.mxu0 0.0
    %3913 = vmatpush1.msra.mxu0 0.0
    %3914 = vmatprep.subr.mxu0 0.0
    %3915 = vmatpush1.msra.mxu0 0.0
    %3916 = vmatprep.subr.mxu0 0.0
    %3917 = vmatpush1.msra.mxu0 0.0
    %3918 = vmatprep.subr.mxu0 0.0
    %3919 = vmatpush1.msra.mxu0 0.0
    %3920 = vmatprep.subr.mxu0 0.0
    %3921 = vmatpush1.msra.mxu0 0.0
    %3922 = vmatprep.subr.mxu0 0.0
    %3923 = vmatpush1.msra.mxu0 0.0
    %3924 = vmatprep.subr.mxu0 0.0
    %3925 = vmatpush1.msra.mxu0 0.0
    %3926 = vmatprep.subr.mxu0 0.0
    %3927 = vmatpush1.msra.mxu0 0.0
    %3928 = vmatprep.subr.mxu0 0.0
    %3929 = vmatpush1.msra.mxu0 0.0
    %3930 = vmatprep.mubr.f32.mxu0 0.0
    %3931 = vmatmul.mubr.f32.gmra.mrb[0].mxu0 %v3864
    %v3932 = vpop.f32.mrb[0].mxu0
    %v3933 = vadd.f32 0.0, %v3932
    %v3934 = vpop.f32.mrb[0].mxu0
    %3935 = vdwg.mxu0
    %v3937 = vrot.slane %v3933, 4
    %v3939 = vadd.f32 %v3219, %v3937
    %v3940 = vxor.u32 %v3939, 2147483648
    %v3941 = vmul.f32 %v3940, 1.442695
    %v3942 = vpow.pop %v3941
    %v3943 = vadd.f32 %v3942, 1.0
    %v3944 = vrcp.pop %v3943
    %v3945 = vmul.f32 1.0, %v3944
    %v3946 = vtanh.pop %v3939
    %v3948 = vrot.slane %v3853, 6
    %v3950 = vmul.f32 %v3945, %v3948
    %3952 = vrot.lane.b32.xlu0 %v3946, 64
    %v3953 = vpop.permute.xlu0 %3952
    %v3955 = vmul.f32 %v3945, %v3953
    %3957 = vrot.lane.b32.xlu0 %v3955, 32
    %v3958 = vpop.permute.xlu0 %3957
    %v3960 = vadd.f32 %v3950, %v3958
    %v3961 = vtanh.pop %v3960
    %3963 = vrot.lane.b32.xlu0 %v3961, 64
    %v3964 = vpop.permute.xlu0 %3963
    %v3966 = vmul.f32 %v3945, %v3964
    %v3968 = vrot.slane %v3966, 4
    %3969 = vrot.lane.b32.xlu0 %v3968, 32
    %v3970 = vpop.permute.xlu0 %3969
    %v3971 = vsel %vm296, %v3970, 0
    %3973 = vmatprep.subr.mxu0 0.0
    %3974 = vmatpush1.msra.mxu0 %v3222
    %3975 = vmatprep.subr.mxu0 0.0
    %3976 = vmatpush1.msra.mxu0 %v3223
    %3977 = vmatprep.subr.mxu0 0.0
    %3978 = vmatpush1.msra.mxu0 %v3224
    %3979 = vmatprep.subr.mxu0 0.0
    %3980 = vmatpush1.msra.mxu0 %v3225
    %3981 = vmatprep.subr.mxu0 0.0
    %3982 = vmatpush1.msra.mxu0 0.0
    %3983 = vmatprep.subr.mxu0 0.0
    %3984 = vmatpush1.msra.mxu0 0.0
    %3985 = vmatprep.subr.mxu0 0.0
    %3986 = vmatpush1.msra.mxu0 0.0
    %3987 = vmatprep.subr.mxu0 0.0
    %3988 = vmatpush1.msra.mxu0 0.0
    %3989 = vmatprep.subr.mxu0 0.0
    %3990 = vmatpush1.msra.mxu0 0.0
    %3991 = vmatprep.subr.mxu0 0.0
    %3992 = vmatpush1.msra.mxu0 0.0
    %3993 = vmatprep.subr.mxu0 0.0
    %3994 = vmatpush1.msra.mxu0 0.0
    %3995 = vmatprep.subr.mxu0 0.0
    %3996 = vmatpush1.msra.mxu0 0.0
    %3997 = vmatprep.subr.mxu0 0.0
    %3998 = vmatpush1.msra.mxu0 0.0
    %3999 = vmatprep.subr.mxu0 0.0
    %4000 = vmatpush1.msra.mxu0 0.0
    %4001 = vmatprep.subr.mxu0 0.0
    %4002 = vmatpush1.msra.mxu0 0.0
    %4003 = vmatprep.subr.mxu0 0.0
    %4004 = vmatpush1.msra.mxu0 0.0
    %4005 = vmatprep.subr.mxu0 0.0
    %4006 = vmatpush1.msra.mxu0 0.0
    %4007 = vmatprep.subr.mxu0 0.0
    %4008 = vmatpush1.msra.mxu0 0.0
    %4009 = vmatprep.subr.mxu0 0.0
    %4010 = vmatpush1.msra.mxu0 0.0
    %4011 = vmatprep.subr.mxu0 0.0
    %4012 = vmatpush1.msra.mxu0 0.0
    %4013 = vmatprep.subr.mxu0 0.0
    %4014 = vmatpush1.msra.mxu0 0.0
    %4015 = vmatprep.subr.mxu0 0.0
    %4016 = vmatpush1.msra.mxu0 0.0
    %4017 = vmatprep.subr.mxu0 0.0
    %4018 = vmatpush1.msra.mxu0 0.0
    %4019 = vmatprep.subr.mxu0 0.0
    %4020 = vmatpush1.msra.mxu0 0.0
    %4021 = vmatprep.subr.mxu0 0.0
    %4022 = vmatpush1.msra.mxu0 0.0
    %4023 = vmatprep.subr.mxu0 0.0
    %4024 = vmatpush1.msra.mxu0 0.0
    %4025 = vmatprep.subr.mxu0 0.0
    %4026 = vmatpush1.msra.mxu0 0.0
    %4027 = vmatprep.subr.mxu0 0.0
    %4028 = vmatpush1.msra.mxu0 0.0
    %4029 = vmatprep.subr.mxu0 0.0
    %4030 = vmatpush1.msra.mxu0 0.0
    %4031 = vmatprep.subr.mxu0 0.0
    %4032 = vmatpush1.msra.mxu0 0.0
    %4033 = vmatprep.subr.mxu0 0.0
    %4034 = vmatpush1.msra.mxu0 0.0
    %4035 = vmatprep.subr.mxu0 0.0
    %4036 = vmatpush1.msra.mxu0 0.0
    %4037 = vmatprep.mubr.f32.mxu0 0.0
    %4038 = vmatmul.mubr.f32.gmra.mrb[0].mxu0 %v3971
    %v4039 = vpop.f32.mrb[0].mxu0
    %v4040 = vadd.f32 0.0, %v4039
    %v4041 = vpop.f32.mrb[0].mxu0
    %4042 = vdwg.mxu0
    %v4044 = vrot.slane %v4040, 2
    %v4046 = vadd.f32 %v3219, %v4044
    %v4047 = vxor.u32 %v4046, 2147483648
    %v4048 = vmul.f32 %v4047, 1.442695
    %v4049 = vpow.pop %v4048
    %v4050 = vadd.f32 %v4049, 1.0
    %v4051 = vrcp.pop %v4050
    %v4052 = vmul.f32 1.0, %v4051
    %v4053 = vtanh.pop %v4046
    %v4055 = vrot.slane %v3960, 6
    %v4057 = vmul.f32 %v4052, %v4055
    %4059 = vrot.lane.b32.xlu0 %v4053, 64
    %v4060 = vpop.permute.xlu0 %4059
    %v4062 = vmul.f32 %v4052, %v4060
    %4064 = vrot.lane.b32.xlu0 %v4062, 32
    %v4065 = vpop.permute.xlu0 %4064
    %v4067 = vadd.f32 %v4057, %v4065
    %v4068 = vtanh.pop %v4067
    %4070 = vrot.lane.b32.xlu0 %v4068, 64
    %v4071 = vpop.permute.xlu0 %4070
    %v4073 = vmul.f32 %v4052, %v4071
    %v4074 = vld [vmem:[#allocation19] sm:$0xff]
    %v4075 = vld [vmem:[#allocation19 + $0x8] sm:$0xff]
    %v4076 = vld [vmem:[#allocation19 + $0x10] sm:$0xff]
    %v4077 = vld [vmem:[#allocation19 + $0x18] sm:$0xff]
    %v4078 = vld [vmem:[%s16] sm:$0x1]
    %v4080 = vlaneseq
    %v4081 = vshrl.u32 %v4080, 7
    %v4082 = vsub.s32 0, %v4081
    %v4083 = vrot.slane %v4078, %v4082
    %v4086 = vrot.slane %v4073, 6
    %4087 = vrot.lane.b32.xlu0 %v4086, 32
    %v4088 = vpop.permute.xlu0 %4087
    %v4089 = vsel %vm296, %v4088, 0
    %4091 = vmatprep.subr.mxu0 0.0
    %4092 = vmatpush1.msra.mxu0 %v4074
    %4093 = vmatprep.subr.mxu0 0.0
    %4094 = vmatpush1.msra.mxu0 %v4075
    %4095 = vmatprep.subr.mxu0 0.0
    %4096 = vmatpush1.msra.mxu0 %v4076
    %4097 = vmatprep.subr.mxu0 0.0
    %4098 = vmatpush1.msra.mxu0 %v4077
    %4099 = vmatprep.subr.mxu0 0.0
    %4100 = vmatpush1.msra.mxu0 0.0
    %4101 = vmatprep.subr.mxu0 0.0
    %4102 = vmatpush1.msra.mxu0 0.0
    %4103 = vmatprep.subr.mxu0 0.0
    %4104 = vmatpush1.msra.mxu0 0.0
    %4105 = vmatprep.subr.mxu0 0.0
    %4106 = vmatpush1.msra.mxu0 0.0
    %4107 = vmatprep.subr.mxu0 0.0
    %4108 = vmatpush1.msra.mxu0 0.0
    %4109 = vmatprep.subr.mxu0 0.0
    %4110 = vmatpush1.msra.mxu0 0.0
    %4111 = vmatprep.subr.mxu0 0.0
    %4112 = vmatpush1.msra.mxu0 0.0
    %4113 = vmatprep.subr.mxu0 0.0
    %4114 = vmatpush1.msra.mxu0 0.0
    %4115 = vmatprep.subr.mxu0 0.0
    %4116 = vmatpush1.msra.mxu0 0.0
    %4117 = vmatprep.subr.mxu0 0.0
    %4118 = vmatpush1.msra.mxu0 0.0
    %4119 = vmatprep.subr.mxu0 0.0
    %4120 = vmatpush1.msra.mxu0 0.0
    %4121 = vmatprep.subr.mxu0 0.0
    %4122 = vmatpush1.msra.mxu0 0.0
    %4123 = vmatprep.subr.mxu0 0.0
    %4124 = vmatpush1.msra.mxu0 0.0
    %4125 = vmatprep.subr.mxu0 0.0
    %4126 = vmatpush1.msra.mxu0 0.0
    %4127 = vmatprep.subr.mxu0 0.0
    %4128 = vmatpush1.msra.mxu0 0.0
    %4129 = vmatprep.subr.mxu0 0.0
    %4130 = vmatpush1.msra.mxu0 0.0
    %4131 = vmatprep.subr.mxu0 0.0
    %4132 = vmatpush1.msra.mxu0 0.0
    %4133 = vmatprep.subr.mxu0 0.0
    %4134 = vmatpush1.msra.mxu0 0.0
    %4135 = vmatprep.subr.mxu0 0.0
    %4136 = vmatpush1.msra.mxu0 0.0
    %4137 = vmatprep.subr.mxu0 0.0
    %4138 = vmatpush1.msra.mxu0 0.0
    %4139 = vmatprep.subr.mxu0 0.0
    %4140 = vmatpush1.msra.mxu0 0.0
    %4141 = vmatprep.subr.mxu0 0.0
    %4142 = vmatpush1.msra.mxu0 0.0
    %4143 = vmatprep.subr.mxu0 0.0
    %4144 = vmatpush1.msra.mxu0 0.0
    %4145 = vmatprep.subr.mxu0 0.0
    %4146 = vmatpush1.msra.mxu0 0.0
    %4147 = vmatprep.subr.mxu0 0.0
    %4148 = vmatpush1.msra.mxu0 0.0
    %4149 = vmatprep.subr.mxu0 0.0
    %4150 = vmatpush1.msra.mxu0 0.0
    %4151 = vmatprep.subr.mxu0 0.0
    %4152 = vmatpush1.msra.mxu0 0.0
    %4153 = vmatprep.subr.mxu0 0.0
    %4154 = vmatpush1.msra.mxu0 0.0
    %4155 = vmatprep.mubr.f32.mxu0 0.0
    %4156 = vmatmul.mubr.f32.gmra.mrb[0].mxu0 %v4089
    %v4157 = vpop.f32.mrb[0].mxu0
    %v4158 = vadd.f32 %v4083, %v4157
    %v4159 = vpop.f32.mrb[0].mxu0
    %4160 = vdwg.mxu0
    %v4161 = vmax.f32 %v4158, 0.0
    %v4162 = vld [vmem:[%s17] sm:$0xff]
    %v4163 = vld [vmem:[%s17 + $0x8] sm:$0xff]
    %v4164 = vld [vmem:[%s17 + $0x10] sm:$0xff]
    %v4165 = vld [vmem:[%s17 + $0x18] sm:$0xff]
    %v4166 = vld [vmem:[#allocation4] sm:$0x1]
    %v4168 = vlaneseq
    %v4169 = vshrl.u32 %v4168, 7
    %v4170 = vsub.s32 0, %v4169
    %v4171 = vrot.slane %v4166, %v4170
    %v4174 = vsel %vm296, %v4161, 0
    %4176 = vmatprep.subr.mxu0 0.0
    %4177 = vmatpush1.msra.mxu0 %v4162
    %4178 = vmatprep.subr.mxu0 0.0
    %4179 = vmatpush1.msra.mxu0 %v4163
    %4180 = vmatprep.subr.mxu0 0.0
    %4181 = vmatpush1.msra.mxu0 %v4164
    %4182 = vmatprep.subr.mxu0 0.0
    %4183 = vmatpush1.msra.mxu0 %v4165
    %4184 = vmatprep.subr.mxu0 0.0
    %4185 = vmatpush1.msra.mxu0 0.0
    %4186 = vmatprep.subr.mxu0 0.0
    %4187 = vmatpush1.msra.mxu0 0.0
    %4188 = vmatprep.subr.mxu0 0.0
    %4189 = vmatpush1.msra.mxu0 0.0
    %4190 = vmatprep.subr.mxu0 0.0
    %4191 = vmatpush1.msra.mxu0 0.0
    %4192 = vmatprep.subr.mxu0 0.0
    %4193 = vmatpush1.msra.mxu0 0.0
    %4194 = vmatprep.subr.mxu0 0.0
    %4195 = vmatpush1.msra.mxu0 0.0
    %4196 = vmatprep.subr.mxu0 0.0
    %4197 = vmatpush1.msra.mxu0 0.0
    %4198 = vmatprep.subr.mxu0 0.0
    %4199 = vmatpush1.msra.mxu0 0.0
    %4200 = vmatprep.subr.mxu0 0.0
    %4201 = vmatpush1.msra.mxu0 0.0
    %4202 = vmatprep.subr.mxu0 0.0
    %4203 = vmatpush1.msra.mxu0 0.0
    %4204 = vmatprep.subr.mxu0 0.0
    %4205 = vmatpush1.msra.mxu0 0.0
    %4206 = vmatprep.subr.mxu0 0.0
    %4207 = vmatpush1.msra.mxu0 0.0
    %4208 = vmatprep.subr.mxu0 0.0
    %4209 = vmatpush1.msra.mxu0 0.0
    %4210 = vmatprep.subr.mxu0 0.0
    %4211 = vmatpush1.msra.mxu0 0.0
    %4212 = vmatprep.subr.mxu0 0.0
    %4213 = vmatpush1.msra.mxu0 0.0
    %4214 = vmatprep.subr.mxu0 0.0
    %4215 = vmatpush1.msra.mxu0 0.0
    %4216 = vmatprep.subr.mxu0 0.0
    %4217 = vmatpush1.msra.mxu0 0.0
    %4218 = vmatprep.subr.mxu0 0.0
    %4219 = vmatpush1.msra.mxu0 0.0
    %4220 = vmatprep.subr.mxu0 0.0
    %4221 = vmatpush1.msra.mxu0 0.0
    %4222 = vmatprep.subr.mxu0 0.0
    %4223 = vmatpush1.msra.mxu0 0.0
    %4224 = vmatprep.subr.mxu0 0.0
    %4225 = vmatpush1.msra.mxu0 0.0
    %4226 = vmatprep.subr.mxu0 0.0
    %4227 = vmatpush1.msra.mxu0 0.0
    %4228 = vmatprep.subr.mxu0 0.0
    %4229 = vmatpush1.msra.mxu0 0.0
    %4230 = vmatprep.subr.mxu0 0.0
    %4231 = vmatpush1.msra.mxu0 0.0
    %4232 = vmatprep.subr.mxu0 0.0
    %4233 = vmatpush1.msra.mxu0 0.0
    %4234 = vmatprep.subr.mxu0 0.0
    %4235 = vmatpush1.msra.mxu0 0.0
    %4236 = vmatprep.subr.mxu0 0.0
    %4237 = vmatpush1.msra.mxu0 0.0
    %4238 = vmatprep.subr.mxu0 0.0
    %4239 = vmatpush1.msra.mxu0 0.0
    %4240 = vmatprep.mubr.f32.mxu0 0.0
    %4241 = vmatmul.mubr.f32.gmra.mrb[0].mxu0 %v4174
    %v4242 = vpop.f32.mrb[0].mxu0
    %v4243 = vadd.f32 %v4171, %v4242
    %v4244 = vpop.f32.mrb[0].mxu0
    %4245 = vdwg.mxu0
    %vm4246 = vcmask 1024
    %4247 = vst.msk [vmem:[%s19] sm:$0x3] %vm4246, %v4243
    // Predicated region
    $region118: #{tpu_custom_call.1} parent=1 // pred_check
      _
    $region119: #{tpu_custom_call.1} parent=1 // pred_check_branch
      %4249 = sbr.rel (0) target = $region121
    $region120: #{tpu_custom_call.1} parent=1 // pred_region
      _
    $region121: #{tpu_custom_call.1} parent=1 // pred_fallthru
      _
    // Predicated region
    $region122: #{tpu_custom_call.1} parent=1 // pred_check
      _
    $region123: #{tpu_custom_call.1} parent=1 // pred_check_branch
      %4251 = sbr.rel (0) target = $region125
    $region124: #{tpu_custom_call.1} parent=1 // pred_region
      _
    $region125: #{tpu_custom_call.1} parent=1 // pred_fallthru
      _
    %4252 = vsyncpa [#allocation6], 1
    %4253 = vsyncpa [#allocation8], 1
    %4254 = vsyncpa [#allocation11], 1
    %4255 = vsyncpa [#allocation14], 1
    %4256 = vsyncpa [#allocation17], 1
    %4257 = vsyncpa [#allocation20], 1

</llo_original>
